<compile_context>
chip_gen: v7x
topology: tpu7x:2x2x1
jax: 0.10.0
libtpu: 0.0.40
codegen_flags: <defaults>
</compile_context>

<pallas_src>
import functools

import jax
import jax.numpy as jnp
import numpy as np
from jax.experimental import pallas as pl
from jax.experimental.pallas import tpu as pltpu

NEG_SLOPE = 0.2  # DGL GATConv default negative_slope


def _fused_gat_kernel(*refs, heads_meta):
    """refs = (x_ref, [adj, w_flat, al_flat, ar_flat, b] * n_layers, out_ref).

    heads_meta: tuple of (num_heads, f_out) per layer (static Python ints).
    """
    x_ref = refs[0]
    out_ref = refs[-1]
    layer_refs = refs[1:-1]
    n_layers = len(heads_meta)

    h = x_ref[...]                                     # (N_src0, F_in0) f32
    for l in range(n_layers):                          # unrolled (n_layers small)
        adj_ref, w_ref, al_ref, ar_ref, b_ref = layer_refs[5 * l:5 * l + 5]
        num_heads, f_out = heads_meta[l]
        last = (l == n_layers - 1)

        adj = adj_ref[...]                             # (N_dst, N_src) 0/1 mask
        n_dst = adj.shape[0]

        # One MXU matmul for all heads: (N_src, F_in) @ (F_in, H*F_out).
        feat = jnp.dot(h, w_ref[...], preferred_element_type=jnp.float32)
        feat_dst = feat[:n_dst]                        # dst nodes = first rows (DGL)
        al = al_ref[...]                               # (1, H*F_out)
        ar = ar_ref[...]                               # (1, H*F_out)

        heads_out = []
        acc = None
        for hh in range(num_heads):                    # small, unrolled
            sl = slice(hh * f_out, (hh + 1) * f_out)
            feat_h = feat[:, sl]                       # (N_src, F_out)
            fdst_h = feat_dst[:, sl]                   # (N_dst, F_out)

            # el[0, s] = <a_l, feat_h[s]> ; er[d, 0] = <a_r, feat_h_dst[d]>
            el = jax.lax.dot_general(al[:, sl], feat_h, (((1,), (1,)), ((), ())),
                                     preferred_element_type=jnp.float32)
            er = jax.lax.dot_general(fdst_h, ar[:, sl], (((1,), (1,)), ((), ())),
                                     preferred_element_type=jnp.float32)
            e = er + el                                # (N_dst, N_src)
            e = jnp.where(e > 0.0, e, NEG_SLOPE * e)   # LeakyReLU(0.2)
            e = jnp.where(adj > 0.0, e, -1e30)         # mask non-edges

            # Masked edge-softmax over source nodes.  Every dst row has at
            # least one edge (self-edge), so denom > 0.
            e_max = jnp.max(e, axis=1, keepdims=True)
            p = jnp.exp(e - e_max)
            denom = jnp.sum(p, axis=1, keepdims=True)
            alpha = p * pl.reciprocal(denom, approx=True)

            out_h = jnp.dot(alpha, feat_h, preferred_element_type=jnp.float32)
            if last:
                acc = out_h if acc is None else acc + out_h
            else:
                heads_out.append(out_h)

        if last:
            # Head mean (+ mean of per-head bias, folded in the wrapper) then
            # log_softmax(dim=-1).
            m = acc * (1.0 / num_heads) + b_ref[...]
            mx = jnp.max(m, axis=-1, keepdims=True)
            lse = jnp.log(jnp.sum(jnp.exp(m - mx), axis=-1, keepdims=True)) + mx
            out_ref[...] = m - lse
        else:
            # Lane-dense (N_dst, H*F_out) == torch .flatten(1), + bias, ReLU.
            h = jnp.maximum(jnp.concatenate(heads_out, axis=-1) + b_ref[...], 0.0)


def gat_forward(x, blocks, params):
    """Mirrors GAT.forward on sampled blocks with a single fused pallas_call.

    blocks : list of dense 0/1 adjacencies, blocks[l] has shape (N_dst_l, N_src_l)
             (dst nodes are the first N_dst src nodes, DGL block convention).
    params : list of (W (H,F_in,F_out), attn_l (H,1,F_out), attn_r (H,1,F_out),
             bias (H,1,F_out)) per layer.
    """
    n_layers = len(params)
    heads_meta = []
    flat_inputs = [x]
    for l, (adj, (w, al, ar, b)) in enumerate(zip(blocks, params)):
        num_heads, f_in, f_out = w.shape
        last = (l == n_layers - 1)
        # Head-fused, lane-dense parameter layout.
        w_flat = jnp.transpose(w, (1, 0, 2)).reshape(f_in, num_heads * f_out)
        al_flat = al.reshape(1, num_heads * f_out)
        ar_flat = ar.reshape(1, num_heads * f_out)
        if last:
            b_arr = b.mean(axis=0).reshape(1, f_out)   # mean over heads of bias
        else:
            b_arr = b.reshape(1, num_heads * f_out)
        flat_inputs += [adj, w_flat, al_flat, ar_flat, b_arr]
        heads_meta.append((num_heads, f_out))

    n_dst_last = blocks[-1].shape[0]
    n_classes = params[-1][0].shape[2]

    kernel = functools.partial(_fused_gat_kernel, heads_meta=tuple(heads_meta))
    vmem_spec = pl.BlockSpec(memory_space=pltpu.MemorySpace.VMEM)
    return pl.pallas_call(
        kernel,
        out_shape=jax.ShapeDtypeStruct((n_dst_last, n_classes), jnp.float32),
        in_specs=[vmem_spec] * len(flat_inputs),
        out_specs=vmem_spec,
    )(*flat_inputs)


# ----------------------- pure-JAX reference (for checking) -----------------------
def gat_layer_ref(h, adj, w, al, ar, b, last):
    n_dst = adj.shape[0]
    feat = jnp.einsum('nf,hfo->nho', h, w)                    # (N_src, H, F_out)
    feat_dst = feat[:n_dst]
    el = jnp.sum(feat * al[None, :, 0, :], axis=-1)           # (N_src, H)
    er = jnp.sum(feat_dst * ar[None, :, 0, :], axis=-1)       # (N_dst, H)
    e = er[:, None, :] + el[None, :, :]                       # (N_dst, N_src, H)
    e = jnp.where(e > 0, e, NEG_SLOPE * e)
    e = jnp.where(adj[:, :, None] > 0, e, -1e30)
    emax = jnp.max(e, axis=1, keepdims=True)
    p = jnp.exp(e - emax) * adj[:, :, None]
    alpha = p / jnp.sum(p, axis=1, keepdims=True)
    out = jnp.einsum('dsh,sho->dho', alpha, feat) + b[None, :, 0, :]
    if last:
        return jax.nn.log_softmax(out.mean(axis=1), axis=-1)
    return jax.nn.relu(out).reshape(n_dst, -1)


def gat_forward_ref(x, blocks, params):
    h = x
    n_layers = len(params)
    for l, (adj, (w, al, ar, b)) in enumerate(zip(blocks, params)):
        h = gat_layer_ref(h, adj, w, al, ar, b, last=(l == n_layers - 1))
    return h


if __name__ == "__main__":
    in_feats, n_hidden, n_classes, num_heads, n_layers = 16, 8, 4, 4, 3
    n_src = [64, 32, 16]   # src nodes per sampled block
    n_dst = [32, 16, 8]    # dst nodes per sampled block (== next layer's src)

    dims_in = [in_feats] + [n_hidden * num_heads] * (n_layers - 1)
    dims_out = [n_hidden] * (n_layers - 1) + [n_classes]

    keys = jax.random.split(jax.random.PRNGKey(0), 64)
    ki = 0

    # synthetic sampled blocks: random edges + guaranteed self-edge for each dst
    blocks = []
    for l in range(n_layers):
        a = (jax.random.uniform(keys[ki], (n_dst[l], n_src[l])) < 0.3)
        ki += 1
        a = a.astype(jnp.float32)
        idx = jnp.arange(n_dst[l])
        a = a.at[idx, idx].set(1.0)
        blocks.append(a)

    # deterministic parameter init (per-layer: W, attn_l, attn_r, bias)
    params = []
    for l in range(n_layers):
        f_in, f_out = dims_in[l], dims_out[l]
        w = (0.1 * jax.random.normal(keys[ki], (num_heads, f_in, f_out))
             ).astype(jnp.float32); ki += 1
        al = (0.1 * jax.random.normal(keys[ki], (num_heads, 1, f_out))
              ).astype(jnp.float32); ki += 1
        ar = (0.1 * jax.random.normal(keys[ki], (num_heads, 1, f_out))
              ).astype(jnp.float32); ki += 1
        b = (0.05 * jax.random.normal(keys[ki], (num_heads, 1, f_out))
             ).astype(jnp.float32); ki += 1
        params.append((w, al, ar, b))

    x = (0.5 * jax.random.normal(keys[ki], (n_src[0], in_feats))).astype(jnp.float32)
    ki += 1

    out = gat_forward(x, blocks, params)
    out = jax.block_until_ready(out)

    ref = jax.block_until_ready(gat_forward_ref(x, blocks, params))
    # Tolerance loosened slightly vs. f32 exact because the kernel uses the
    # EUP approximate reciprocal for the softmax normalization.
    np.testing.assert_allclose(np.asarray(out), np.asarray(ref),
                               rtol=5e-3, atol=5e-3)

    print("KERNEL_OK")
</pallas_src>

<mosaic_0001>
module attributes {stable_mosaic.version = 11 : i64} {
  func.func @_fused_gat_kernel(%arg0: memref<64x16xf32, #tpu.memory_space<vmem>>, %arg1: memref<32x64xf32, #tpu.memory_space<vmem>>, %arg2: memref<16x32xf32, #tpu.memory_space<vmem>>, %arg3: memref<1x32xf32, #tpu.memory_space<vmem>>, %arg4: memref<1x32xf32, #tpu.memory_space<vmem>>, %arg5: memref<1x32xf32, #tpu.memory_space<vmem>>, %arg6: memref<16x32xf32, #tpu.memory_space<vmem>>, %arg7: memref<32x32xf32, #tpu.memory_space<vmem>>, %arg8: memref<1x32xf32, #tpu.memory_space<vmem>>, %arg9: memref<1x32xf32, #tpu.memory_space<vmem>>, %arg10: memref<1x32xf32, #tpu.memory_space<vmem>>, %arg11: memref<8x16xf32, #tpu.memory_space<vmem>>, %arg12: memref<32x16xf32, #tpu.memory_space<vmem>>, %arg13: memref<1x16xf32, #tpu.memory_space<vmem>>, %arg14: memref<1x16xf32, #tpu.memory_space<vmem>>, %arg15: memref<1x4xf32, #tpu.memory_space<vmem>>, %arg16: memref<8x4xf32, #tpu.memory_space<vmem>>) attributes {dimension_semantics = [], scalar_prefetch = 0 : i64, scratch_operands = 0 : i64, tpu.core_type = #tpu.core_type<tc>} {
    %c0 = arith.constant 0 : index
    %c0_0 = arith.constant 0 : index
    %0 = vector.load %arg0[%c0, %c0_0] : memref<64x16xf32, #tpu.memory_space<vmem>>, vector<64x16xf32>
    %c0_1 = arith.constant 0 : index
    %c0_2 = arith.constant 0 : index
    %1 = vector.load %arg1[%c0_1, %c0_2] : memref<32x64xf32, #tpu.memory_space<vmem>>, vector<32x64xf32>
    %c0_3 = arith.constant 0 : index
    %c0_4 = arith.constant 0 : index
    %2 = vector.load %arg2[%c0_3, %c0_4] : memref<16x32xf32, #tpu.memory_space<vmem>>, vector<16x32xf32>
    %cst = arith.constant dense<0.000000e+00> : vector<64x32xf32>
    %3 = tpu.matmul %0, %2, %cst {dimension_numbers = #tpu.dot_dimension_numbers<[1], [0], [0], [1], [0, 0, 1, 1], [], []>} : vector<64x16xf32>, vector<16x32xf32>, vector<64x32xf32> -> vector<64x32xf32>
    %4 = vector.extract_strided_slice %3 {offsets = [0, 0], sizes = [32, 32], strides = [1, 1]} : vector<64x32xf32> to vector<32x32xf32>
    %c0_5 = arith.constant 0 : index
    %c0_6 = arith.constant 0 : index
    %5 = vector.load %arg3[%c0_5, %c0_6] : memref<1x32xf32, #tpu.memory_space<vmem>>, vector<1x32xf32>
    %c0_7 = arith.constant 0 : index
    %c0_8 = arith.constant 0 : index
    %6 = vector.load %arg4[%c0_7, %c0_8] : memref<1x32xf32, #tpu.memory_space<vmem>>, vector<1x32xf32>
    %7 = vector.extract_strided_slice %3 {offsets = [0, 0], sizes = [64, 8], strides = [1, 1]} : vector<64x32xf32> to vector<64x8xf32>
    %8 = vector.extract_strided_slice %4 {offsets = [0, 0], sizes = [32, 8], strides = [1, 1]} : vector<32x32xf32> to vector<32x8xf32>
    %9 = vector.extract_strided_slice %5 {offsets = [0, 0], sizes = [1, 8], strides = [1, 1]} : vector<1x32xf32> to vector<1x8xf32>
    %cst_9 = arith.constant dense<0.000000e+00> : vector<1x64xf32>
    %10 = tpu.matmul %9, %7, %cst_9 {dimension_numbers = #tpu.dot_dimension_numbers<[1], [1], [0], [0], [0, 0, 1, 0], [], []>} : vector<1x8xf32>, vector<64x8xf32>, vector<1x64xf32> -> vector<1x64xf32>
    %11 = vector.extract_strided_slice %6 {offsets = [0, 0], sizes = [1, 8], strides = [1, 1]} : vector<1x32xf32> to vector<1x8xf32>
    %cst_10 = arith.constant dense<0.000000e+00> : vector<32x1xf32>
    %12 = tpu.matmul %8, %11, %cst_10 {dimension_numbers = #tpu.dot_dimension_numbers<[1], [1], [0], [0], [0, 0, 1, 0], [], []>} : vector<32x8xf32>, vector<1x8xf32>, vector<32x1xf32> -> vector<32x1xf32>
    %13 = vector.broadcast %12 : vector<32x1xf32> to vector<32x64xf32>
    %14 = vector.broadcast %10 : vector<1x64xf32> to vector<32x64xf32>
    %15 = arith.addf %13, %14 : vector<32x64xf32>
    %cst_11 = arith.constant 0.000000e+00 : f32
    %16 = vector.broadcast %cst_11 : f32 to vector<32x64xf32>
    %17 = arith.cmpf ogt, %15, %16 : vector<32x64xf32>
    %cst_12 = arith.constant 2.000000e-01 : f32
    %18 = vector.broadcast %cst_12 : f32 to vector<32x64xf32>
    %19 = arith.mulf %18, %15 : vector<32x64xf32>
    %20 = arith.select %17, %15, %19 : vector<32x64xi1>, vector<32x64xf32>
    %cst_13 = arith.constant 0.000000e+00 : f32
    %21 = vector.broadcast %cst_13 : f32 to vector<32x64xf32>
    %22 = arith.cmpf ogt, %1, %21 : vector<32x64xf32>
    %cst_14 = arith.constant -1.000000e+30 : f32
    %23 = vector.broadcast %cst_14 : f32 to vector<32x64xf32>
    %24 = arith.select %22, %20, %23 : vector<32x64xi1>, vector<32x64xf32>
    %cst_15 = arith.constant dense<0xFF800000> : vector<32xf32>
    %25 = vector.multi_reduction <maximumf>, %24, %cst_15 [1] : vector<32x64xf32> to vector<32xf32>
    %26 = vector.shape_cast %25 : vector<32xf32> to vector<32x1xf32>
    %27 = vector.broadcast %26 : vector<32x1xf32> to vector<32x64xf32>
    %28 = arith.subf %24, %27 : vector<32x64xf32>
    %29 = math.exp %28 : vector<32x64xf32>
    %cst_16 = arith.constant dense<0.000000e+00> : vector<32xf32>
    %30 = vector.multi_reduction <add>, %29, %cst_16 [1] : vector<32x64xf32> to vector<32xf32>
    %31 = vector.shape_cast %30 : vector<32xf32> to vector<32x1xf32>
    %32 = tpu.reciprocal %31 {approx = true} : vector<32x1xf32> -> vector<32x1xf32>
    %33 = vector.broadcast %32 : vector<32x1xf32> to vector<32x64xf32>
    %34 = arith.mulf %29, %33 : vector<32x64xf32>
    %cst_17 = arith.constant dense<0.000000e+00> : vector<32x8xf32>
    %35 = tpu.matmul %34, %7, %cst_17 {dimension_numbers = #tpu.dot_dimension_numbers<[1], [0], [0], [1], [0, 0, 1, 1], [], []>} : vector<32x64xf32>, vector<64x8xf32>, vector<32x8xf32> -> vector<32x8xf32>
    %36 = vector.extract_strided_slice %3 {offsets = [0, 8], sizes = [64, 8], strides = [1, 1]} : vector<64x32xf32> to vector<64x8xf32>
    %37 = vector.extract_strided_slice %4 {offsets = [0, 8], sizes = [32, 8], strides = [1, 1]} : vector<32x32xf32> to vector<32x8xf32>
    %38 = vector.extract_strided_slice %5 {offsets = [0, 8], sizes = [1, 8], strides = [1, 1]} : vector<1x32xf32> to vector<1x8xf32>
    %cst_18 = arith.constant dense<0.000000e+00> : vector<1x64xf32>
    %39 = tpu.matmul %38, %36, %cst_18 {dimension_numbers = #tpu.dot_dimension_numbers<[1], [1], [0], [0], [0, 0, 1, 0], [], []>} : vector<1x8xf32>, vector<64x8xf32>, vector<1x64xf32> -> vector<1x64xf32>
    %40 = vector.extract_strided_slice %6 {offsets = [0, 8], sizes = [1, 8], strides = [1, 1]} : vector<1x32xf32> to vector<1x8xf32>
    %cst_19 = arith.constant dense<0.000000e+00> : vector<32x1xf32>
    %41 = tpu.matmul %37, %40, %cst_19 {dimension_numbers = #tpu.dot_dimension_numbers<[1], [1], [0], [0], [0, 0, 1, 0], [], []>} : vector<32x8xf32>, vector<1x8xf32>, vector<32x1xf32> -> vector<32x1xf32>
    %42 = vector.broadcast %41 : vector<32x1xf32> to vector<32x64xf32>
    %43 = vector.broadcast %39 : vector<1x64xf32> to vector<32x64xf32>
    %44 = arith.addf %42, %43 : vector<32x64xf32>
    %cst_20 = arith.constant 0.000000e+00 : f32
    %45 = vector.broadcast %cst_20 : f32 to vector<32x64xf32>
    %46 = arith.cmpf ogt, %44, %45 : vector<32x64xf32>
    %cst_21 = arith.constant 2.000000e-01 : f32
    %47 = vector.broadcast %cst_21 : f32 to vector<32x64xf32>
    %48 = arith.mulf %47, %44 : vector<32x64xf32>
    %49 = arith.select %46, %44, %48 : vector<32x64xi1>, vector<32x64xf32>
    %cst_22 = arith.constant 0.000000e+00 : f32
    %50 = vector.broadcast %cst_22 : f32 to vector<32x64xf32>
    %51 = arith.cmpf ogt, %1, %50 : vector<32x64xf32>
    %cst_23 = arith.constant -1.000000e+30 : f32
    %52 = vector.broadcast %cst_23 : f32 to vector<32x64xf32>
    %53 = arith.select %51, %49, %52 : vector<32x64xi1>, vector<32x64xf32>
    %cst_24 = arith.constant dense<0xFF800000> : vector<32xf32>
    %54 = vector.multi_reduction <maximumf>, %53, %cst_24 [1] : vector<32x64xf32> to vector<32xf32>
    %55 = vector.shape_cast %54 : vector<32xf32> to vector<32x1xf32>
    %56 = vector.broadcast %55 : vector<32x1xf32> to vector<32x64xf32>
    %57 = arith.subf %53, %56 : vector<32x64xf32>
    %58 = math.exp %57 : vector<32x64xf32>
    %cst_25 = arith.constant dense<0.000000e+00> : vector<32xf32>
    %59 = vector.multi_reduction <add>, %58, %cst_25 [1] : vector<32x64xf32> to vector<32xf32>
    %60 = vector.shape_cast %59 : vector<32xf32> to vector<32x1xf32>
    %61 = tpu.reciprocal %60 {approx = true} : vector<32x1xf32> -> vector<32x1xf32>
    %62 = vector.broadcast %61 : vector<32x1xf32> to vector<32x64xf32>
    %63 = arith.mulf %58, %62 : vector<32x64xf32>
    %cst_26 = arith.constant dense<0.000000e+00> : vector<32x8xf32>
    %64 = tpu.matmul %63, %36, %cst_26 {dimension_numbers = #tpu.dot_dimension_numbers<[1], [0], [0], [1], [0, 0, 1, 1], [], []>} : vector<32x64xf32>, vector<64x8xf32>, vector<32x8xf32> -> vector<32x8xf32>
    %65 = vector.extract_strided_slice %3 {offsets = [0, 16], sizes = [64, 8], strides = [1, 1]} : vector<64x32xf32> to vector<64x8xf32>
    %66 = vector.extract_strided_slice %4 {offsets = [0, 16], sizes = [32, 8], strides = [1, 1]} : vector<32x32xf32> to vector<32x8xf32>
    %67 = vector.extract_strided_slice %5 {offsets = [0, 16], sizes = [1, 8], strides = [1, 1]} : vector<1x32xf32> to vector<1x8xf32>
    %cst_27 = arith.constant dense<0.000000e+00> : vector<1x64xf32>
    %68 = tpu.matmul %67, %65, %cst_27 {dimension_numbers = #tpu.dot_dimension_numbers<[1], [1], [0], [0], [0, 0, 1, 0], [], []>} : vector<1x8xf32>, vector<64x8xf32>, vector<1x64xf32> -> vector<1x64xf32>
    %69 = vector.extract_strided_slice %6 {offsets = [0, 16], sizes = [1, 8], strides = [1, 1]} : vector<1x32xf32> to vector<1x8xf32>
    %cst_28 = arith.constant dense<0.000000e+00> : vector<32x1xf32>
    %70 = tpu.matmul %66, %69, %cst_28 {dimension_numbers = #tpu.dot_dimension_numbers<[1], [1], [0], [0], [0, 0, 1, 0], [], []>} : vector<32x8xf32>, vector<1x8xf32>, vector<32x1xf32> -> vector<32x1xf32>
    %71 = vector.broadcast %70 : vector<32x1xf32> to vector<32x64xf32>
    %72 = vector.broadcast %68 : vector<1x64xf32> to vector<32x64xf32>
    %73 = arith.addf %71, %72 : vector<32x64xf32>
    %cst_29 = arith.constant 0.000000e+00 : f32
    %74 = vector.broadcast %cst_29 : f32 to vector<32x64xf32>
    %75 = arith.cmpf ogt, %73, %74 : vector<32x64xf32>
    %cst_30 = arith.constant 2.000000e-01 : f32
    %76 = vector.broadcast %cst_30 : f32 to vector<32x64xf32>
    %77 = arith.mulf %76, %73 : vector<32x64xf32>
    %78 = arith.select %75, %73, %77 : vector<32x64xi1>, vector<32x64xf32>
    %cst_31 = arith.constant 0.000000e+00 : f32
    %79 = vector.broadcast %cst_31 : f32 to vector<32x64xf32>
    %80 = arith.cmpf ogt, %1, %79 : vector<32x64xf32>
    %cst_32 = arith.constant -1.000000e+30 : f32
    %81 = vector.broadcast %cst_32 : f32 to vector<32x64xf32>
    %82 = arith.select %80, %78, %81 : vector<32x64xi1>, vector<32x64xf32>
    %cst_33 = arith.constant dense<0xFF800000> : vector<32xf32>
    %83 = vector.multi_reduction <maximumf>, %82, %cst_33 [1] : vector<32x64xf32> to vector<32xf32>
    %84 = vector.shape_cast %83 : vector<32xf32> to vector<32x1xf32>
    %85 = vector.broadcast %84 : vector<32x1xf32> to vector<32x64xf32>
    %86 = arith.subf %82, %85 : vector<32x64xf32>
    %87 = math.exp %86 : vector<32x64xf32>
    %cst_34 = arith.constant dense<0.000000e+00> : vector<32xf32>
    %88 = vector.multi_reduction <add>, %87, %cst_34 [1] : vector<32x64xf32> to vector<32xf32>
    %89 = vector.shape_cast %88 : vector<32xf32> to vector<32x1xf32>
    %90 = tpu.reciprocal %89 {approx = true} : vector<32x1xf32> -> vector<32x1xf32>
    %91 = vector.broadcast %90 : vector<32x1xf32> to vector<32x64xf32>
    %92 = arith.mulf %87, %91 : vector<32x64xf32>
    %cst_35 = arith.constant dense<0.000000e+00> : vector<32x8xf32>
    %93 = tpu.matmul %92, %65, %cst_35 {dimension_numbers = #tpu.dot_dimension_numbers<[1], [0], [0], [1], [0, 0, 1, 1], [], []>} : vector<32x64xf32>, vector<64x8xf32>, vector<32x8xf32> -> vector<32x8xf32>
    %94 = vector.extract_strided_slice %3 {offsets = [0, 24], sizes = [64, 8], strides = [1, 1]} : vector<64x32xf32> to vector<64x8xf32>
    %95 = vector.extract_strided_slice %4 {offsets = [0, 24], sizes = [32, 8], strides = [1, 1]} : vector<32x32xf32> to vector<32x8xf32>
    %96 = vector.extract_strided_slice %5 {offsets = [0, 24], sizes = [1, 8], strides = [1, 1]} : vector<1x32xf32> to vector<1x8xf32>
    %cst_36 = arith.constant dense<0.000000e+00> : vector<1x64xf32>
    %97 = tpu.matmul %96, %94, %cst_36 {dimension_numbers = #tpu.dot_dimension_numbers<[1], [1], [0], [0], [0, 0, 1, 0], [], []>} : vector<1x8xf32>, vector<64x8xf32>, vector<1x64xf32> -> vector<1x64xf32>
    %98 = vector.extract_strided_slice %6 {offsets = [0, 24], sizes = [1, 8], strides = [1, 1]} : vector<1x32xf32> to vector<1x8xf32>
    %cst_37 = arith.constant dense<0.000000e+00> : vector<32x1xf32>
    %99 = tpu.matmul %95, %98, %cst_37 {dimension_numbers = #tpu.dot_dimension_numbers<[1], [1], [0], [0], [0, 0, 1, 0], [], []>} : vector<32x8xf32>, vector<1x8xf32>, vector<32x1xf32> -> vector<32x1xf32>
    %100 = vector.broadcast %99 : vector<32x1xf32> to vector<32x64xf32>
    %101 = vector.broadcast %97 : vector<1x64xf32> to vector<32x64xf32>
    %102 = arith.addf %100, %101 : vector<32x64xf32>
    %cst_38 = arith.constant 0.000000e+00 : f32
    %103 = vector.broadcast %cst_38 : f32 to vector<32x64xf32>
    %104 = arith.cmpf ogt, %102, %103 : vector<32x64xf32>
    %cst_39 = arith.constant 2.000000e-01 : f32
    %105 = vector.broadcast %cst_39 : f32 to vector<32x64xf32>
    %106 = arith.mulf %105, %102 : vector<32x64xf32>
    %107 = arith.select %104, %102, %106 : vector<32x64xi1>, vector<32x64xf32>
    %cst_40 = arith.constant 0.000000e+00 : f32
    %108 = vector.broadcast %cst_40 : f32 to vector<32x64xf32>
    %109 = arith.cmpf ogt, %1, %108 : vector<32x64xf32>
    %cst_41 = arith.constant -1.000000e+30 : f32
    %110 = vector.broadcast %cst_41 : f32 to vector<32x64xf32>
    %111 = arith.select %109, %107, %110 : vector<32x64xi1>, vector<32x64xf32>
    %cst_42 = arith.constant dense<0xFF800000> : vector<32xf32>
    %112 = vector.multi_reduction <maximumf>, %111, %cst_42 [1] : vector<32x64xf32> to vector<32xf32>
    %113 = vector.shape_cast %112 : vector<32xf32> to vector<32x1xf32>
    %114 = vector.broadcast %113 : vector<32x1xf32> to vector<32x64xf32>
    %115 = arith.subf %111, %114 : vector<32x64xf32>
    %116 = math.exp %115 : vector<32x64xf32>
    %cst_43 = arith.constant dense<0.000000e+00> : vector<32xf32>
    %117 = vector.multi_reduction <add>, %116, %cst_43 [1] : vector<32x64xf32> to vector<32xf32>
    %118 = vector.shape_cast %117 : vector<32xf32> to vector<32x1xf32>
    %119 = tpu.reciprocal %118 {approx = true} : vector<32x1xf32> -> vector<32x1xf32>
    %120 = vector.broadcast %119 : vector<32x1xf32> to vector<32x64xf32>
    %121 = arith.mulf %116, %120 : vector<32x64xf32>
    %cst_44 = arith.constant dense<0.000000e+00> : vector<32x8xf32>
    %122 = tpu.matmul %121, %94, %cst_44 {dimension_numbers = #tpu.dot_dimension_numbers<[1], [0], [0], [1], [0, 0, 1, 1], [], []>} : vector<32x64xf32>, vector<64x8xf32>, vector<32x8xf32> -> vector<32x8xf32>
    %123 = tpu.concatenate %35, %64, %93, %122 in 1 : vector<32x8xf32>, vector<32x8xf32>, vector<32x8xf32>, vector<32x8xf32> -> vector<32x32xf32>
    %c0_45 = arith.constant 0 : index
    %c0_46 = arith.constant 0 : index
    %124 = vector.load %arg5[%c0_45, %c0_46] : memref<1x32xf32, #tpu.memory_space<vmem>>, vector<1x32xf32>
    %125 = vector.broadcast %124 : vector<1x32xf32> to vector<32x32xf32>
    %126 = arith.addf %123, %125 : vector<32x32xf32>
    %cst_47 = arith.constant 0.000000e+00 : f32
    %127 = vector.broadcast %cst_47 : f32 to vector<32x32xf32>
    %128 = arith.maximumf %126, %127 : vector<32x32xf32>
    %c0_48 = arith.constant 0 : index
    %c0_49 = arith.constant 0 : index
    %129 = vector.load %arg6[%c0_48, %c0_49] : memref<16x32xf32, #tpu.memory_space<vmem>>, vector<16x32xf32>
    %c0_50 = arith.constant 0 : index
    %c0_51 = arith.constant 0 : index
    %130 = vector.load %arg7[%c0_50, %c0_51] : memref<32x32xf32, #tpu.memory_space<vmem>>, vector<32x32xf32>
    %cst_52 = arith.constant dense<0.000000e+00> : vector<32x32xf32>
    %131 = tpu.matmul %128, %130, %cst_52 {dimension_numbers = #tpu.dot_dimension_numbers<[1], [0], [0], [1], [0, 0, 1, 1], [], []>} : vector<32x32xf32>, vector<32x32xf32>, vector<32x32xf32> -> vector<32x32xf32>
    %132 = vector.extract_strided_slice %131 {offsets = [0, 0], sizes = [16, 32], strides = [1, 1]} : vector<32x32xf32> to vector<16x32xf32>
    %c0_53 = arith.constant 0 : index
    %c0_54 = arith.constant 0 : index
    %133 = vector.load %arg8[%c0_53, %c0_54] : memref<1x32xf32, #tpu.memory_space<vmem>>, vector<1x32xf32>
    %c0_55 = arith.constant 0 : index
    %c0_56 = arith.constant 0 : index
    %134 = vector.load %arg9[%c0_55, %c0_56] : memref<1x32xf32, #tpu.memory_space<vmem>>, vector<1x32xf32>
    %135 = vector.extract_strided_slice %131 {offsets = [0, 0], sizes = [32, 8], strides = [1, 1]} : vector<32x32xf32> to vector<32x8xf32>
    %136 = vector.extract_strided_slice %132 {offsets = [0, 0], sizes = [16, 8], strides = [1, 1]} : vector<16x32xf32> to vector<16x8xf32>
    %137 = vector.extract_strided_slice %133 {offsets = [0, 0], sizes = [1, 8], strides = [1, 1]} : vector<1x32xf32> to vector<1x8xf32>
    %cst_57 = arith.constant dense<0.000000e+00> : vector<1x32xf32>
    %138 = tpu.matmul %137, %135, %cst_57 {dimension_numbers = #tpu.dot_dimension_numbers<[1], [1], [0], [0], [0, 0, 1, 0], [], []>} : vector<1x8xf32>, vector<32x8xf32>, vector<1x32xf32> -> vector<1x32xf32>
    %139 = vector.extract_strided_slice %134 {offsets = [0, 0], sizes = [1, 8], strides = [1, 1]} : vector<1x32xf32> to vector<1x8xf32>
    %cst_58 = arith.constant dense<0.000000e+00> : vector<16x1xf32>
    %140 = tpu.matmul %136, %139, %cst_58 {dimension_numbers = #tpu.dot_dimension_numbers<[1], [1], [0], [0], [0, 0, 1, 0], [], []>} : vector<16x8xf32>, vector<1x8xf32>, vector<16x1xf32> -> vector<16x1xf32>
    %141 = vector.broadcast %140 : vector<16x1xf32> to vector<16x32xf32>
    %142 = vector.broadcast %138 : vector<1x32xf32> to vector<16x32xf32>
    %143 = arith.addf %141, %142 : vector<16x32xf32>
    %cst_59 = arith.constant 0.000000e+00 : f32
    %144 = vector.broadcast %cst_59 : f32 to vector<16x32xf32>
    %145 = arith.cmpf ogt, %143, %144 : vector<16x32xf32>
    %cst_60 = arith.constant 2.000000e-01 : f32
    %146 = vector.broadcast %cst_60 : f32 to vector<16x32xf32>
    %147 = arith.mulf %146, %143 : vector<16x32xf32>
    %148 = arith.select %145, %143, %147 : vector<16x32xi1>, vector<16x32xf32>
    %cst_61 = arith.constant 0.000000e+00 : f32
    %149 = vector.broadcast %cst_61 : f32 to vector<16x32xf32>
    %150 = arith.cmpf ogt, %129, %149 : vector<16x32xf32>
    %cst_62 = arith.constant -1.000000e+30 : f32
    %151 = vector.broadcast %cst_62 : f32 to vector<16x32xf32>
    %152 = arith.select %150, %148, %151 : vector<16x32xi1>, vector<16x32xf32>
    %cst_63 = arith.constant dense<0xFF800000> : vector<16xf32>
    %153 = vector.multi_reduction <maximumf>, %152, %cst_63 [1] : vector<16x32xf32> to vector<16xf32>
    %154 = vector.shape_cast %153 : vector<16xf32> to vector<16x1xf32>
    %155 = vector.broadcast %154 : vector<16x1xf32> to vector<16x32xf32>
    %156 = arith.subf %152, %155 : vector<16x32xf32>
    %157 = math.exp %156 : vector<16x32xf32>
    %cst_64 = arith.constant dense<0.000000e+00> : vector<16xf32>
    %158 = vector.multi_reduction <add>, %157, %cst_64 [1] : vector<16x32xf32> to vector<16xf32>
    %159 = vector.shape_cast %158 : vector<16xf32> to vector<16x1xf32>
    %160 = tpu.reciprocal %159 {approx = true} : vector<16x1xf32> -> vector<16x1xf32>
    %161 = vector.broadcast %160 : vector<16x1xf32> to vector<16x32xf32>
    %162 = arith.mulf %157, %161 : vector<16x32xf32>
    %cst_65 = arith.constant dense<0.000000e+00> : vector<16x8xf32>
    %163 = tpu.matmul %162, %135, %cst_65 {dimension_numbers = #tpu.dot_dimension_numbers<[1], [0], [0], [1], [0, 0, 1, 1], [], []>} : vector<16x32xf32>, vector<32x8xf32>, vector<16x8xf32> -> vector<16x8xf32>
    %164 = vector.extract_strided_slice %131 {offsets = [0, 8], sizes = [32, 8], strides = [1, 1]} : vector<32x32xf32> to vector<32x8xf32>
    %165 = vector.extract_strided_slice %132 {offsets = [0, 8], sizes = [16, 8], strides = [1, 1]} : vector<16x32xf32> to vector<16x8xf32>
    %166 = vector.extract_strided_slice %133 {offsets = [0, 8], sizes = [1, 8], strides = [1, 1]} : vector<1x32xf32> to vector<1x8xf32>
    %cst_66 = arith.constant dense<0.000000e+00> : vector<1x32xf32>
    %167 = tpu.matmul %166, %164, %cst_66 {dimension_numbers = #tpu.dot_dimension_numbers<[1], [1], [0], [0], [0, 0, 1, 0], [], []>} : vector<1x8xf32>, vector<32x8xf32>, vector<1x32xf32> -> vector<1x32xf32>
    %168 = vector.extract_strided_slice %134 {offsets = [0, 8], sizes = [1, 8], strides = [1, 1]} : vector<1x32xf32> to vector<1x8xf32>
    %cst_67 = arith.constant dense<0.000000e+00> : vector<16x1xf32>
    %169 = tpu.matmul %165, %168, %cst_67 {dimension_numbers = #tpu.dot_dimension_numbers<[1], [1], [0], [0], [0, 0, 1, 0], [], []>} : vector<16x8xf32>, vector<1x8xf32>, vector<16x1xf32> -> vector<16x1xf32>
    %170 = vector.broadcast %169 : vector<16x1xf32> to vector<16x32xf32>
    %171 = vector.broadcast %167 : vector<1x32xf32> to vector<16x32xf32>
    %172 = arith.addf %170, %171 : vector<16x32xf32>
    %cst_68 = arith.constant 0.000000e+00 : f32
    %173 = vector.broadcast %cst_68 : f32 to vector<16x32xf32>
    %174 = arith.cmpf ogt, %172, %173 : vector<16x32xf32>
    %cst_69 = arith.constant 2.000000e-01 : f32
    %175 = vector.broadcast %cst_69 : f32 to vector<16x32xf32>
    %176 = arith.mulf %175, %172 : vector<16x32xf32>
    %177 = arith.select %174, %172, %176 : vector<16x32xi1>, vector<16x32xf32>
    %cst_70 = arith.constant 0.000000e+00 : f32
    %178 = vector.broadcast %cst_70 : f32 to vector<16x32xf32>
    %179 = arith.cmpf ogt, %129, %178 : vector<16x32xf32>
    %cst_71 = arith.constant -1.000000e+30 : f32
    %180 = vector.broadcast %cst_71 : f32 to vector<16x32xf32>
    %181 = arith.select %179, %177, %180 : vector<16x32xi1>, vector<16x32xf32>
    %cst_72 = arith.constant dense<0xFF800000> : vector<16xf32>
    %182 = vector.multi_reduction <maximumf>, %181, %cst_72 [1] : vector<16x32xf32> to vector<16xf32>
    %183 = vector.shape_cast %182 : vector<16xf32> to vector<16x1xf32>
    %184 = vector.broadcast %183 : vector<16x1xf32> to vector<16x32xf32>
    %185 = arith.subf %181, %184 : vector<16x32xf32>
    %186 = math.exp %185 : vector<16x32xf32>
    %cst_73 = arith.constant dense<0.000000e+00> : vector<16xf32>
    %187 = vector.multi_reduction <add>, %186, %cst_73 [1] : vector<16x32xf32> to vector<16xf32>
    %188 = vector.shape_cast %187 : vector<16xf32> to vector<16x1xf32>
    %189 = tpu.reciprocal %188 {approx = true} : vector<16x1xf32> -> vector<16x1xf32>
    %190 = vector.broadcast %189 : vector<16x1xf32> to vector<16x32xf32>
    %191 = arith.mulf %186, %190 : vector<16x32xf32>
    %cst_74 = arith.constant dense<0.000000e+00> : vector<16x8xf32>
    %192 = tpu.matmul %191, %164, %cst_74 {dimension_numbers = #tpu.dot_dimension_numbers<[1], [0], [0], [1], [0, 0, 1, 1], [], []>} : vector<16x32xf32>, vector<32x8xf32>, vector<16x8xf32> -> vector<16x8xf32>
    %193 = vector.extract_strided_slice %131 {offsets = [0, 16], sizes = [32, 8], strides = [1, 1]} : vector<32x32xf32> to vector<32x8xf32>
    %194 = vector.extract_strided_slice %132 {offsets = [0, 16], sizes = [16, 8], strides = [1, 1]} : vector<16x32xf32> to vector<16x8xf32>
    %195 = vector.extract_strided_slice %133 {offsets = [0, 16], sizes = [1, 8], strides = [1, 1]} : vector<1x32xf32> to vector<1x8xf32>
    %cst_75 = arith.constant dense<0.000000e+00> : vector<1x32xf32>
    %196 = tpu.matmul %195, %193, %cst_75 {dimension_numbers = #tpu.dot_dimension_numbers<[1], [1], [0], [0], [0, 0, 1, 0], [], []>} : vector<1x8xf32>, vector<32x8xf32>, vector<1x32xf32> -> vector<1x32xf32>
    %197 = vector.extract_strided_slice %134 {offsets = [0, 16], sizes = [1, 8], strides = [1, 1]} : vector<1x32xf32> to vector<1x8xf32>
    %cst_76 = arith.constant dense<0.000000e+00> : vector<16x1xf32>
    %198 = tpu.matmul %194, %197, %cst_76 {dimension_numbers = #tpu.dot_dimension_numbers<[1], [1], [0], [0], [0, 0, 1, 0], [], []>} : vector<16x8xf32>, vector<1x8xf32>, vector<16x1xf32> -> vector<16x1xf32>
    %199 = vector.broadcast %198 : vector<16x1xf32> to vector<16x32xf32>
    %200 = vector.broadcast %196 : vector<1x32xf32> to vector<16x32xf32>
    %201 = arith.addf %199, %200 : vector<16x32xf32>
    %cst_77 = arith.constant 0.000000e+00 : f32
    %202 = vector.broadcast %cst_77 : f32 to vector<16x32xf32>
    %203 = arith.cmpf ogt, %201, %202 : vector<16x32xf32>
    %cst_78 = arith.constant 2.000000e-01 : f32
    %204 = vector.broadcast %cst_78 : f32 to vector<16x32xf32>
    %205 = arith.mulf %204, %201 : vector<16x32xf32>
    %206 = arith.select %203, %201, %205 : vector<16x32xi1>, vector<16x32xf32>
    %cst_79 = arith.constant 0.000000e+00 : f32
    %207 = vector.broadcast %cst_79 : f32 to vector<16x32xf32>
    %208 = arith.cmpf ogt, %129, %207 : vector<16x32xf32>
    %cst_80 = arith.constant -1.000000e+30 : f32
    %209 = vector.broadcast %cst_80 : f32 to vector<16x32xf32>
    %210 = arith.select %208, %206, %209 : vector<16x32xi1>, vector<16x32xf32>
    %cst_81 = arith.constant dense<0xFF800000> : vector<16xf32>
    %211 = vector.multi_reduction <maximumf>, %210, %cst_81 [1] : vector<16x32xf32> to vector<16xf32>
    %212 = vector.shape_cast %211 : vector<16xf32> to vector<16x1xf32>
    %213 = vector.broadcast %212 : vector<16x1xf32> to vector<16x32xf32>
    %214 = arith.subf %210, %213 : vector<16x32xf32>
    %215 = math.exp %214 : vector<16x32xf32>
    %cst_82 = arith.constant dense<0.000000e+00> : vector<16xf32>
    %216 = vector.multi_reduction <add>, %215, %cst_82 [1] : vector<16x32xf32> to vector<16xf32>
    %217 = vector.shape_cast %216 : vector<16xf32> to vector<16x1xf32>
    %218 = tpu.reciprocal %217 {approx = true} : vector<16x1xf32> -> vector<16x1xf32>
    %219 = vector.broadcast %218 : vector<16x1xf32> to vector<16x32xf32>
    %220 = arith.mulf %215, %219 : vector<16x32xf32>
    %cst_83 = arith.constant dense<0.000000e+00> : vector<16x8xf32>
    %221 = tpu.matmul %220, %193, %cst_83 {dimension_numbers = #tpu.dot_dimension_numbers<[1], [0], [0], [1], [0, 0, 1, 1], [], []>} : vector<16x32xf32>, vector<32x8xf32>, vector<16x8xf32> -> vector<16x8xf32>
    %222 = vector.extract_strided_slice %131 {offsets = [0, 24], sizes = [32, 8], strides = [1, 1]} : vector<32x32xf32> to vector<32x8xf32>
    %223 = vector.extract_strided_slice %132 {offsets = [0, 24], sizes = [16, 8], strides = [1, 1]} : vector<16x32xf32> to vector<16x8xf32>
    %224 = vector.extract_strided_slice %133 {offsets = [0, 24], sizes = [1, 8], strides = [1, 1]} : vector<1x32xf32> to vector<1x8xf32>
    %cst_84 = arith.constant dense<0.000000e+00> : vector<1x32xf32>
    %225 = tpu.matmul %224, %222, %cst_84 {dimension_numbers = #tpu.dot_dimension_numbers<[1], [1], [0], [0], [0, 0, 1, 0], [], []>} : vector<1x8xf32>, vector<32x8xf32>, vector<1x32xf32> -> vector<1x32xf32>
    %226 = vector.extract_strided_slice %134 {offsets = [0, 24], sizes = [1, 8], strides = [1, 1]} : vector<1x32xf32> to vector<1x8xf32>
    %cst_85 = arith.constant dense<0.000000e+00> : vector<16x1xf32>
    %227 = tpu.matmul %223, %226, %cst_85 {dimension_numbers = #tpu.dot_dimension_numbers<[1], [1], [0], [0], [0, 0, 1, 0], [], []>} : vector<16x8xf32>, vector<1x8xf32>, vector<16x1xf32> -> vector<16x1xf32>
    %228 = vector.broadcast %227 : vector<16x1xf32> to vector<16x32xf32>
    %229 = vector.broadcast %225 : vector<1x32xf32> to vector<16x32xf32>
    %230 = arith.addf %228, %229 : vector<16x32xf32>
    %cst_86 = arith.constant 0.000000e+00 : f32
    %231 = vector.broadcast %cst_86 : f32 to vector<16x32xf32>
    %232 = arith.cmpf ogt, %230, %231 : vector<16x32xf32>
    %cst_87 = arith.constant 2.000000e-01 : f32
    %233 = vector.broadcast %cst_87 : f32 to vector<16x32xf32>
    %234 = arith.mulf %233, %230 : vector<16x32xf32>
    %235 = arith.select %232, %230, %234 : vector<16x32xi1>, vector<16x32xf32>
    %cst_88 = arith.constant 0.000000e+00 : f32
    %236 = vector.broadcast %cst_88 : f32 to vector<16x32xf32>
    %237 = arith.cmpf ogt, %129, %236 : vector<16x32xf32>
    %cst_89 = arith.constant -1.000000e+30 : f32
    %238 = vector.broadcast %cst_89 : f32 to vector<16x32xf32>
    %239 = arith.select %237, %235, %238 : vector<16x32xi1>, vector<16x32xf32>
    %cst_90 = arith.constant dense<0xFF800000> : vector<16xf32>
    %240 = vector.multi_reduction <maximumf>, %239, %cst_90 [1] : vector<16x32xf32> to vector<16xf32>
    %241 = vector.shape_cast %240 : vector<16xf32> to vector<16x1xf32>
    %242 = vector.broadcast %241 : vector<16x1xf32> to vector<16x32xf32>
    %243 = arith.subf %239, %242 : vector<16x32xf32>
    %244 = math.exp %243 : vector<16x32xf32>
    %cst_91 = arith.constant dense<0.000000e+00> : vector<16xf32>
    %245 = vector.multi_reduction <add>, %244, %cst_91 [1] : vector<16x32xf32> to vector<16xf32>
    %246 = vector.shape_cast %245 : vector<16xf32> to vector<16x1xf32>
    %247 = tpu.reciprocal %246 {approx = true} : vector<16x1xf32> -> vector<16x1xf32>
    %248 = vector.broadcast %247 : vector<16x1xf32> to vector<16x32xf32>
    %249 = arith.mulf %244, %248 : vector<16x32xf32>
    %cst_92 = arith.constant dense<0.000000e+00> : vector<16x8xf32>
    %250 = tpu.matmul %249, %222, %cst_92 {dimension_numbers = #tpu.dot_dimension_numbers<[1], [0], [0], [1], [0, 0, 1, 1], [], []>} : vector<16x32xf32>, vector<32x8xf32>, vector<16x8xf32> -> vector<16x8xf32>
    %251 = tpu.concatenate %163, %192, %221, %250 in 1 : vector<16x8xf32>, vector<16x8xf32>, vector<16x8xf32>, vector<16x8xf32> -> vector<16x32xf32>
    %c0_93 = arith.constant 0 : index
    %c0_94 = arith.constant 0 : index
    %252 = vector.load %arg10[%c0_93, %c0_94] : memref<1x32xf32, #tpu.memory_space<vmem>>, vector<1x32xf32>
    %253 = vector.broadcast %252 : vector<1x32xf32> to vector<16x32xf32>
    %254 = arith.addf %251, %253 : vector<16x32xf32>
    %cst_95 = arith.constant 0.000000e+00 : f32
    %255 = vector.broadcast %cst_95 : f32 to vector<16x32xf32>
    %256 = arith.maximumf %254, %255 : vector<16x32xf32>
    %c0_96 = arith.constant 0 : index
    %c0_97 = arith.constant 0 : index
    %257 = vector.load %arg11[%c0_96, %c0_97] : memref<8x16xf32, #tpu.memory_space<vmem>>, vector<8x16xf32>
    %c0_98 = arith.constant 0 : index
    %c0_99 = arith.constant 0 : index
    %258 = vector.load %arg12[%c0_98, %c0_99] : memref<32x16xf32, #tpu.memory_space<vmem>>, vector<32x16xf32>
    %cst_100 = arith.constant dense<0.000000e+00> : vector<16x16xf32>
    %259 = tpu.matmul %256, %258, %cst_100 {dimension_numbers = #tpu.dot_dimension_numbers<[1], [0], [0], [1], [0, 0, 1, 1], [], []>} : vector<16x32xf32>, vector<32x16xf32>, vector<16x16xf32> -> vector<16x16xf32>
    %260 = vector.extract_strided_slice %259 {offsets = [0, 0], sizes = [8, 16], strides = [1, 1]} : vector<16x16xf32> to vector<8x16xf32>
    %c0_101 = arith.constant 0 : index
    %c0_102 = arith.constant 0 : index
    %261 = vector.load %arg13[%c0_101, %c0_102] : memref<1x16xf32, #tpu.memory_space<vmem>>, vector<1x16xf32>
    %c0_103 = arith.constant 0 : index
    %c0_104 = arith.constant 0 : index
    %262 = vector.load %arg14[%c0_103, %c0_104] : memref<1x16xf32, #tpu.memory_space<vmem>>, vector<1x16xf32>
    %263 = vector.extract_strided_slice %259 {offsets = [0, 0], sizes = [16, 4], strides = [1, 1]} : vector<16x16xf32> to vector<16x4xf32>
    %264 = vector.extract_strided_slice %260 {offsets = [0, 0], sizes = [8, 4], strides = [1, 1]} : vector<8x16xf32> to vector<8x4xf32>
    %265 = vector.extract_strided_slice %261 {offsets = [0, 0], sizes = [1, 4], strides = [1, 1]} : vector<1x16xf32> to vector<1x4xf32>
    %cst_105 = arith.constant dense<0.000000e+00> : vector<1x16xf32>
    %266 = tpu.matmul %265, %263, %cst_105 {dimension_numbers = #tpu.dot_dimension_numbers<[1], [1], [0], [0], [0, 0, 1, 0], [], []>} : vector<1x4xf32>, vector<16x4xf32>, vector<1x16xf32> -> vector<1x16xf32>
    %267 = vector.extract_strided_slice %262 {offsets = [0, 0], sizes = [1, 4], strides = [1, 1]} : vector<1x16xf32> to vector<1x4xf32>
    %cst_106 = arith.constant dense<0.000000e+00> : vector<8x1xf32>
    %268 = tpu.matmul %264, %267, %cst_106 {dimension_numbers = #tpu.dot_dimension_numbers<[1], [1], [0], [0], [0, 0, 1, 0], [], []>} : vector<8x4xf32>, vector<1x4xf32>, vector<8x1xf32> -> vector<8x1xf32>
    %269 = vector.broadcast %268 : vector<8x1xf32> to vector<8x16xf32>
    %270 = vector.broadcast %266 : vector<1x16xf32> to vector<8x16xf32>
    %271 = arith.addf %269, %270 : vector<8x16xf32>
    %cst_107 = arith.constant 0.000000e+00 : f32
    %272 = vector.broadcast %cst_107 : f32 to vector<8x16xf32>
    %273 = arith.cmpf ogt, %271, %272 : vector<8x16xf32>
    %cst_108 = arith.constant 2.000000e-01 : f32
    %274 = vector.broadcast %cst_108 : f32 to vector<8x16xf32>
    %275 = arith.mulf %274, %271 : vector<8x16xf32>
    %276 = arith.select %273, %271, %275 : vector<8x16xi1>, vector<8x16xf32>
    %cst_109 = arith.constant 0.000000e+00 : f32
    %277 = vector.broadcast %cst_109 : f32 to vector<8x16xf32>
    %278 = arith.cmpf ogt, %257, %277 : vector<8x16xf32>
    %cst_110 = arith.constant -1.000000e+30 : f32
    %279 = vector.broadcast %cst_110 : f32 to vector<8x16xf32>
    %280 = arith.select %278, %276, %279 : vector<8x16xi1>, vector<8x16xf32>
    %cst_111 = arith.constant dense<0xFF800000> : vector<8xf32>
    %281 = vector.multi_reduction <maximumf>, %280, %cst_111 [1] : vector<8x16xf32> to vector<8xf32>
    %282 = vector.shape_cast %281 : vector<8xf32> to vector<8x1xf32>
    %283 = vector.broadcast %282 : vector<8x1xf32> to vector<8x16xf32>
    %284 = arith.subf %280, %283 : vector<8x16xf32>
    %285 = math.exp %284 : vector<8x16xf32>
    %cst_112 = arith.constant dense<0.000000e+00> : vector<8xf32>
    %286 = vector.multi_reduction <add>, %285, %cst_112 [1] : vector<8x16xf32> to vector<8xf32>
    %287 = vector.shape_cast %286 : vector<8xf32> to vector<8x1xf32>
    %288 = tpu.reciprocal %287 {approx = true} : vector<8x1xf32> -> vector<8x1xf32>
    %289 = vector.broadcast %288 : vector<8x1xf32> to vector<8x16xf32>
    %290 = arith.mulf %285, %289 : vector<8x16xf32>
    %cst_113 = arith.constant dense<0.000000e+00> : vector<8x4xf32>
    %291 = tpu.matmul %290, %263, %cst_113 {dimension_numbers = #tpu.dot_dimension_numbers<[1], [0], [0], [1], [0, 0, 1, 1], [], []>} : vector<8x16xf32>, vector<16x4xf32>, vector<8x4xf32> -> vector<8x4xf32>
    %292 = vector.extract_strided_slice %259 {offsets = [0, 4], sizes = [16, 4], strides = [1, 1]} : vector<16x16xf32> to vector<16x4xf32>
    %293 = vector.extract_strided_slice %260 {offsets = [0, 4], sizes = [8, 4], strides = [1, 1]} : vector<8x16xf32> to vector<8x4xf32>
    %294 = vector.extract_strided_slice %261 {offsets = [0, 4], sizes = [1, 4], strides = [1, 1]} : vector<1x16xf32> to vector<1x4xf32>
    %cst_114 = arith.constant dense<0.000000e+00> : vector<1x16xf32>
    %295 = tpu.matmul %294, %292, %cst_114 {dimension_numbers = #tpu.dot_dimension_numbers<[1], [1], [0], [0], [0, 0, 1, 0], [], []>} : vector<1x4xf32>, vector<16x4xf32>, vector<1x16xf32> -> vector<1x16xf32>
    %296 = vector.extract_strided_slice %262 {offsets = [0, 4], sizes = [1, 4], strides = [1, 1]} : vector<1x16xf32> to vector<1x4xf32>
    %cst_115 = arith.constant dense<0.000000e+00> : vector<8x1xf32>
    %297 = tpu.matmul %293, %296, %cst_115 {dimension_numbers = #tpu.dot_dimension_numbers<[1], [1], [0], [0], [0, 0, 1, 0], [], []>} : vector<8x4xf32>, vector<1x4xf32>, vector<8x1xf32> -> vector<8x1xf32>
    %298 = vector.broadcast %297 : vector<8x1xf32> to vector<8x16xf32>
    %299 = vector.broadcast %295 : vector<1x16xf32> to vector<8x16xf32>
    %300 = arith.addf %298, %299 : vector<8x16xf32>
    %cst_116 = arith.constant 0.000000e+00 : f32
    %301 = vector.broadcast %cst_116 : f32 to vector<8x16xf32>
    %302 = arith.cmpf ogt, %300, %301 : vector<8x16xf32>
    %cst_117 = arith.constant 2.000000e-01 : f32
    %303 = vector.broadcast %cst_117 : f32 to vector<8x16xf32>
    %304 = arith.mulf %303, %300 : vector<8x16xf32>
    %305 = arith.select %302, %300, %304 : vector<8x16xi1>, vector<8x16xf32>
    %cst_118 = arith.constant 0.000000e+00 : f32
    %306 = vector.broadcast %cst_118 : f32 to vector<8x16xf32>
    %307 = arith.cmpf ogt, %257, %306 : vector<8x16xf32>
    %cst_119 = arith.constant -1.000000e+30 : f32
    %308 = vector.broadcast %cst_119 : f32 to vector<8x16xf32>
    %309 = arith.select %307, %305, %308 : vector<8x16xi1>, vector<8x16xf32>
    %cst_120 = arith.constant dense<0xFF800000> : vector<8xf32>
    %310 = vector.multi_reduction <maximumf>, %309, %cst_120 [1] : vector<8x16xf32> to vector<8xf32>
    %311 = vector.shape_cast %310 : vector<8xf32> to vector<8x1xf32>
    %312 = vector.broadcast %311 : vector<8x1xf32> to vector<8x16xf32>
    %313 = arith.subf %309, %312 : vector<8x16xf32>
    %314 = math.exp %313 : vector<8x16xf32>
    %cst_121 = arith.constant dense<0.000000e+00> : vector<8xf32>
    %315 = vector.multi_reduction <add>, %314, %cst_121 [1] : vector<8x16xf32> to vector<8xf32>
    %316 = vector.shape_cast %315 : vector<8xf32> to vector<8x1xf32>
    %317 = tpu.reciprocal %316 {approx = true} : vector<8x1xf32> -> vector<8x1xf32>
    %318 = vector.broadcast %317 : vector<8x1xf32> to vector<8x16xf32>
    %319 = arith.mulf %314, %318 : vector<8x16xf32>
    %cst_122 = arith.constant dense<0.000000e+00> : vector<8x4xf32>
    %320 = tpu.matmul %319, %292, %cst_122 {dimension_numbers = #tpu.dot_dimension_numbers<[1], [0], [0], [1], [0, 0, 1, 1], [], []>} : vector<8x16xf32>, vector<16x4xf32>, vector<8x4xf32> -> vector<8x4xf32>
    %321 = arith.addf %291, %320 : vector<8x4xf32>
    %322 = vector.extract_strided_slice %259 {offsets = [0, 8], sizes = [16, 4], strides = [1, 1]} : vector<16x16xf32> to vector<16x4xf32>
    %323 = vector.extract_strided_slice %260 {offsets = [0, 8], sizes = [8, 4], strides = [1, 1]} : vector<8x16xf32> to vector<8x4xf32>
    %324 = vector.extract_strided_slice %261 {offsets = [0, 8], sizes = [1, 4], strides = [1, 1]} : vector<1x16xf32> to vector<1x4xf32>
    %cst_123 = arith.constant dense<0.000000e+00> : vector<1x16xf32>
    %325 = tpu.matmul %324, %322, %cst_123 {dimension_numbers = #tpu.dot_dimension_numbers<[1], [1], [0], [0], [0, 0, 1, 0], [], []>} : vector<1x4xf32>, vector<16x4xf32>, vector<1x16xf32> -> vector<1x16xf32>
    %326 = vector.extract_strided_slice %262 {offsets = [0, 8], sizes = [1, 4], strides = [1, 1]} : vector<1x16xf32> to vector<1x4xf32>
    %cst_124 = arith.constant dense<0.000000e+00> : vector<8x1xf32>
    %327 = tpu.matmul %323, %326, %cst_124 {dimension_numbers = #tpu.dot_dimension_numbers<[1], [1], [0], [0], [0, 0, 1, 0], [], []>} : vector<8x4xf32>, vector<1x4xf32>, vector<8x1xf32> -> vector<8x1xf32>
    %328 = vector.broadcast %327 : vector<8x1xf32> to vector<8x16xf32>
    %329 = vector.broadcast %325 : vector<1x16xf32> to vector<8x16xf32>
    %330 = arith.addf %328, %329 : vector<8x16xf32>
    %cst_125 = arith.constant 0.000000e+00 : f32
    %331 = vector.broadcast %cst_125 : f32 to vector<8x16xf32>
    %332 = arith.cmpf ogt, %330, %331 : vector<8x16xf32>
    %cst_126 = arith.constant 2.000000e-01 : f32
    %333 = vector.broadcast %cst_126 : f32 to vector<8x16xf32>
    %334 = arith.mulf %333, %330 : vector<8x16xf32>
    %335 = arith.select %332, %330, %334 : vector<8x16xi1>, vector<8x16xf32>
    %cst_127 = arith.constant 0.000000e+00 : f32
    %336 = vector.broadcast %cst_127 : f32 to vector<8x16xf32>
    %337 = arith.cmpf ogt, %257, %336 : vector<8x16xf32>
    %cst_128 = arith.constant -1.000000e+30 : f32
    %338 = vector.broadcast %cst_128 : f32 to vector<8x16xf32>
    %339 = arith.select %337, %335, %338 : vector<8x16xi1>, vector<8x16xf32>
    %cst_129 = arith.constant dense<0xFF800000> : vector<8xf32>
    %340 = vector.multi_reduction <maximumf>, %339, %cst_129 [1] : vector<8x16xf32> to vector<8xf32>
    %341 = vector.shape_cast %340 : vector<8xf32> to vector<8x1xf32>
    %342 = vector.broadcast %341 : vector<8x1xf32> to vector<8x16xf32>
    %343 = arith.subf %339, %342 : vector<8x16xf32>
    %344 = math.exp %343 : vector<8x16xf32>
    %cst_130 = arith.constant dense<0.000000e+00> : vector<8xf32>
    %345 = vector.multi_reduction <add>, %344, %cst_130 [1] : vector<8x16xf32> to vector<8xf32>
    %346 = vector.shape_cast %345 : vector<8xf32> to vector<8x1xf32>
    %347 = tpu.reciprocal %346 {approx = true} : vector<8x1xf32> -> vector<8x1xf32>
    %348 = vector.broadcast %347 : vector<8x1xf32> to vector<8x16xf32>
    %349 = arith.mulf %344, %348 : vector<8x16xf32>
    %cst_131 = arith.constant dense<0.000000e+00> : vector<8x4xf32>
    %350 = tpu.matmul %349, %322, %cst_131 {dimension_numbers = #tpu.dot_dimension_numbers<[1], [0], [0], [1], [0, 0, 1, 1], [], []>} : vector<8x16xf32>, vector<16x4xf32>, vector<8x4xf32> -> vector<8x4xf32>
    %351 = arith.addf %321, %350 : vector<8x4xf32>
    %352 = vector.extract_strided_slice %259 {offsets = [0, 12], sizes = [16, 4], strides = [1, 1]} : vector<16x16xf32> to vector<16x4xf32>
    %353 = vector.extract_strided_slice %260 {offsets = [0, 12], sizes = [8, 4], strides = [1, 1]} : vector<8x16xf32> to vector<8x4xf32>
    %354 = vector.extract_strided_slice %261 {offsets = [0, 12], sizes = [1, 4], strides = [1, 1]} : vector<1x16xf32> to vector<1x4xf32>
    %cst_132 = arith.constant dense<0.000000e+00> : vector<1x16xf32>
    %355 = tpu.matmul %354, %352, %cst_132 {dimension_numbers = #tpu.dot_dimension_numbers<[1], [1], [0], [0], [0, 0, 1, 0], [], []>} : vector<1x4xf32>, vector<16x4xf32>, vector<1x16xf32> -> vector<1x16xf32>
    %356 = vector.extract_strided_slice %262 {offsets = [0, 12], sizes = [1, 4], strides = [1, 1]} : vector<1x16xf32> to vector<1x4xf32>
    %cst_133 = arith.constant dense<0.000000e+00> : vector<8x1xf32>
    %357 = tpu.matmul %353, %356, %cst_133 {dimension_numbers = #tpu.dot_dimension_numbers<[1], [1], [0], [0], [0, 0, 1, 0], [], []>} : vector<8x4xf32>, vector<1x4xf32>, vector<8x1xf32> -> vector<8x1xf32>
    %358 = vector.broadcast %357 : vector<8x1xf32> to vector<8x16xf32>
    %359 = vector.broadcast %355 : vector<1x16xf32> to vector<8x16xf32>
    %360 = arith.addf %358, %359 : vector<8x16xf32>
    %cst_134 = arith.constant 0.000000e+00 : f32
    %361 = vector.broadcast %cst_134 : f32 to vector<8x16xf32>
    %362 = arith.cmpf ogt, %360, %361 : vector<8x16xf32>
    %cst_135 = arith.constant 2.000000e-01 : f32
    %363 = vector.broadcast %cst_135 : f32 to vector<8x16xf32>
    %364 = arith.mulf %363, %360 : vector<8x16xf32>
    %365 = arith.select %362, %360, %364 : vector<8x16xi1>, vector<8x16xf32>
    %cst_136 = arith.constant 0.000000e+00 : f32
    %366 = vector.broadcast %cst_136 : f32 to vector<8x16xf32>
    %367 = arith.cmpf ogt, %257, %366 : vector<8x16xf32>
    %cst_137 = arith.constant -1.000000e+30 : f32
    %368 = vector.broadcast %cst_137 : f32 to vector<8x16xf32>
    %369 = arith.select %367, %365, %368 : vector<8x16xi1>, vector<8x16xf32>
    %cst_138 = arith.constant dense<0xFF800000> : vector<8xf32>
    %370 = vector.multi_reduction <maximumf>, %369, %cst_138 [1] : vector<8x16xf32> to vector<8xf32>
    %371 = vector.shape_cast %370 : vector<8xf32> to vector<8x1xf32>
    %372 = vector.broadcast %371 : vector<8x1xf32> to vector<8x16xf32>
    %373 = arith.subf %369, %372 : vector<8x16xf32>
    %374 = math.exp %373 : vector<8x16xf32>
    %cst_139 = arith.constant dense<0.000000e+00> : vector<8xf32>
    %375 = vector.multi_reduction <add>, %374, %cst_139 [1] : vector<8x16xf32> to vector<8xf32>
    %376 = vector.shape_cast %375 : vector<8xf32> to vector<8x1xf32>
    %377 = tpu.reciprocal %376 {approx = true} : vector<8x1xf32> -> vector<8x1xf32>
    %378 = vector.broadcast %377 : vector<8x1xf32> to vector<8x16xf32>
    %379 = arith.mulf %374, %378 : vector<8x16xf32>
    %cst_140 = arith.constant dense<0.000000e+00> : vector<8x4xf32>
    %380 = tpu.matmul %379, %352, %cst_140 {dimension_numbers = #tpu.dot_dimension_numbers<[1], [0], [0], [1], [0, 0, 1, 1], [], []>} : vector<8x16xf32>, vector<16x4xf32>, vector<8x4xf32> -> vector<8x4xf32>
    %381 = arith.addf %351, %380 : vector<8x4xf32>
    %cst_141 = arith.constant 2.500000e-01 : f32
    %382 = vector.broadcast %cst_141 : f32 to vector<8x4xf32>
    %383 = arith.mulf %381, %382 : vector<8x4xf32>
    %c0_142 = arith.constant 0 : index
    %c0_143 = arith.constant 0 : index
    %384 = vector.load %arg15[%c0_142, %c0_143] : memref<1x4xf32, #tpu.memory_space<vmem>>, vector<1x4xf32>
    %385 = vector.broadcast %384 : vector<1x4xf32> to vector<8x4xf32>
    %386 = arith.addf %383, %385 : vector<8x4xf32>
    %cst_144 = arith.constant dense<0xFF800000> : vector<8xf32>
    %387 = vector.multi_reduction <maximumf>, %386, %cst_144 [1] : vector<8x4xf32> to vector<8xf32>
    %388 = vector.shape_cast %387 : vector<8xf32> to vector<8x1xf32>
    %389 = vector.broadcast %388 : vector<8x1xf32> to vector<8x4xf32>
    %390 = arith.subf %386, %389 : vector<8x4xf32>
    %391 = math.exp %390 : vector<8x4xf32>
    %cst_145 = arith.constant dense<0.000000e+00> : vector<8xf32>
    %392 = vector.multi_reduction <add>, %391, %cst_145 [1] : vector<8x4xf32> to vector<8xf32>
    %393 = vector.shape_cast %392 : vector<8xf32> to vector<8x1xf32>
    %394 = math.log %393 : vector<8x1xf32>
    %395 = arith.addf %394, %388 : vector<8x1xf32>
    %396 = vector.broadcast %395 : vector<8x1xf32> to vector<8x4xf32>
    %397 = arith.subf %386, %396 : vector<8x4xf32>
    %c0_146 = arith.constant 0 : index
    %c0_147 = arith.constant 0 : index
    %398 = vector.load %arg16[%c0_146, %c0_147] : memref<8x4xf32, #tpu.memory_space<vmem>>, vector<8x4xf32>
    tpu.vector_store %arg16[%c0_146, %c0_147], %397 {strides = array<i32>} : memref<8x4xf32, #tpu.memory_space<vmem>>, vector<8x4xf32>,
    return
  }
}

</mosaic_0001>

<llo_original>
// kernel: tpu_custom_call.1
$region0: #{tpu_custom_call.1}
  #allocation0 [shape = 'u32[]', space=smem, size = 0x4, offset = 0x4, fixed_abs, tag = 'smem constant byte address 0x4 - core index']
  #allocation1 [shape = 'u32[144,128]{1,0:T(1,128)}', space=vmem, size = 0x12000, scoped, tag = 'internal scratch']
  %s0 = inlined_call_operand.vmem [shape: f32[64,16], index: 0, kind: input, shape index: {}]
  %s1 = inlined_call_operand.vmem [shape: f32[32,64], index: 1, kind: input, shape index: {}]
  %s2 = inlined_call_operand.vmem [shape: f32[16,32], index: 2, kind: input, shape index: {}]
  %s3 = inlined_call_operand.vmem [shape: f32[1,32], index: 3, kind: input, shape index: {}]
  %s4 = inlined_call_operand.vmem [shape: f32[1,32], index: 4, kind: input, shape index: {}]
  %s5 = inlined_call_operand.vmem [shape: f32[1,32], index: 5, kind: input, shape index: {}]
  %s6 = inlined_call_operand.vmem [shape: f32[16,32], index: 6, kind: input, shape index: {}]
  %s7 = inlined_call_operand.vmem [shape: f32[32,32], index: 7, kind: input, shape index: {}]
  %s8 = inlined_call_operand.vmem [shape: f32[1,32], index: 8, kind: input, shape index: {}]
  %s9 = inlined_call_operand.vmem [shape: f32[1,32], index: 9, kind: input, shape index: {}]
  %s10 = inlined_call_operand.vmem [shape: f32[1,32], index: 10, kind: input, shape index: {}]
  %s11 = inlined_call_operand.vmem [shape: f32[8,16], index: 11, kind: input, shape index: {}]
  %s12 = inlined_call_operand.vmem [shape: f32[32,16], index: 12, kind: input, shape index: {}]
  %s13 = inlined_call_operand.vmem [shape: f32[1,16], index: 13, kind: input, shape index: {}]
  %s14 = inlined_call_operand.vmem [shape: f32[1,16], index: 14, kind: input, shape index: {}]
  %s15 = inlined_call_operand.vmem [shape: f32[1,4], index: 15, kind: input, shape index: {}]
  %s16 = inlined_call_operand.vmem [shape: f32[8,4], index: 16, kind: output, shape index: {}]
  %s17 = sld [smem:[#allocation0]]
  $region74: #{tpu_custom_call.1} parent=0
    _
  %s19 = ssub.s32 1, %s17
  %s20 = scalar_select 0, %s19, %s17
  // Predicated region
  $region2: #{tpu_custom_call.1} parent=0 // pred_check
    _
  $region3: #{tpu_custom_call.1} parent=0 // pred_check_branch
    %22 = sbr.rel (0) target = $region5
  $region4: #{tpu_custom_call.1} parent=0 // pred_region
    _
  $region5: #{tpu_custom_call.1} parent=0 // pred_fallthru
    _
  // Predicated region
  $region6: #{tpu_custom_call.1} parent=0 // pred_check
    _
  $region7: #{tpu_custom_call.1} parent=0 // pred_check_branch
    %24 = sbr.rel (0) target = $region9
  $region8: #{tpu_custom_call.1} parent=0 // pred_region
    _
  $region9: #{tpu_custom_call.1} parent=0 // pred_fallthru
    _
  // Predicated region
  $region10: #{tpu_custom_call.1} parent=0 // pred_check
    _
  $region11: #{tpu_custom_call.1} parent=0 // pred_check_branch
    %26 = sbr.rel (0) target = $region13
  $region12: #{tpu_custom_call.1} parent=0 // pred_region
    _
  $region13: #{tpu_custom_call.1} parent=0 // pred_fallthru
    _
  // Predicated region
  $region14: #{tpu_custom_call.1} parent=0 // pred_check
    _
  $region15: #{tpu_custom_call.1} parent=0 // pred_check_branch
    %28 = sbr.rel (0) target = $region17
  $region16: #{tpu_custom_call.1} parent=0 // pred_region
    _
  $region17: #{tpu_custom_call.1} parent=0 // pred_fallthru
    _
  // Predicated region
  $region18: #{tpu_custom_call.1} parent=0 // pred_check
    _
  $region19: #{tpu_custom_call.1} parent=0 // pred_check_branch
    %30 = sbr.rel (0) target = $region21
  $region20: #{tpu_custom_call.1} parent=0 // pred_region
    _
  $region21: #{tpu_custom_call.1} parent=0 // pred_fallthru
    _
  // Predicated region
  $region22: #{tpu_custom_call.1} parent=0 // pred_check
    _
  $region23: #{tpu_custom_call.1} parent=0 // pred_check_branch
    %32 = sbr.rel (0) target = $region25
  $region24: #{tpu_custom_call.1} parent=0 // pred_region
    _
  $region25: #{tpu_custom_call.1} parent=0 // pred_fallthru
    _
  // Predicated region
  $region26: #{tpu_custom_call.1} parent=0 // pred_check
    _
  $region27: #{tpu_custom_call.1} parent=0 // pred_check_branch
    %34 = sbr.rel (0) target = $region29
  $region28: #{tpu_custom_call.1} parent=0 // pred_region
    _
  $region29: #{tpu_custom_call.1} parent=0 // pred_fallthru
    _
  // Predicated region
  $region30: #{tpu_custom_call.1} parent=0 // pred_check
    _
  $region31: #{tpu_custom_call.1} parent=0 // pred_check_branch
    %36 = sbr.rel (0) target = $region33
  $region32: #{tpu_custom_call.1} parent=0 // pred_region
    _
  $region33: #{tpu_custom_call.1} parent=0 // pred_fallthru
    _
  // Predicated region
  $region34: #{tpu_custom_call.1} parent=0 // pred_check
    _
  $region35: #{tpu_custom_call.1} parent=0 // pred_check_branch
    %38 = sbr.rel (0) target = $region37
  $region36: #{tpu_custom_call.1} parent=0 // pred_region
    _
  $region37: #{tpu_custom_call.1} parent=0 // pred_fallthru
    _
  // Predicated region
  $region38: #{tpu_custom_call.1} parent=0 // pred_check
    _
  $region39: #{tpu_custom_call.1} parent=0 // pred_check_branch
    %40 = sbr.rel (0) target = $region41
  $region40: #{tpu_custom_call.1} parent=0 // pred_region
    _
  $region41: #{tpu_custom_call.1} parent=0 // pred_fallthru
    _
  // Predicated region
  $region42: #{tpu_custom_call.1} parent=0 // pred_check
    _
  $region43: #{tpu_custom_call.1} parent=0 // pred_check_branch
    %42 = sbr.rel (0) target = $region45
  $region44: #{tpu_custom_call.1} parent=0 // pred_region
    _
  $region45: #{tpu_custom_call.1} parent=0 // pred_fallthru
    _
  // Predicated region
  $region46: #{tpu_custom_call.1} parent=0 // pred_check
    _
  $region47: #{tpu_custom_call.1} parent=0 // pred_check_branch
    %44 = sbr.rel (0) target = $region49
  $region48: #{tpu_custom_call.1} parent=0 // pred_region
    _
  $region49: #{tpu_custom_call.1} parent=0 // pred_fallthru
    _
  // Predicated region
  $region50: #{tpu_custom_call.1} parent=0 // pred_check
    _
  $region51: #{tpu_custom_call.1} parent=0 // pred_check_branch
    %46 = sbr.rel (0) target = $region53
  $region52: #{tpu_custom_call.1} parent=0 // pred_region
    _
  $region53: #{tpu_custom_call.1} parent=0 // pred_fallthru
    _
  // Predicated region
  $region54: #{tpu_custom_call.1} parent=0 // pred_check
    _
  $region55: #{tpu_custom_call.1} parent=0 // pred_check_branch
    %48 = sbr.rel (0) target = $region57
  $region56: #{tpu_custom_call.1} parent=0 // pred_region
    _
  $region57: #{tpu_custom_call.1} parent=0 // pred_fallthru
    _
  // Predicated region
  $region58: #{tpu_custom_call.1} parent=0 // pred_check
    _
  $region59: #{tpu_custom_call.1} parent=0 // pred_check_branch
    %50 = sbr.rel (0) target = $region61
  $region60: #{tpu_custom_call.1} parent=0 // pred_region
    _
  $region61: #{tpu_custom_call.1} parent=0 // pred_fallthru
    _
  // Predicated region
  $region62: #{tpu_custom_call.1} parent=0 // pred_check
    _
  $region63: #{tpu_custom_call.1} parent=0 // pred_check_branch
    %52 = sbr.rel (0) target = $region65
  $region64: #{tpu_custom_call.1} parent=0 // pred_region
    _
  $region65: #{tpu_custom_call.1} parent=0 // pred_fallthru
    _
  %v53 = vld [vmem:[%s0] sm:$0xff]
  %v54 = vld [vmem:[%s0 + $0x8] sm:$0xff]
  %v55 = vld [vmem:[%s0 + $0x10] sm:$0xff]
  %v56 = vld [vmem:[%s0 + $0x18] sm:$0xff]
  %v57 = vld [vmem:[%s0 + $0x20] sm:$0xff]
  %v58 = vld [vmem:[%s0 + $0x28] sm:$0xff]
  %v59 = vld [vmem:[%s0 + $0x30] sm:$0xff]
  %v60 = vld [vmem:[%s0 + $0x38] sm:$0xff]
  %v61 = vld [vmem:[%s1] sm:$0xff]
  %v62 = vld [vmem:[%s1 + $0x8] sm:$0xff]
  %v63 = vld [vmem:[%s1 + $0x10] sm:$0xff]
  %v64 = vld [vmem:[%s1 + $0x18] sm:$0xff]
  %v65 = vld [vmem:[%s2] sm:$0xff]
  %v66 = vld [vmem:[%s2 + $0x8] sm:$0xff]
  %vm67 = vcmask 130048
  %v69 = vsel %vm67, %v53, 0
  %v72 = vsel %vm67, %v54, 0
  %v75 = vsel %vm67, %v55, 0
  %v78 = vsel %vm67, %v56, 0
  %v81 = vsel %vm67, %v57, 0
  %v84 = vsel %vm67, %v58, 0
  %v87 = vsel %vm67, %v59, 0
  %v90 = vsel %vm67, %v60, 0
  %92 = vmatprep.subr.mxu0 0.0
  %93 = vmatpush1.msra.mxu0 %v65
  %94 = vmatprep.subr.mxu0 0.0
  %95 = vmatpush1.msra.mxu0 %v66
  %96 = vmatprep.subr.mxu0 0.0
  %97 = vmatpush1.msra.mxu0 0.0
  %98 = vmatprep.subr.mxu0 0.0
  %99 = vmatpush1.msra.mxu0 0.0
  %100 = vmatprep.subr.mxu0 0.0
  %101 = vmatpush1.msra.mxu0 0.0
  %102 = vmatprep.subr.mxu0 0.0
  %103 = vmatpush1.msra.mxu0 0.0
  %104 = vmatprep.subr.mxu0 0.0
  %105 = vmatpush1.msra.mxu0 0.0
  %106 = vmatprep.subr.mxu0 0.0
  %107 = vmatpush1.msra.mxu0 0.0
  %108 = vmatprep.subr.mxu0 0.0
  %109 = vmatpush1.msra.mxu0 0.0
  %110 = vmatprep.subr.mxu0 0.0
  %111 = vmatpush1.msra.mxu0 0.0
  %112 = vmatprep.subr.mxu0 0.0
  %113 = vmatpush1.msra.mxu0 0.0
  %114 = vmatprep.subr.mxu0 0.0
  %115 = vmatpush1.msra.mxu0 0.0
  %116 = vmatprep.subr.mxu0 0.0
  %117 = vmatpush1.msra.mxu0 0.0
  %118 = vmatprep.subr.mxu0 0.0
  %119 = vmatpush1.msra.mxu0 0.0
  %120 = vmatprep.subr.mxu0 0.0
  %121 = vmatpush1.msra.mxu0 0.0
  %122 = vmatprep.subr.mxu0 0.0
  %123 = vmatpush1.msra.mxu0 0.0
  %124 = vmatprep.subr.mxu0 0.0
  %125 = vmatpush1.msra.mxu0 0.0
  %126 = vmatprep.subr.mxu0 0.0
  %127 = vmatpush1.msra.mxu0 0.0
  %128 = vmatprep.subr.mxu0 0.0
  %129 = vmatpush1.msra.mxu0 0.0
  %130 = vmatprep.subr.mxu0 0.0
  %131 = vmatpush1.msra.mxu0 0.0
  %132 = vmatprep.subr.mxu0 0.0
  %133 = vmatpush1.msra.mxu0 0.0
  %134 = vmatprep.subr.mxu0 0.0
  %135 = vmatpush1.msra.mxu0 0.0
  %136 = vmatprep.subr.mxu0 0.0
  %137 = vmatpush1.msra.mxu0 0.0
  %138 = vmatprep.subr.mxu0 0.0
  %139 = vmatpush1.msra.mxu0 0.0
  %140 = vmatprep.subr.mxu0 0.0
  %141 = vmatpush1.msra.mxu0 0.0
  %142 = vmatprep.subr.mxu0 0.0
  %143 = vmatpush1.msra.mxu0 0.0
  %144 = vmatprep.subr.mxu0 0.0
  %145 = vmatpush1.msra.mxu0 0.0
  %146 = vmatprep.subr.mxu0 0.0
  %147 = vmatpush1.msra.mxu0 0.0
  %148 = vmatprep.subr.mxu0 0.0
  %149 = vmatpush1.msra.mxu0 0.0
  %150 = vmatprep.subr.mxu0 0.0
  %151 = vmatpush1.msra.mxu0 0.0
  %152 = vmatprep.subr.mxu0 0.0
  %153 = vmatpush1.msra.mxu0 0.0
  %154 = vmatprep.subr.mxu0 0.0
  %155 = vmatpush1.msra.mxu0 0.0
  %156 = vmatprep.mubr.f32.mxu0 0.0
  %157 = vmatmul.mubr.f32.gmra.mrb[0].mxu0 %v69
  %v158 = vpop.f32.mrb[0].mxu0
  %v159 = vadd.f32 0.0, %v158
  %v160 = vpop.f32.mrb[0].mxu0
  %161 = vmatprep.mubr.f32.mxu0 0.0
  %162 = vmatmul.mubr.f32.gmra.mrb[0].mxu0 %v72
  %v163 = vpop.f32.mrb[0].mxu0
  %v164 = vadd.f32 0.0, %v163
  %v165 = vpop.f32.mrb[0].mxu0
  %166 = vmatprep.mubr.f32.mxu0 0.0
  %167 = vmatmul.mubr.f32.gmra.mrb[0].mxu0 %v75
  %v168 = vpop.f32.mrb[0].mxu0
  %v169 = vadd.f32 0.0, %v168
  %v170 = vpop.f32.mrb[0].mxu0
  %171 = vmatprep.mubr.f32.mxu0 0.0
  %172 = vmatmul.mubr.f32.gmra.mrb[0].mxu0 %v78
  %v173 = vpop.f32.mrb[0].mxu0
  %v174 = vadd.f32 0.0, %v173
  %v175 = vpop.f32.mrb[0].mxu0
  %176 = vmatprep.mubr.f32.mxu0 0.0
  %177 = vmatmul.mubr.f32.gmra.mrb[0].mxu0 %v81
  %v178 = vpop.f32.mrb[0].mxu0
  %v179 = vadd.f32 0.0, %v178
  %v180 = vpop.f32.mrb[0].mxu0
  %181 = vmatprep.mubr.f32.mxu0 0.0
  %182 = vmatmul.mubr.f32.gmra.mrb[0].mxu0 %v84
  %v183 = vpop.f32.mrb[0].mxu0
  %v184 = vadd.f32 0.0, %v183
  %v185 = vpop.f32.mrb[0].mxu0
  %186 = vmatprep.mubr.f32.mxu0 0.0
  %187 = vmatmul.mubr.f32.gmra.mrb[0].mxu0 %v87
  %v188 = vpop.f32.mrb[0].mxu0
  %v189 = vadd.f32 0.0, %v188
  %v190 = vpop.f32.mrb[0].mxu0
  %191 = vmatprep.mubr.f32.mxu0 0.0
  %192 = vmatmul.mubr.f32.gmra.mrb[0].mxu0 %v90
  %v193 = vpop.f32.mrb[0].mxu0
  %v194 = vadd.f32 0.0, %v193
  %v195 = vpop.f32.mrb[0].mxu0
  %196 = vdwg.mxu0
  %v197 = vld [vmem:[%s3] sm:$0x1]
  %v198 = vld [vmem:[%s4] sm:$0x1]
  %vm199 = vcmask 64512
  %v201 = vsel %vm199, %v197, 0
  %v204 = vsel %vm199, %v159, 0
  %v207 = vsel %vm199, %v164, 0
  %v210 = vsel %vm199, %v169, 0
  %v213 = vsel %vm199, %v174, 0
  %v216 = vsel %vm199, %v179, 0
  %v219 = vsel %vm199, %v184, 0
  %v222 = vsel %vm199, %v189, 0
  %v225 = vsel %vm199, %v194, 0
  %227 = vmatprep.subr.mxu0 0.0
  %228 = vmatpush1.xpose.msra.mxu0 %v204
  %229 = vmatprep.subr.mxu0 0.0
  %230 = vmatpush1.xpose.msra.mxu0 %v207
  %231 = vmatprep.subr.mxu0 0.0
  %232 = vmatpush1.xpose.msra.mxu0 %v210
  %233 = vmatprep.subr.mxu0 0.0
  %234 = vmatpush1.xpose.msra.mxu0 %v213
  %235 = vmatprep.subr.mxu0 0.0
  %236 = vmatpush1.xpose.msra.mxu0 %v216
  %237 = vmatprep.subr.mxu0 0.0
  %238 = vmatpush1.xpose.msra.mxu0 %v219
  %239 = vmatprep.subr.mxu0 0.0
  %240 = vmatpush1.xpose.msra.mxu0 %v222
  %241 = vmatprep.subr.mxu0 0.0
  %242 = vmatpush1.xpose.msra.mxu0 %v225
  %243 = vmatprep.subr.mxu0 0.0
  %244 = vmatpush1.xpose.msra.mxu0 0.0
  %245 = vmatprep.subr.mxu0 0.0
  %246 = vmatpush1.xpose.msra.mxu0 0.0
  %247 = vmatprep.subr.mxu0 0.0
  %248 = vmatpush1.xpose.msra.mxu0 0.0
  %249 = vmatprep.subr.mxu0 0.0
  %250 = vmatpush1.xpose.msra.mxu0 0.0
  %251 = vmatprep.subr.mxu0 0.0
  %252 = vmatpush1.xpose.msra.mxu0 0.0
  %253 = vmatprep.subr.mxu0 0.0
  %254 = vmatpush1.xpose.msra.mxu0 0.0
  %255 = vmatprep.subr.mxu0 0.0
  %256 = vmatpush1.xpose.msra.mxu0 0.0
  %257 = vmatprep.subr.mxu0 0.0
  %258 = vmatpush1.xpose.msra.mxu0 0.0
  %259 = vmatprep.subr.mxu0 0.0
  %260 = vmatpush1.xpose.msra.mxu0 0.0
  %261 = vmatprep.subr.mxu0 0.0
  %262 = vmatpush1.xpose.msra.mxu0 0.0
  %263 = vmatprep.subr.mxu0 0.0
  %264 = vmatpush1.xpose.msra.mxu0 0.0
  %265 = vmatprep.subr.mxu0 0.0
  %266 = vmatpush1.xpose.msra.mxu0 0.0
  %267 = vmatprep.subr.mxu0 0.0
  %268 = vmatpush1.xpose.msra.mxu0 0.0
  %269 = vmatprep.subr.mxu0 0.0
  %270 = vmatpush1.xpose.msra.mxu0 0.0
  %271 = vmatprep.subr.mxu0 0.0
  %272 = vmatpush1.xpose.msra.mxu0 0.0
  %273 = vmatprep.subr.mxu0 0.0
  %274 = vmatpush1.xpose.msra.mxu0 0.0
  %275 = vmatprep.subr.mxu0 0.0
  %276 = vmatpush1.xpose.msra.mxu0 0.0
  %277 = vmatprep.subr.mxu0 0.0
  %278 = vmatpush1.xpose.msra.mxu0 0.0
  %279 = vmatprep.subr.mxu0 0.0
  %280 = vmatpush1.xpose.msra.mxu0 0.0
  %281 = vmatprep.subr.mxu0 0.0
  %282 = vmatpush1.xpose.msra.mxu0 0.0
  %283 = vmatprep.subr.mxu0 0.0
  %284 = vmatpush1.xpose.msra.mxu0 0.0
  %285 = vmatprep.subr.mxu0 0.0
  %286 = vmatpush1.xpose.msra.mxu0 0.0
  %287 = vmatprep.subr.mxu0 0.0
  %288 = vmatpush1.xpose.msra.mxu0 0.0
  %289 = vmatprep.subr.mxu0 0.0
  %290 = vmatpush1.xpose.msra.mxu0 0.0
  %291 = vmatprep.mubr.f32.mxu0 0.0
  %292 = vmatmul.mubr.f32.gmra.mrb[0].mxu0 %v201
  %v293 = vpop.f32.mrb[0].mxu0
  %v294 = vadd.f32 0.0, %v293
  %v295 = vpop.f32.mrb[0].mxu0
  %296 = vdwg.mxu0
  %v298 = vlaneseq
  %v299 = vshrl.u32 %v298, 7
  %v300 = vsub.s32 0, %v299
  %v301 = vrot.slane %v198, %v300
  %v303 = vmul.f32 %v159, %v301
  %v304 = vmul.f32 %v164, %v301
  %v305 = vmul.f32 %v169, %v301
  %v306 = vmul.f32 %v174, %v301
  %v307 = vsel %vm199, %v303, 0.0
  %308 = vadd.xlane.f32.xlu0 %v307
  %v309 = vpop.xlane.xlu0 %308
  %v310 = vsel %vm199, %v304, 0.0
  %311 = vadd.xlane.f32.xlu0 %v310
  %v312 = vpop.xlane.xlu0 %311
  %v313 = vsel %vm199, %v305, 0.0
  %314 = vadd.xlane.f32.xlu0 %v313
  %v315 = vpop.xlane.xlu0 %314
  %v316 = vsel %vm199, %v306, 0.0
  %317 = vadd.xlane.f32.xlu0 %v316
  %v318 = vpop.xlane.xlu0 %317
  %v319 = vlaneseq
  %v320 = vshrl.u32 %v319, 7
  %v321 = vsub.s32 0, %v320
  %v322 = vrot.slane %v294, %v321
  %v323 = vadd.f32 %v309, %v322
  %v324 = vadd.f32 %v312, %v322
  %v325 = vadd.f32 %v315, %v322
  %v326 = vadd.f32 %v318, %v322
  %vm327 = vcmp.gt.f32.partialorder %v323, 0.0
  %vm328 = vcmp.gt.f32.partialorder %v324, 0.0
  %vm329 = vcmp.gt.f32.partialorder %v325, 0.0
  %vm330 = vcmp.gt.f32.partialorder %v326, 0.0
  %v331 = vmul.f32 %v323, 0.2
  %v332 = vmul.f32 %v324, 0.2
  %v333 = vmul.f32 %v325, 0.2
  %v334 = vmul.f32 %v326, 0.2
  %v335 = vsel %vm327, %v323, %v331
  %v336 = vsel %vm328, %v324, %v332
  %v337 = vsel %vm329, %v325, %v333
  %v338 = vsel %vm330, %v326, %v334
  %vm339 = vcmp.gt.f32.partialorder %v61, 0.0
  %vm340 = vcmp.gt.f32.partialorder %v62, 0.0
  %vm341 = vcmp.gt.f32.partialorder %v63, 0.0
  %vm342 = vcmp.gt.f32.partialorder %v64, 0.0
  %v343 = vsel %vm339, %v335, -1e+30
  %v344 = vsel %vm340, %v336, -1e+30
  %v345 = vsel %vm341, %v337, -1e+30
  %v346 = vsel %vm342, %v338, -1e+30
  %vm347 = vcmask 523264
  %v348 = vsel %vm347, %v343, -inf
  %349 = vmax.xlane.f32.xlu0 %v348
  %v350 = vpop.xlane.xlu0 %349
  %v351 = vsel %vm347, %v344, -inf
  %352 = vmax.xlane.f32.xlu0 %v351
  %v353 = vpop.xlane.xlu0 %352
  %v354 = vsel %vm347, %v345, -inf
  %355 = vmax.xlane.f32.xlu0 %v354
  %v356 = vpop.xlane.xlu0 %355
  %v357 = vsel %vm347, %v346, -inf
  %358 = vmax.xlane.f32.xlu0 %v357
  %v359 = vpop.xlane.xlu0 %358
  %v360 = vsub.f32 %v343, %v350
  %v361 = vsub.f32 %v344, %v353
  %v362 = vsub.f32 %v345, %v356
  %v363 = vsub.f32 %v346, %v359
  %v364 = vmul.f32 %v360, 1.442695
  %v365 = vpow.pop %v364
  %v366 = vmul.f32 %v361, 1.442695
  %v367 = vpow.pop %v366
  %v368 = vmul.f32 %v362, 1.442695
  %v369 = vpow.pop %v368
  %v370 = vmul.f32 %v363, 1.442695
  %v371 = vpow.pop %v370
  %v372 = vsel %vm347, %v365, 0.0
  %373 = vadd.xlane.f32.xlu0 %v372
  %v374 = vpop.xlane.xlu0 %373
  %v375 = vsel %vm347, %v367, 0.0
  %376 = vadd.xlane.f32.xlu0 %v375
  %v377 = vpop.xlane.xlu0 %376
  %v378 = vsel %vm347, %v369, 0.0
  %379 = vadd.xlane.f32.xlu0 %v378
  %v380 = vpop.xlane.xlu0 %379
  %v381 = vsel %vm347, %v371, 0.0
  %382 = vadd.xlane.f32.xlu0 %v381
  %v383 = vpop.xlane.xlu0 %382
  %v384 = vrcp.pop %v374
  %v385 = vrcp.pop %v377
  %v386 = vrcp.pop %v380
  %v387 = vrcp.pop %v383
  %v388 = vmul.f32 %v365, %v384
  %v389 = vmul.f32 %v367, %v385
  %v390 = vmul.f32 %v369, %v386
  %v391 = vmul.f32 %v371, %v387
  %v393 = vsel %vm347, %v388, 0
  %v396 = vsel %vm347, %v389, 0
  %v399 = vsel %vm347, %v390, 0
  %v402 = vsel %vm347, %v391, 0
  %404 = vmatprep.subr.mxu0 0.0
  %405 = vmatpush1.msra.mxu0 %v159
  %406 = vmatprep.subr.mxu0 0.0
  %407 = vmatpush1.msra.mxu0 %v164
  %408 = vmatprep.subr.mxu0 0.0
  %409 = vmatpush1.msra.mxu0 %v169
  %410 = vmatprep.subr.mxu0 0.0
  %411 = vmatpush1.msra.mxu0 %v174
  %412 = vmatprep.subr.mxu0 0.0
  %413 = vmatpush1.msra.mxu0 %v179
  %414 = vmatprep.subr.mxu0 0.0
  %415 = vmatpush1.msra.mxu0 %v184
  %416 = vmatprep.subr.mxu0 0.0
  %417 = vmatpush1.msra.mxu0 %v189
  %418 = vmatprep.subr.mxu0 0.0
  %419 = vmatpush1.msra.mxu0 %v194
  %420 = vmatprep.subr.mxu0 0.0
  %421 = vmatpush1.msra.mxu0 0.0
  %422 = vmatprep.subr.mxu0 0.0
  %423 = vmatpush1.msra.mxu0 0.0
  %424 = vmatprep.subr.mxu0 0.0
  %425 = vmatpush1.msra.mxu0 0.0
  %426 = vmatprep.subr.mxu0 0.0
  %427 = vmatpush1.msra.mxu0 0.0
  %428 = vmatprep.subr.mxu0 0.0
  %429 = vmatpush1.msra.mxu0 0.0
  %430 = vmatprep.subr.mxu0 0.0
  %431 = vmatpush1.msra.mxu0 0.0
  %432 = vmatprep.subr.mxu0 0.0
  %433 = vmatpush1.msra.mxu0 0.0
  %434 = vmatprep.subr.mxu0 0.0
  %435 = vmatpush1.msra.mxu0 0.0
  %436 = vmatprep.subr.mxu0 0.0
  %437 = vmatpush1.msra.mxu0 0.0
  %438 = vmatprep.subr.mxu0 0.0
  %439 = vmatpush1.msra.mxu0 0.0
  %440 = vmatprep.subr.mxu0 0.0
  %441 = vmatpush1.msra.mxu0 0.0
  %442 = vmatprep.subr.mxu0 0.0
  %443 = vmatpush1.msra.mxu0 0.0
  %444 = vmatprep.subr.mxu0 0.0
  %445 = vmatpush1.msra.mxu0 0.0
  %446 = vmatprep.subr.mxu0 0.0
  %447 = vmatpush1.msra.mxu0 0.0
  %448 = vmatprep.subr.mxu0 0.0
  %449 = vmatpush1.msra.mxu0 0.0
  %450 = vmatprep.subr.mxu0 0.0
  %451 = vmatpush1.msra.mxu0 0.0
  %452 = vmatprep.subr.mxu0 0.0
  %453 = vmatpush1.msra.mxu0 0.0
  %454 = vmatprep.subr.mxu0 0.0
  %455 = vmatpush1.msra.mxu0 0.0
  %456 = vmatprep.subr.mxu0 0.0
  %457 = vmatpush1.msra.mxu0 0.0
  %458 = vmatprep.subr.mxu0 0.0
  %459 = vmatpush1.msra.mxu0 0.0
  %460 = vmatprep.subr.mxu0 0.0
  %461 = vmatpush1.msra.mxu0 0.0
  %462 = vmatprep.subr.mxu0 0.0
  %463 = vmatpush1.msra.mxu0 0.0
  %464 = vmatprep.subr.mxu0 0.0
  %465 = vmatpush1.msra.mxu0 0.0
  %466 = vmatprep.subr.mxu0 0.0
  %467 = vmatpush1.msra.mxu0 0.0
  %468 = vmatprep.mubr.f32.mxu0 0.0
  %469 = vmatmul.mubr.f32.gmra.mrb[0].mxu0 %v393
  %v470 = vpop.f32.mrb[0].mxu0
  %v471 = vadd.f32 0.0, %v470
  %v472 = vpop.f32.mrb[0].mxu0
  %473 = vmatprep.mubr.f32.mxu0 0.0
  %474 = vmatmul.mubr.f32.gmra.mrb[0].mxu0 %v396
  %v475 = vpop.f32.mrb[0].mxu0
  %v476 = vadd.f32 0.0, %v475
  %v477 = vpop.f32.mrb[0].mxu0
  %478 = vmatprep.mubr.f32.mxu0 0.0
  %479 = vmatmul.mubr.f32.gmra.mrb[0].mxu0 %v399
  %v480 = vpop.f32.mrb[0].mxu0
  %v481 = vadd.f32 0.0, %v480
  %v482 = vpop.f32.mrb[0].mxu0
  %483 = vmatprep.mubr.f32.mxu0 0.0
  %484 = vmatmul.mubr.f32.gmra.mrb[0].mxu0 %v402
  %v485 = vpop.f32.mrb[0].mxu0
  %v486 = vadd.f32 0.0, %v485
  %v487 = vpop.f32.mrb[0].mxu0
  %488 = vdwg.mxu0
  %v489 = vlaneseq
  %v490 = vshrl.u32 %v489, 7
  %v491 = vsub.s32 0, %v490
  %v492 = vrot.slane %v197, %v491
  %493 = vrot.lane.b32.xlu0 %v492, 120
  %v494 = vpop.permute.xlu0 %493
  %495 = vrot.lane.b32.xlu0 %v159, 120
  %v496 = vpop.permute.xlu0 %495
  %497 = vrot.lane.b32.xlu0 %v164, 120
  %v498 = vpop.permute.xlu0 %497
  %499 = vrot.lane.b32.xlu0 %v169, 120
  %v500 = vpop.permute.xlu0 %499
  %501 = vrot.lane.b32.xlu0 %v174, 120
  %v502 = vpop.permute.xlu0 %501
  %503 = vrot.lane.b32.xlu0 %v179, 120
  %v504 = vpop.permute.xlu0 %503
  %505 = vrot.lane.b32.xlu0 %v184, 120
  %v506 = vpop.permute.xlu0 %505
  %507 = vrot.lane.b32.xlu0 %v189, 120
  %v508 = vpop.permute.xlu0 %507
  %509 = vrot.lane.b32.xlu0 %v194, 120
  %v510 = vpop.permute.xlu0 %509
  %v511 = vsel %vm199, %v494, 0
  %v513 = vsel %vm199, %v496, 0
  %v515 = vsel %vm199, %v498, 0
  %v517 = vsel %vm199, %v500, 0
  %v519 = vsel %vm199, %v502, 0
  %v521 = vsel %vm199, %v504, 0
  %v523 = vsel %vm199, %v506, 0
  %v525 = vsel %vm199, %v508, 0
  %v527 = vsel %vm199, %v510, 0
  %529 = vmatprep.subr.mxu0 0.0
  %530 = vmatpush1.xpose.msra.mxu0 %v513
  %531 = vmatprep.subr.mxu0 0.0
  %532 = vmatpush1.xpose.msra.mxu0 %v515
  %533 = vmatprep.subr.mxu0 0.0
  %534 = vmatpush1.xpose.msra.mxu0 %v517
  %535 = vmatprep.subr.mxu0 0.0
  %536 = vmatpush1.xpose.msra.mxu0 %v519
  %537 = vmatprep.subr.mxu0 0.0
  %538 = vmatpush1.xpose.msra.mxu0 %v521
  %539 = vmatprep.subr.mxu0 0.0
  %540 = vmatpush1.xpose.msra.mxu0 %v523
  %541 = vmatprep.subr.mxu0 0.0
  %542 = vmatpush1.xpose.msra.mxu0 %v525
  %543 = vmatprep.subr.mxu0 0.0
  %544 = vmatpush1.xpose.msra.mxu0 %v527
  %545 = vmatprep.subr.mxu0 0.0
  %546 = vmatpush1.xpose.msra.mxu0 0.0
  %547 = vmatprep.subr.mxu0 0.0
  %548 = vmatpush1.xpose.msra.mxu0 0.0
  %549 = vmatprep.subr.mxu0 0.0
  %550 = vmatpush1.xpose.msra.mxu0 0.0
  %551 = vmatprep.subr.mxu0 0.0
  %552 = vmatpush1.xpose.msra.mxu0 0.0
  %553 = vmatprep.subr.mxu0 0.0
  %554 = vmatpush1.xpose.msra.mxu0 0.0
  %555 = vmatprep.subr.mxu0 0.0
  %556 = vmatpush1.xpose.msra.mxu0 0.0
  %557 = vmatprep.subr.mxu0 0.0
  %558 = vmatpush1.xpose.msra.mxu0 0.0
  %559 = vmatprep.subr.mxu0 0.0
  %560 = vmatpush1.xpose.msra.mxu0 0.0
  %561 = vmatprep.subr.mxu0 0.0
  %562 = vmatpush1.xpose.msra.mxu0 0.0
  %563 = vmatprep.subr.mxu0 0.0
  %564 = vmatpush1.xpose.msra.mxu0 0.0
  %565 = vmatprep.subr.mxu0 0.0
  %566 = vmatpush1.xpose.msra.mxu0 0.0
  %567 = vmatprep.subr.mxu0 0.0
  %568 = vmatpush1.xpose.msra.mxu0 0.0
  %569 = vmatprep.subr.mxu0 0.0
  %570 = vmatpush1.xpose.msra.mxu0 0.0
  %571 = vmatprep.subr.mxu0 0.0
  %572 = vmatpush1.xpose.msra.mxu0 0.0
  %573 = vmatprep.subr.mxu0 0.0
  %574 = vmatpush1.xpose.msra.mxu0 0.0
  %575 = vmatprep.subr.mxu0 0.0
  %576 = vmatpush1.xpose.msra.mxu0 0.0
  %577 = vmatprep.subr.mxu0 0.0
  %578 = vmatpush1.xpose.msra.mxu0 0.0
  %579 = vmatprep.subr.mxu0 0.0
  %580 = vmatpush1.xpose.msra.mxu0 0.0
  %581 = vmatprep.subr.mxu0 0.0
  %582 = vmatpush1.xpose.msra.mxu0 0.0
  %583 = vmatprep.subr.mxu0 0.0
  %584 = vmatpush1.xpose.msra.mxu0 0.0
  %585 = vmatprep.subr.mxu0 0.0
  %586 = vmatpush1.xpose.msra.mxu0 0.0
  %587 = vmatprep.subr.mxu0 0.0
  %588 = vmatpush1.xpose.msra.mxu0 0.0
  %589 = vmatprep.subr.mxu0 0.0
  %590 = vmatpush1.xpose.msra.mxu0 0.0
  %591 = vmatprep.subr.mxu0 0.0
  %592 = vmatpush1.xpose.msra.mxu0 0.0
  %593 = vmatprep.mubr.f32.mxu0 0.0
  %594 = vmatmul.mubr.f32.gmra.mrb[0].mxu0 %v511
  %v595 = vpop.f32.mrb[0].mxu0
  %v596 = vadd.f32 0.0, %v595
  %v597 = vpop.f32.mrb[0].mxu0
  %598 = vdwg.mxu0
  %603 = vrot.lane.b32.xlu0 %v303, 120
  %v604 = vpop.permute.xlu0 %603
  %605 = vrot.lane.b32.xlu0 %v304, 120
  %v606 = vpop.permute.xlu0 %605
  %607 = vrot.lane.b32.xlu0 %v305, 120
  %v608 = vpop.permute.xlu0 %607
  %609 = vrot.lane.b32.xlu0 %v306, 120
  %v610 = vpop.permute.xlu0 %609
  %v615 = vsel %vm199, %v604, 0.0
  %616 = vadd.xlane.f32.xlu0 %v615
  %v617 = vpop.xlane.xlu0 %616
  %v618 = vsel %vm199, %v606, 0.0
  %619 = vadd.xlane.f32.xlu0 %v618
  %v620 = vpop.xlane.xlu0 %619
  %v621 = vsel %vm199, %v608, 0.0
  %622 = vadd.xlane.f32.xlu0 %v621
  %v623 = vpop.xlane.xlu0 %622
  %v624 = vsel %vm199, %v610, 0.0
  %625 = vadd.xlane.f32.xlu0 %v624
  %v626 = vpop.xlane.xlu0 %625
  %v627 = vlaneseq
  %v628 = vshrl.u32 %v627, 7
  %v629 = vsub.s32 0, %v628
  %v630 = vrot.slane %v596, %v629
  %v631 = vadd.f32 %v617, %v630
  %v632 = vadd.f32 %v620, %v630
  %v633 = vadd.f32 %v623, %v630
  %v634 = vadd.f32 %v626, %v630
  %vm635 = vcmp.gt.f32.partialorder %v631, 0.0
  %vm636 = vcmp.gt.f32.partialorder %v632, 0.0
  %vm637 = vcmp.gt.f32.partialorder %v633, 0.0
  %vm638 = vcmp.gt.f32.partialorder %v634, 0.0
  %v639 = vmul.f32 %v631, 0.2
  %v640 = vmul.f32 %v632, 0.2
  %v641 = vmul.f32 %v633, 0.2
  %v642 = vmul.f32 %v634, 0.2
  %v643 = vsel %vm635, %v631, %v639
  %v644 = vsel %vm636, %v632, %v640
  %v645 = vsel %vm637, %v633, %v641
  %v646 = vsel %vm638, %v634, %v642
  %v647 = vsel %vm339, %v643, -1e+30
  %v648 = vsel %vm340, %v644, -1e+30
  %v649 = vsel %vm341, %v645, -1e+30
  %v650 = vsel %vm342, %v646, -1e+30
  %v651 = vsel %vm347, %v647, -inf
  %652 = vmax.xlane.f32.xlu0 %v651
  %v653 = vpop.xlane.xlu0 %652
  %v654 = vsel %vm347, %v648, -inf
  %655 = vmax.xlane.f32.xlu0 %v654
  %v656 = vpop.xlane.xlu0 %655
  %v657 = vsel %vm347, %v649, -inf
  %658 = vmax.xlane.f32.xlu0 %v657
  %v659 = vpop.xlane.xlu0 %658
  %v660 = vsel %vm347, %v650, -inf
  %661 = vmax.xlane.f32.xlu0 %v660
  %v662 = vpop.xlane.xlu0 %661
  %v663 = vsub.f32 %v647, %v653
  %v664 = vsub.f32 %v648, %v656
  %v665 = vsub.f32 %v649, %v659
  %v666 = vsub.f32 %v650, %v662
  %v667 = vmul.f32 %v663, 1.442695
  %v668 = vpow.pop %v667
  %v669 = vmul.f32 %v664, 1.442695
  %v670 = vpow.pop %v669
  %v671 = vmul.f32 %v665, 1.442695
  %v672 = vpow.pop %v671
  %v673 = vmul.f32 %v666, 1.442695
  %v674 = vpow.pop %v673
  %v675 = vsel %vm347, %v668, 0.0
  %676 = vadd.xlane.f32.xlu0 %v675
  %v677 = vpop.xlane.xlu0 %676
  %v678 = vsel %vm347, %v670, 0.0
  %679 = vadd.xlane.f32.xlu0 %v678
  %v680 = vpop.xlane.xlu0 %679
  %v681 = vsel %vm347, %v672, 0.0
  %682 = vadd.xlane.f32.xlu0 %v681
  %v683 = vpop.xlane.xlu0 %682
  %v684 = vsel %vm347, %v674, 0.0
  %685 = vadd.xlane.f32.xlu0 %v684
  %v686 = vpop.xlane.xlu0 %685
  %v687 = vrcp.pop %v677
  %v688 = vrcp.pop %v680
  %v689 = vrcp.pop %v683
  %v690 = vrcp.pop %v686
  %v691 = vmul.f32 %v668, %v687
  %v692 = vmul.f32 %v670, %v688
  %v693 = vmul.f32 %v672, %v689
  %v694 = vmul.f32 %v674, %v690
  %v704 = vsel %vm347, %v691, 0
  %v707 = vsel %vm347, %v692, 0
  %v710 = vsel %vm347, %v693, 0
  %v713 = vsel %vm347, %v694, 0
  %715 = vmatprep.subr.mxu0 0.0
  %716 = vmatpush1.msra.mxu0 %v496
  %717 = vmatprep.subr.mxu0 0.0
  %718 = vmatpush1.msra.mxu0 %v498
  %719 = vmatprep.subr.mxu0 0.0
  %720 = vmatpush1.msra.mxu0 %v500
  %721 = vmatprep.subr.mxu0 0.0
  %722 = vmatpush1.msra.mxu0 %v502
  %723 = vmatprep.subr.mxu0 0.0
  %724 = vmatpush1.msra.mxu0 %v504
  %725 = vmatprep.subr.mxu0 0.0
  %726 = vmatpush1.msra.mxu0 %v506
  %727 = vmatprep.subr.mxu0 0.0
  %728 = vmatpush1.msra.mxu0 %v508
  %729 = vmatprep.subr.mxu0 0.0
  %730 = vmatpush1.msra.mxu0 %v510
  %731 = vmatprep.subr.mxu0 0.0
  %732 = vmatpush1.msra.mxu0 0.0
  %733 = vmatprep.subr.mxu0 0.0
  %734 = vmatpush1.msra.mxu0 0.0
  %735 = vmatprep.subr.mxu0 0.0
  %736 = vmatpush1.msra.mxu0 0.0
  %737 = vmatprep.subr.mxu0 0.0
  %738 = vmatpush1.msra.mxu0 0.0
  %739 = vmatprep.subr.mxu0 0.0
  %740 = vmatpush1.msra.mxu0 0.0
  %741 = vmatprep.subr.mxu0 0.0
  %742 = vmatpush1.msra.mxu0 0.0
  %743 = vmatprep.subr.mxu0 0.0
  %744 = vmatpush1.msra.mxu0 0.0
  %745 = vmatprep.subr.mxu0 0.0
  %746 = vmatpush1.msra.mxu0 0.0
  %747 = vmatprep.subr.mxu0 0.0
  %748 = vmatpush1.msra.mxu0 0.0
  %749 = vmatprep.subr.mxu0 0.0
  %750 = vmatpush1.msra.mxu0 0.0
  %751 = vmatprep.subr.mxu0 0.0
  %752 = vmatpush1.msra.mxu0 0.0
  %753 = vmatprep.subr.mxu0 0.0
  %754 = vmatpush1.msra.mxu0 0.0
  %755 = vmatprep.subr.mxu0 0.0
  %756 = vmatpush1.msra.mxu0 0.0
  %757 = vmatprep.subr.mxu0 0.0
  %758 = vmatpush1.msra.mxu0 0.0
  %759 = vmatprep.subr.mxu0 0.0
  %760 = vmatpush1.msra.mxu0 0.0
  %761 = vmatprep.subr.mxu0 0.0
  %762 = vmatpush1.msra.mxu0 0.0
  %763 = vmatprep.subr.mxu0 0.0
  %764 = vmatpush1.msra.mxu0 0.0
  %765 = vmatprep.subr.mxu0 0.0
  %766 = vmatpush1.msra.mxu0 0.0
  %767 = vmatprep.subr.mxu0 0.0
  %768 = vmatpush1.msra.mxu0 0.0
  %769 = vmatprep.subr.mxu0 0.0
  %770 = vmatpush1.msra.mxu0 0.0
  %771 = vmatprep.subr.mxu0 0.0
  %772 = vmatpush1.msra.mxu0 0.0
  %773 = vmatprep.subr.mxu0 0.0
  %774 = vmatpush1.msra.mxu0 0.0
  %775 = vmatprep.subr.mxu0 0.0
  %776 = vmatpush1.msra.mxu0 0.0
  %777 = vmatprep.subr.mxu0 0.0
  %778 = vmatpush1.msra.mxu0 0.0
  %779 = vmatprep.mubr.f32.mxu0 0.0
  %780 = vmatmul.mubr.f32.gmra.mrb[0].mxu0 %v704
  %v781 = vpop.f32.mrb[0].mxu0
  %v782 = vadd.f32 0.0, %v781
  %v783 = vpop.f32.mrb[0].mxu0
  %784 = vmatprep.mubr.f32.mxu0 0.0
  %785 = vmatmul.mubr.f32.gmra.mrb[0].mxu0 %v707
  %v786 = vpop.f32.mrb[0].mxu0
  %v787 = vadd.f32 0.0, %v786
  %v788 = vpop.f32.mrb[0].mxu0
  %789 = vmatprep.mubr.f32.mxu0 0.0
  %790 = vmatmul.mubr.f32.gmra.mrb[0].mxu0 %v710
  %v791 = vpop.f32.mrb[0].mxu0
  %v792 = vadd.f32 0.0, %v791
  %v793 = vpop.f32.mrb[0].mxu0
  %794 = vmatprep.mubr.f32.mxu0 0.0
  %795 = vmatmul.mubr.f32.gmra.mrb[0].mxu0 %v713
  %v796 = vpop.f32.mrb[0].mxu0
  %v797 = vadd.f32 0.0, %v796
  %v798 = vpop.f32.mrb[0].mxu0
  %799 = vdwg.mxu0
  %800 = vrot.lane.b32.xlu0 %v492, 112
  %v801 = vpop.permute.xlu0 %800
  %802 = vrot.lane.b32.xlu0 %v159, 112
  %v803 = vpop.permute.xlu0 %802
  %804 = vrot.lane.b32.xlu0 %v164, 112
  %v805 = vpop.permute.xlu0 %804
  %806 = vrot.lane.b32.xlu0 %v169, 112
  %v807 = vpop.permute.xlu0 %806
  %808 = vrot.lane.b32.xlu0 %v174, 112
  %v809 = vpop.permute.xlu0 %808
  %810 = vrot.lane.b32.xlu0 %v179, 112
  %v811 = vpop.permute.xlu0 %810
  %812 = vrot.lane.b32.xlu0 %v184, 112
  %v813 = vpop.permute.xlu0 %812
  %814 = vrot.lane.b32.xlu0 %v189, 112
  %v815 = vpop.permute.xlu0 %814
  %816 = vrot.lane.b32.xlu0 %v194, 112
  %v817 = vpop.permute.xlu0 %816
  %v818 = vsel %vm199, %v801, 0
  %v820 = vsel %vm199, %v803, 0
  %v822 = vsel %vm199, %v805, 0
  %v824 = vsel %vm199, %v807, 0
  %v826 = vsel %vm199, %v809, 0
  %v828 = vsel %vm199, %v811, 0
  %v830 = vsel %vm199, %v813, 0
  %v832 = vsel %vm199, %v815, 0
  %v834 = vsel %vm199, %v817, 0
  %836 = vmatprep.subr.mxu0 0.0
  %837 = vmatpush1.xpose.msra.mxu0 %v820
  %838 = vmatprep.subr.mxu0 0.0
  %839 = vmatpush1.xpose.msra.mxu0 %v822
  %840 = vmatprep.subr.mxu0 0.0
  %841 = vmatpush1.xpose.msra.mxu0 %v824
  %842 = vmatprep.subr.mxu0 0.0
  %843 = vmatpush1.xpose.msra.mxu0 %v826
  %844 = vmatprep.subr.mxu0 0.0
  %845 = vmatpush1.xpose.msra.mxu0 %v828
  %846 = vmatprep.subr.mxu0 0.0
  %847 = vmatpush1.xpose.msra.mxu0 %v830
  %848 = vmatprep.subr.mxu0 0.0
  %849 = vmatpush1.xpose.msra.mxu0 %v832
  %850 = vmatprep.subr.mxu0 0.0
  %851 = vmatpush1.xpose.msra.mxu0 %v834
  %852 = vmatprep.subr.mxu0 0.0
  %853 = vmatpush1.xpose.msra.mxu0 0.0
  %854 = vmatprep.subr.mxu0 0.0
  %855 = vmatpush1.xpose.msra.mxu0 0.0
  %856 = vmatprep.subr.mxu0 0.0
  %857 = vmatpush1.xpose.msra.mxu0 0.0
  %858 = vmatprep.subr.mxu0 0.0
  %859 = vmatpush1.xpose.msra.mxu0 0.0
  %860 = vmatprep.subr.mxu0 0.0
  %861 = vmatpush1.xpose.msra.mxu0 0.0
  %862 = vmatprep.subr.mxu0 0.0
  %863 = vmatpush1.xpose.msra.mxu0 0.0
  %864 = vmatprep.subr.mxu0 0.0
  %865 = vmatpush1.xpose.msra.mxu0 0.0
  %866 = vmatprep.subr.mxu0 0.0
  %867 = vmatpush1.xpose.msra.mxu0 0.0
  %868 = vmatprep.subr.mxu0 0.0
  %869 = vmatpush1.xpose.msra.mxu0 0.0
  %870 = vmatprep.subr.mxu0 0.0
  %871 = vmatpush1.xpose.msra.mxu0 0.0
  %872 = vmatprep.subr.mxu0 0.0
  %873 = vmatpush1.xpose.msra.mxu0 0.0
  %874 = vmatprep.subr.mxu0 0.0
  %875 = vmatpush1.xpose.msra.mxu0 0.0
  %876 = vmatprep.subr.mxu0 0.0
  %877 = vmatpush1.xpose.msra.mxu0 0.0
  %878 = vmatprep.subr.mxu0 0.0
  %879 = vmatpush1.xpose.msra.mxu0 0.0
  %880 = vmatprep.subr.mxu0 0.0
  %881 = vmatpush1.xpose.msra.mxu0 0.0
  %882 = vmatprep.subr.mxu0 0.0
  %883 = vmatpush1.xpose.msra.mxu0 0.0
  %884 = vmatprep.subr.mxu0 0.0
  %885 = vmatpush1.xpose.msra.mxu0 0.0
  %886 = vmatprep.subr.mxu0 0.0
  %887 = vmatpush1.xpose.msra.mxu0 0.0
  %888 = vmatprep.subr.mxu0 0.0
  %889 = vmatpush1.xpose.msra.mxu0 0.0
  %890 = vmatprep.subr.mxu0 0.0
  %891 = vmatpush1.xpose.msra.mxu0 0.0
  %892 = vmatprep.subr.mxu0 0.0
  %893 = vmatpush1.xpose.msra.mxu0 0.0
  %894 = vmatprep.subr.mxu0 0.0
  %895 = vmatpush1.xpose.msra.mxu0 0.0
  %896 = vmatprep.subr.mxu0 0.0
  %897 = vmatpush1.xpose.msra.mxu0 0.0
  %898 = vmatprep.subr.mxu0 0.0
  %899 = vmatpush1.xpose.msra.mxu0 0.0
  %900 = vmatprep.mubr.f32.mxu0 0.0
  %901 = vmatmul.mubr.f32.gmra.mrb[0].mxu0 %v818
  %v902 = vpop.f32.mrb[0].mxu0
  %v903 = vadd.f32 0.0, %v902
  %v904 = vpop.f32.mrb[0].mxu0
  %905 = vdwg.mxu0
  %906 = vrot.lane.b32.xlu0 %v303, 112
  %v907 = vpop.permute.xlu0 %906
  %908 = vrot.lane.b32.xlu0 %v304, 112
  %v909 = vpop.permute.xlu0 %908
  %910 = vrot.lane.b32.xlu0 %v305, 112
  %v911 = vpop.permute.xlu0 %910
  %912 = vrot.lane.b32.xlu0 %v306, 112
  %v913 = vpop.permute.xlu0 %912
  %v918 = vsel %vm199, %v907, 0.0
  %919 = vadd.xlane.f32.xlu0 %v918
  %v920 = vpop.xlane.xlu0 %919
  %v921 = vsel %vm199, %v909, 0.0
  %922 = vadd.xlane.f32.xlu0 %v921
  %v923 = vpop.xlane.xlu0 %922
  %v924 = vsel %vm199, %v911, 0.0
  %925 = vadd.xlane.f32.xlu0 %v924
  %v926 = vpop.xlane.xlu0 %925
  %v927 = vsel %vm199, %v913, 0.0
  %928 = vadd.xlane.f32.xlu0 %v927
  %v929 = vpop.xlane.xlu0 %928
  %v930 = vlaneseq
  %v931 = vshrl.u32 %v930, 7
  %v932 = vsub.s32 0, %v931
  %v933 = vrot.slane %v903, %v932
  %v934 = vadd.f32 %v920, %v933
  %v935 = vadd.f32 %v923, %v933
  %v936 = vadd.f32 %v926, %v933
  %v937 = vadd.f32 %v929, %v933
  %vm938 = vcmp.gt.f32.partialorder %v934, 0.0
  %vm939 = vcmp.gt.f32.partialorder %v935, 0.0
  %vm940 = vcmp.gt.f32.partialorder %v936, 0.0
  %vm941 = vcmp.gt.f32.partialorder %v937, 0.0
  %v942 = vmul.f32 %v934, 0.2
  %v943 = vmul.f32 %v935, 0.2
  %v944 = vmul.f32 %v936, 0.2
  %v945 = vmul.f32 %v937, 0.2
  %v946 = vsel %vm938, %v934, %v942
  %v947 = vsel %vm939, %v935, %v943
  %v948 = vsel %vm940, %v936, %v944
  %v949 = vsel %vm941, %v937, %v945
  %v950 = vsel %vm339, %v946, -1e+30
  %v951 = vsel %vm340, %v947, -1e+30
  %v952 = vsel %vm341, %v948, -1e+30
  %v953 = vsel %vm342, %v949, -1e+30
  %v954 = vsel %vm347, %v950, -inf
  %955 = vmax.xlane.f32.xlu0 %v954
  %v956 = vpop.xlane.xlu0 %955
  %v957 = vsel %vm347, %v951, -inf
  %958 = vmax.xlane.f32.xlu0 %v957
  %v959 = vpop.xlane.xlu0 %958
  %v960 = vsel %vm347, %v952, -inf
  %961 = vmax.xlane.f32.xlu0 %v960
  %v962 = vpop.xlane.xlu0 %961
  %v963 = vsel %vm347, %v953, -inf
  %964 = vmax.xlane.f32.xlu0 %v963
  %v965 = vpop.xlane.xlu0 %964
  %v966 = vsub.f32 %v950, %v956
  %v967 = vsub.f32 %v951, %v959
  %v968 = vsub.f32 %v952, %v962
  %v969 = vsub.f32 %v953, %v965
  %v970 = vmul.f32 %v966, 1.442695
  %v971 = vpow.pop %v970
  %v972 = vmul.f32 %v967, 1.442695
  %v973 = vpow.pop %v972
  %v974 = vmul.f32 %v968, 1.442695
  %v975 = vpow.pop %v974
  %v976 = vmul.f32 %v969, 1.442695
  %v977 = vpow.pop %v976
  %v978 = vsel %vm347, %v971, 0.0
  %979 = vadd.xlane.f32.xlu0 %v978
  %v980 = vpop.xlane.xlu0 %979
  %v981 = vsel %vm347, %v973, 0.0
  %982 = vadd.xlane.f32.xlu0 %v981
  %v983 = vpop.xlane.xlu0 %982
  %v984 = vsel %vm347, %v975, 0.0
  %985 = vadd.xlane.f32.xlu0 %v984
  %v986 = vpop.xlane.xlu0 %985
  %v987 = vsel %vm347, %v977, 0.0
  %988 = vadd.xlane.f32.xlu0 %v987
  %v989 = vpop.xlane.xlu0 %988
  %v990 = vrcp.pop %v980
  %v991 = vrcp.pop %v983
  %v992 = vrcp.pop %v986
  %v993 = vrcp.pop %v989
  %v994 = vmul.f32 %v971, %v990
  %v995 = vmul.f32 %v973, %v991
  %v996 = vmul.f32 %v975, %v992
  %v997 = vmul.f32 %v977, %v993
  %v1007 = vsel %vm347, %v994, 0
  %v1010 = vsel %vm347, %v995, 0
  %v1013 = vsel %vm347, %v996, 0
  %v1016 = vsel %vm347, %v997, 0
  %1018 = vmatprep.subr.mxu0 0.0
  %1019 = vmatpush1.msra.mxu0 %v803
  %1020 = vmatprep.subr.mxu0 0.0
  %1021 = vmatpush1.msra.mxu0 %v805
  %1022 = vmatprep.subr.mxu0 0.0
  %1023 = vmatpush1.msra.mxu0 %v807
  %1024 = vmatprep.subr.mxu0 0.0
  %1025 = vmatpush1.msra.mxu0 %v809
  %1026 = vmatprep.subr.mxu0 0.0
  %1027 = vmatpush1.msra.mxu0 %v811
  %1028 = vmatprep.subr.mxu0 0.0
  %1029 = vmatpush1.msra.mxu0 %v813
  %1030 = vmatprep.subr.mxu0 0.0
  %1031 = vmatpush1.msra.mxu0 %v815
  %1032 = vmatprep.subr.mxu0 0.0
  %1033 = vmatpush1.msra.mxu0 %v817
  %1034 = vmatprep.subr.mxu0 0.0
  %1035 = vmatpush1.msra.mxu0 0.0
  %1036 = vmatprep.subr.mxu0 0.0
  %1037 = vmatpush1.msra.mxu0 0.0
  %1038 = vmatprep.subr.mxu0 0.0
  %1039 = vmatpush1.msra.mxu0 0.0
  %1040 = vmatprep.subr.mxu0 0.0
  %1041 = vmatpush1.msra.mxu0 0.0
  %1042 = vmatprep.subr.mxu0 0.0
  %1043 = vmatpush1.msra.mxu0 0.0
  %1044 = vmatprep.subr.mxu0 0.0
  %1045 = vmatpush1.msra.mxu0 0.0
  %1046 = vmatprep.subr.mxu0 0.0
  %1047 = vmatpush1.msra.mxu0 0.0
  %1048 = vmatprep.subr.mxu0 0.0
  %1049 = vmatpush1.msra.mxu0 0.0
  %1050 = vmatprep.subr.mxu0 0.0
  %1051 = vmatpush1.msra.mxu0 0.0
  %1052 = vmatprep.subr.mxu0 0.0
  %1053 = vmatpush1.msra.mxu0 0.0
  %1054 = vmatprep.subr.mxu0 0.0
  %1055 = vmatpush1.msra.mxu0 0.0
  %1056 = vmatprep.subr.mxu0 0.0
  %1057 = vmatpush1.msra.mxu0 0.0
  %1058 = vmatprep.subr.mxu0 0.0
  %1059 = vmatpush1.msra.mxu0 0.0
  %1060 = vmatprep.subr.mxu0 0.0
  %1061 = vmatpush1.msra.mxu0 0.0
  %1062 = vmatprep.subr.mxu0 0.0
  %1063 = vmatpush1.msra.mxu0 0.0
  %1064 = vmatprep.subr.mxu0 0.0
  %1065 = vmatpush1.msra.mxu0 0.0
  %1066 = vmatprep.subr.mxu0 0.0
  %1067 = vmatpush1.msra.mxu0 0.0
  %1068 = vmatprep.subr.mxu0 0.0
  %1069 = vmatpush1.msra.mxu0 0.0
  %1070 = vmatprep.subr.mxu0 0.0
  %1071 = vmatpush1.msra.mxu0 0.0
  %1072 = vmatprep.subr.mxu0 0.0
  %1073 = vmatpush1.msra.mxu0 0.0
  %1074 = vmatprep.subr.mxu0 0.0
  %1075 = vmatpush1.msra.mxu0 0.0
  %1076 = vmatprep.subr.mxu0 0.0
  %1077 = vmatpush1.msra.mxu0 0.0
  %1078 = vmatprep.subr.mxu0 0.0
  %1079 = vmatpush1.msra.mxu0 0.0
  %1080 = vmatprep.subr.mxu0 0.0
  %1081 = vmatpush1.msra.mxu0 0.0
  %1082 = vmatprep.mubr.f32.mxu0 0.0
  %1083 = vmatmul.mubr.f32.gmra.mrb[0].mxu0 %v1007
  %v1084 = vpop.f32.mrb[0].mxu0
  %v1085 = vadd.f32 0.0, %v1084
  %v1086 = vpop.f32.mrb[0].mxu0
  %1087 = vmatprep.mubr.f32.mxu0 0.0
  %1088 = vmatmul.mubr.f32.gmra.mrb[0].mxu0 %v1010
  %v1089 = vpop.f32.mrb[0].mxu0
  %v1090 = vadd.f32 0.0, %v1089
  %v1091 = vpop.f32.mrb[0].mxu0
  %1092 = vmatprep.mubr.f32.mxu0 0.0
  %1093 = vmatmul.mubr.f32.gmra.mrb[0].mxu0 %v1013
  %v1094 = vpop.f32.mrb[0].mxu0
  %v1095 = vadd.f32 0.0, %v1094
  %v1096 = vpop.f32.mrb[0].mxu0
  %1097 = vmatprep.mubr.f32.mxu0 0.0
  %1098 = vmatmul.mubr.f32.gmra.mrb[0].mxu0 %v1016
  %v1099 = vpop.f32.mrb[0].mxu0
  %v1100 = vadd.f32 0.0, %v1099
  %v1101 = vpop.f32.mrb[0].mxu0
  %1102 = vdwg.mxu0
  %1103 = vrot.lane.b32.xlu0 %v492, 104
  %v1104 = vpop.permute.xlu0 %1103
  %1105 = vrot.lane.b32.xlu0 %v159, 104
  %v1106 = vpop.permute.xlu0 %1105
  %1107 = vrot.lane.b32.xlu0 %v164, 104
  %v1108 = vpop.permute.xlu0 %1107
  %1109 = vrot.lane.b32.xlu0 %v169, 104
  %v1110 = vpop.permute.xlu0 %1109
  %1111 = vrot.lane.b32.xlu0 %v174, 104
  %v1112 = vpop.permute.xlu0 %1111
  %1113 = vrot.lane.b32.xlu0 %v179, 104
  %v1114 = vpop.permute.xlu0 %1113
  %1115 = vrot.lane.b32.xlu0 %v184, 104
  %v1116 = vpop.permute.xlu0 %1115
  %1117 = vrot.lane.b32.xlu0 %v189, 104
  %v1118 = vpop.permute.xlu0 %1117
  %1119 = vrot.lane.b32.xlu0 %v194, 104
  %v1120 = vpop.permute.xlu0 %1119
  %v1121 = vsel %vm199, %v1104, 0
  %v1123 = vsel %vm199, %v1106, 0
  %v1125 = vsel %vm199, %v1108, 0
  %v1127 = vsel %vm199, %v1110, 0
  %v1129 = vsel %vm199, %v1112, 0
  %v1131 = vsel %vm199, %v1114, 0
  %v1133 = vsel %vm199, %v1116, 0
  %v1135 = vsel %vm199, %v1118, 0
  %v1137 = vsel %vm199, %v1120, 0
  %1139 = vmatprep.subr.mxu0 0.0
  %1140 = vmatpush1.xpose.msra.mxu0 %v1123
  %1141 = vmatprep.subr.mxu0 0.0
  %1142 = vmatpush1.xpose.msra.mxu0 %v1125
  %1143 = vmatprep.subr.mxu0 0.0
  %1144 = vmatpush1.xpose.msra.mxu0 %v1127
  %1145 = vmatprep.subr.mxu0 0.0
  %1146 = vmatpush1.xpose.msra.mxu0 %v1129
  %1147 = vmatprep.subr.mxu0 0.0
  %1148 = vmatpush1.xpose.msra.mxu0 %v1131
  %1149 = vmatprep.subr.mxu0 0.0
  %1150 = vmatpush1.xpose.msra.mxu0 %v1133
  %1151 = vmatprep.subr.mxu0 0.0
  %1152 = vmatpush1.xpose.msra.mxu0 %v1135
  %1153 = vmatprep.subr.mxu0 0.0
  %1154 = vmatpush1.xpose.msra.mxu0 %v1137
  %1155 = vmatprep.subr.mxu0 0.0
  %1156 = vmatpush1.xpose.msra.mxu0 0.0
  %1157 = vmatprep.subr.mxu0 0.0
  %1158 = vmatpush1.xpose.msra.mxu0 0.0
  %1159 = vmatprep.subr.mxu0 0.0
  %1160 = vmatpush1.xpose.msra.mxu0 0.0
  %1161 = vmatprep.subr.mxu0 0.0
  %1162 = vmatpush1.xpose.msra.mxu0 0.0
  %1163 = vmatprep.subr.mxu0 0.0
  %1164 = vmatpush1.xpose.msra.mxu0 0.0
  %1165 = vmatprep.subr.mxu0 0.0
  %1166 = vmatpush1.xpose.msra.mxu0 0.0
  %1167 = vmatprep.subr.mxu0 0.0
  %1168 = vmatpush1.xpose.msra.mxu0 0.0
  %1169 = vmatprep.subr.mxu0 0.0
  %1170 = vmatpush1.xpose.msra.mxu0 0.0
  %1171 = vmatprep.subr.mxu0 0.0
  %1172 = vmatpush1.xpose.msra.mxu0 0.0
  %1173 = vmatprep.subr.mxu0 0.0
  %1174 = vmatpush1.xpose.msra.mxu0 0.0
  %1175 = vmatprep.subr.mxu0 0.0
  %1176 = vmatpush1.xpose.msra.mxu0 0.0
  %1177 = vmatprep.subr.mxu0 0.0
  %1178 = vmatpush1.xpose.msra.mxu0 0.0
  %1179 = vmatprep.subr.mxu0 0.0
  %1180 = vmatpush1.xpose.msra.mxu0 0.0
  %1181 = vmatprep.subr.mxu0 0.0
  %1182 = vmatpush1.xpose.msra.mxu0 0.0
  %1183 = vmatprep.subr.mxu0 0.0
  %1184 = vmatpush1.xpose.msra.mxu0 0.0
  %1185 = vmatprep.subr.mxu0 0.0
  %1186 = vmatpush1.xpose.msra.mxu0 0.0
  %1187 = vmatprep.subr.mxu0 0.0
  %1188 = vmatpush1.xpose.msra.mxu0 0.0
  %1189 = vmatprep.subr.mxu0 0.0
  %1190 = vmatpush1.xpose.msra.mxu0 0.0
  %1191 = vmatprep.subr.mxu0 0.0
  %1192 = vmatpush1.xpose.msra.mxu0 0.0
  %1193 = vmatprep.subr.mxu0 0.0
  %1194 = vmatpush1.xpose.msra.mxu0 0.0
  %1195 = vmatprep.subr.mxu0 0.0
  %1196 = vmatpush1.xpose.msra.mxu0 0.0
  %1197 = vmatprep.subr.mxu0 0.0
  %1198 = vmatpush1.xpose.msra.mxu0 0.0
  %1199 = vmatprep.subr.mxu0 0.0
  %1200 = vmatpush1.xpose.msra.mxu0 0.0
  %1201 = vmatprep.subr.mxu0 0.0
  %1202 = vmatpush1.xpose.msra.mxu0 0.0
  %1203 = vmatprep.mubr.f32.mxu0 0.0
  %1204 = vmatmul.mubr.f32.gmra.mrb[0].mxu0 %v1121
  %v1205 = vpop.f32.mrb[0].mxu0
  %v1206 = vadd.f32 0.0, %v1205
  %v1207 = vpop.f32.mrb[0].mxu0
  %1208 = vdwg.mxu0
  %1209 = vrot.lane.b32.xlu0 %v303, 104
  %v1210 = vpop.permute.xlu0 %1209
  %1211 = vrot.lane.b32.xlu0 %v304, 104
  %v1212 = vpop.permute.xlu0 %1211
  %1213 = vrot.lane.b32.xlu0 %v305, 104
  %v1214 = vpop.permute.xlu0 %1213
  %1215 = vrot.lane.b32.xlu0 %v306, 104
  %v1216 = vpop.permute.xlu0 %1215
  %v1221 = vsel %vm199, %v1210, 0.0
  %1222 = vadd.xlane.f32.xlu0 %v1221
  %v1223 = vpop.xlane.xlu0 %1222
  %v1224 = vsel %vm199, %v1212, 0.0
  %1225 = vadd.xlane.f32.xlu0 %v1224
  %v1226 = vpop.xlane.xlu0 %1225
  %v1227 = vsel %vm199, %v1214, 0.0
  %1228 = vadd.xlane.f32.xlu0 %v1227
  %v1229 = vpop.xlane.xlu0 %1228
  %v1230 = vsel %vm199, %v1216, 0.0
  %1231 = vadd.xlane.f32.xlu0 %v1230
  %v1232 = vpop.xlane.xlu0 %1231
  %v1233 = vlaneseq
  %v1234 = vshrl.u32 %v1233, 7
  %v1235 = vsub.s32 0, %v1234
  %v1236 = vrot.slane %v1206, %v1235
  %v1237 = vadd.f32 %v1223, %v1236
  %v1238 = vadd.f32 %v1226, %v1236
  %v1239 = vadd.f32 %v1229, %v1236
  %v1240 = vadd.f32 %v1232, %v1236
  %vm1241 = vcmp.gt.f32.partialorder %v1237, 0.0
  %vm1242 = vcmp.gt.f32.partialorder %v1238, 0.0
  %vm1243 = vcmp.gt.f32.partialorder %v1239, 0.0
  %vm1244 = vcmp.gt.f32.partialorder %v1240, 0.0
  %v1245 = vmul.f32 %v1237, 0.2
  %v1246 = vmul.f32 %v1238, 0.2
  %v1247 = vmul.f32 %v1239, 0.2
  %v1248 = vmul.f32 %v1240, 0.2
  %v1249 = vsel %vm1241, %v1237, %v1245
  %v1250 = vsel %vm1242, %v1238, %v1246
  %v1251 = vsel %vm1243, %v1239, %v1247
  %v1252 = vsel %vm1244, %v1240, %v1248
  %v1253 = vsel %vm339, %v1249, -1e+30
  %v1254 = vsel %vm340, %v1250, -1e+30
  %v1255 = vsel %vm341, %v1251, -1e+30
  %v1256 = vsel %vm342, %v1252, -1e+30
  %v1257 = vsel %vm347, %v1253, -inf
  %1258 = vmax.xlane.f32.xlu0 %v1257
  %v1259 = vpop.xlane.xlu0 %1258
  %v1260 = vsel %vm347, %v1254, -inf
  %1261 = vmax.xlane.f32.xlu0 %v1260
  %v1262 = vpop.xlane.xlu0 %1261
  %v1263 = vsel %vm347, %v1255, -inf
  %1264 = vmax.xlane.f32.xlu0 %v1263
  %v1265 = vpop.xlane.xlu0 %1264
  %v1266 = vsel %vm347, %v1256, -inf
  %1267 = vmax.xlane.f32.xlu0 %v1266
  %v1268 = vpop.xlane.xlu0 %1267
  %v1269 = vsub.f32 %v1253, %v1259
  %v1270 = vsub.f32 %v1254, %v1262
  %v1271 = vsub.f32 %v1255, %v1265
  %v1272 = vsub.f32 %v1256, %v1268
  %v1273 = vmul.f32 %v1269, 1.442695
  %v1274 = vpow.pop %v1273
  %v1275 = vmul.f32 %v1270, 1.442695
  %v1276 = vpow.pop %v1275
  %v1277 = vmul.f32 %v1271, 1.442695
  %v1278 = vpow.pop %v1277
  %v1279 = vmul.f32 %v1272, 1.442695
  %v1280 = vpow.pop %v1279
  %v1281 = vsel %vm347, %v1274, 0.0
  %1282 = vadd.xlane.f32.xlu0 %v1281
  %v1283 = vpop.xlane.xlu0 %1282
  %v1284 = vsel %vm347, %v1276, 0.0
  %1285 = vadd.xlane.f32.xlu0 %v1284
  %v1286 = vpop.xlane.xlu0 %1285
  %v1287 = vsel %vm347, %v1278, 0.0
  %1288 = vadd.xlane.f32.xlu0 %v1287
  %v1289 = vpop.xlane.xlu0 %1288
  %v1290 = vsel %vm347, %v1280, 0.0
  %1291 = vadd.xlane.f32.xlu0 %v1290
  %v1292 = vpop.xlane.xlu0 %1291
  %v1293 = vrcp.pop %v1283
  %v1294 = vrcp.pop %v1286
  %v1295 = vrcp.pop %v1289
  %v1296 = vrcp.pop %v1292
  %v1297 = vmul.f32 %v1274, %v1293
  %v1298 = vmul.f32 %v1276, %v1294
  %v1299 = vmul.f32 %v1278, %v1295
  %v1300 = vmul.f32 %v1280, %v1296
  %v1310 = vsel %vm347, %v1297, 0
  %v1313 = vsel %vm347, %v1298, 0
  %v1316 = vsel %vm347, %v1299, 0
  %v1319 = vsel %vm347, %v1300, 0
  %1321 = vmatprep.subr.mxu0 0.0
  %1322 = vmatpush1.msra.mxu0 %v1106
  %1323 = vmatprep.subr.mxu0 0.0
  %1324 = vmatpush1.msra.mxu0 %v1108
  %1325 = vmatprep.subr.mxu0 0.0
  %1326 = vmatpush1.msra.mxu0 %v1110
  %1327 = vmatprep.subr.mxu0 0.0
  %1328 = vmatpush1.msra.mxu0 %v1112
  %1329 = vmatprep.subr.mxu0 0.0
  %1330 = vmatpush1.msra.mxu0 %v1114
  %1331 = vmatprep.subr.mxu0 0.0
  %1332 = vmatpush1.msra.mxu0 %v1116
  %1333 = vmatprep.subr.mxu0 0.0
  %1334 = vmatpush1.msra.mxu0 %v1118
  %1335 = vmatprep.subr.mxu0 0.0
  %1336 = vmatpush1.msra.mxu0 %v1120
  %1337 = vmatprep.subr.mxu0 0.0
  %1338 = vmatpush1.msra.mxu0 0.0
  %1339 = vmatprep.subr.mxu0 0.0
  %1340 = vmatpush1.msra.mxu0 0.0
  %1341 = vmatprep.subr.mxu0 0.0
  %1342 = vmatpush1.msra.mxu0 0.0
  %1343 = vmatprep.subr.mxu0 0.0
  %1344 = vmatpush1.msra.mxu0 0.0
  %1345 = vmatprep.subr.mxu0 0.0
  %1346 = vmatpush1.msra.mxu0 0.0
  %1347 = vmatprep.subr.mxu0 0.0
  %1348 = vmatpush1.msra.mxu0 0.0
  %1349 = vmatprep.subr.mxu0 0.0
  %1350 = vmatpush1.msra.mxu0 0.0
  %1351 = vmatprep.subr.mxu0 0.0
  %1352 = vmatpush1.msra.mxu0 0.0
  %1353 = vmatprep.subr.mxu0 0.0
  %1354 = vmatpush1.msra.mxu0 0.0
  %1355 = vmatprep.subr.mxu0 0.0
  %1356 = vmatpush1.msra.mxu0 0.0
  %1357 = vmatprep.subr.mxu0 0.0
  %1358 = vmatpush1.msra.mxu0 0.0
  %1359 = vmatprep.subr.mxu0 0.0
  %1360 = vmatpush1.msra.mxu0 0.0
  %1361 = vmatprep.subr.mxu0 0.0
  %1362 = vmatpush1.msra.mxu0 0.0
  %1363 = vmatprep.subr.mxu0 0.0
  %1364 = vmatpush1.msra.mxu0 0.0
  %1365 = vmatprep.subr.mxu0 0.0
  %1366 = vmatpush1.msra.mxu0 0.0
  %1367 = vmatprep.subr.mxu0 0.0
  %1368 = vmatpush1.msra.mxu0 0.0
  %1369 = vmatprep.subr.mxu0 0.0
  %1370 = vmatpush1.msra.mxu0 0.0
  %1371 = vmatprep.subr.mxu0 0.0
  %1372 = vmatpush1.msra.mxu0 0.0
  %1373 = vmatprep.subr.mxu0 0.0
  %1374 = vmatpush1.msra.mxu0 0.0
  %1375 = vmatprep.subr.mxu0 0.0
  %1376 = vmatpush1.msra.mxu0 0.0
  %1377 = vmatprep.subr.mxu0 0.0
  %1378 = vmatpush1.msra.mxu0 0.0
  %1379 = vmatprep.subr.mxu0 0.0
  %1380 = vmatpush1.msra.mxu0 0.0
  %1381 = vmatprep.subr.mxu0 0.0
  %1382 = vmatpush1.msra.mxu0 0.0
  %1383 = vmatprep.subr.mxu0 0.0
  %1384 = vmatpush1.msra.mxu0 0.0
  %1385 = vmatprep.mubr.f32.mxu0 0.0
  %1386 = vmatmul.mubr.f32.gmra.mrb[0].mxu0 %v1310
  %v1387 = vpop.f32.mrb[0].mxu0
  %v1388 = vadd.f32 0.0, %v1387
  %v1389 = vpop.f32.mrb[0].mxu0
  %1390 = vmatprep.mubr.f32.mxu0 0.0
  %1391 = vmatmul.mubr.f32.gmra.mrb[0].mxu0 %v1313
  %v1392 = vpop.f32.mrb[0].mxu0
  %v1393 = vadd.f32 0.0, %v1392
  %v1394 = vpop.f32.mrb[0].mxu0
  %1395 = vmatprep.mubr.f32.mxu0 0.0
  %1396 = vmatmul.mubr.f32.gmra.mrb[0].mxu0 %v1316
  %v1397 = vpop.f32.mrb[0].mxu0
  %v1398 = vadd.f32 0.0, %v1397
  %v1399 = vpop.f32.mrb[0].mxu0
  %1400 = vmatprep.mubr.f32.mxu0 0.0
  %1401 = vmatmul.mubr.f32.gmra.mrb[0].mxu0 %v1319
  %v1402 = vpop.f32.mrb[0].mxu0
  %v1403 = vadd.f32 0.0, %v1402
  %v1404 = vpop.f32.mrb[0].mxu0
  %1405 = vdwg.mxu0
  %1410 = vrot.lane.b32.xlu0 %v782, 8
  %v1411 = vpop.permute.xlu0 %1410
  %1412 = vrot.lane.b32.xlu0 %v787, 8
  %v1413 = vpop.permute.xlu0 %1412
  %1414 = vrot.lane.b32.xlu0 %v792, 8
  %v1415 = vpop.permute.xlu0 %1414
  %1416 = vrot.lane.b32.xlu0 %v797, 8
  %v1417 = vpop.permute.xlu0 %1416
  %1426 = vrot.lane.b32.xlu0 %v1085, 16
  %v1427 = vpop.permute.xlu0 %1426
  %1428 = vrot.lane.b32.xlu0 %v1090, 16
  %v1429 = vpop.permute.xlu0 %1428
  %1430 = vrot.lane.b32.xlu0 %v1095, 16
  %v1431 = vpop.permute.xlu0 %1430
  %1432 = vrot.lane.b32.xlu0 %v1100, 16
  %v1433 = vpop.permute.xlu0 %1432
  %1442 = vrot.lane.b32.xlu0 %v1388, 24
  %v1443 = vpop.permute.xlu0 %1442
  %1444 = vrot.lane.b32.xlu0 %v1393, 24
  %v1445 = vpop.permute.xlu0 %1444
  %1446 = vrot.lane.b32.xlu0 %v1398, 24
  %v1447 = vpop.permute.xlu0 %1446
  %1448 = vrot.lane.b32.xlu0 %v1403, 24
  %v1449 = vpop.permute.xlu0 %1448
  %v1454 = vsel %vm199, %v471, %v1411
  %v1455 = vsel %vm199, %v476, %v1413
  %v1456 = vsel %vm199, %v481, %v1415
  %v1457 = vsel %vm199, %v486, %v1417
  %v1458 = vsel %vm67, %v1454, %v1427
  %v1459 = vsel %vm67, %v1455, %v1429
  %v1460 = vsel %vm67, %v1456, %v1431
  %v1461 = vsel %vm67, %v1457, %v1433
  %vm1462 = vcmask 195584
  %v1463 = vsel %vm1462, %v1458, %v1443
  %v1464 = vsel %vm1462, %v1459, %v1445
  %v1465 = vsel %vm1462, %v1460, %v1447
  %v1466 = vsel %vm1462, %v1461, %v1449
  %v1467 = vld [vmem:[%s5] sm:$0x1]
  %v1469 = vlaneseq
  %v1470 = vshrl.u32 %v1469, 7
  %v1471 = vsub.s32 0, %v1470
  %v1472 = vrot.slane %v1467, %v1471
  %v1474 = vadd.f32 %v1463, %v1472
  %v1475 = vadd.f32 %v1464, %v1472
  %v1476 = vadd.f32 %v1465, %v1472
  %v1477 = vadd.f32 %v1466, %v1472
  %v1478 = vmax.f32 %v1474, 0.0
  %v1479 = vmax.f32 %v1475, 0.0
  %v1480 = vmax.f32 %v1476, 0.0
  %v1481 = vmax.f32 %v1477, 0.0
  %v1482 = vld [vmem:[%s6] sm:$0xff]
  %v1483 = vld [vmem:[%s6 + $0x8] sm:$0xff]
  %v1484 = vld [vmem:[%s7] sm:$0xff]
  %v1485 = vld [vmem:[%s7 + $0x8] sm:$0xff]
  %v1486 = vld [vmem:[%s7 + $0x10] sm:$0xff]
  %v1487 = vld [vmem:[%s7 + $0x18] sm:$0xff]
  %vm1488 = vcmask 261120
  %v1490 = vsel %vm1488, %v1478, 0
  %v1493 = vsel %vm1488, %v1479, 0
  %v1496 = vsel %vm1488, %v1480, 0
  %v1499 = vsel %vm1488, %v1481, 0
  %1501 = vmatprep.subr.mxu0 0.0
  %1502 = vmatpush1.msra.mxu0 %v1484
  %1503 = vmatprep.subr.mxu0 0.0
  %1504 = vmatpush1.msra.mxu0 %v1485
  %1505 = vmatprep.subr.mxu0 0.0
  %1506 = vmatpush1.msra.mxu0 %v1486
  %1507 = vmatprep.subr.mxu0 0.0
  %1508 = vmatpush1.msra.mxu0 %v1487
  %1509 = vmatprep.subr.mxu0 0.0
  %1510 = vmatpush1.msra.mxu0 0.0
  %1511 = vmatprep.subr.mxu0 0.0
  %1512 = vmatpush1.msra.mxu0 0.0
  %1513 = vmatprep.subr.mxu0 0.0
  %1514 = vmatpush1.msra.mxu0 0.0
  %1515 = vmatprep.subr.mxu0 0.0
  %1516 = vmatpush1.msra.mxu0 0.0
  %1517 = vmatprep.subr.mxu0 0.0
  %1518 = vmatpush1.msra.mxu0 0.0
  %1519 = vmatprep.subr.mxu0 0.0
  %1520 = vmatpush1.msra.mxu0 0.0
  %1521 = vmatprep.subr.mxu0 0.0
  %1522 = vmatpush1.msra.mxu0 0.0
  %1523 = vmatprep.subr.mxu0 0.0
  %1524 = vmatpush1.msra.mxu0 0.0
  %1525 = vmatprep.subr.mxu0 0.0
  %1526 = vmatpush1.msra.mxu0 0.0
  %1527 = vmatprep.subr.mxu0 0.0
  %1528 = vmatpush1.msra.mxu0 0.0
  %1529 = vmatprep.subr.mxu0 0.0
  %1530 = vmatpush1.msra.mxu0 0.0
  %1531 = vmatprep.subr.mxu0 0.0
  %1532 = vmatpush1.msra.mxu0 0.0
  %1533 = vmatprep.subr.mxu0 0.0
  %1534 = vmatpush1.msra.mxu0 0.0
  %1535 = vmatprep.subr.mxu0 0.0
  %1536 = vmatpush1.msra.mxu0 0.0
  %1537 = vmatprep.subr.mxu0 0.0
  %1538 = vmatpush1.msra.mxu0 0.0
  %1539 = vmatprep.subr.mxu0 0.0
  %1540 = vmatpush1.msra.mxu0 0.0
  %1541 = vmatprep.subr.mxu0 0.0
  %1542 = vmatpush1.msra.mxu0 0.0
  %1543 = vmatprep.subr.mxu0 0.0
  %1544 = vmatpush1.msra.mxu0 0.0
  %1545 = vmatprep.subr.mxu0 0.0
  %1546 = vmatpush1.msra.mxu0 0.0
  %1547 = vmatprep.subr.mxu0 0.0
  %1548 = vmatpush1.msra.mxu0 0.0
  %1549 = vmatprep.subr.mxu0 0.0
  %1550 = vmatpush1.msra.mxu0 0.0
  %1551 = vmatprep.subr.mxu0 0.0
  %1552 = vmatpush1.msra.mxu0 0.0
  %1553 = vmatprep.subr.mxu0 0.0
  %1554 = vmatpush1.msra.mxu0 0.0
  %1555 = vmatprep.subr.mxu0 0.0
  %1556 = vmatpush1.msra.mxu0 0.0
  %1557 = vmatprep.subr.mxu0 0.0
  %1558 = vmatpush1.msra.mxu0 0.0
  %1559 = vmatprep.subr.mxu0 0.0
  %1560 = vmatpush1.msra.mxu0 0.0
  %1561 = vmatprep.subr.mxu0 0.0
  %1562 = vmatpush1.msra.mxu0 0.0
  %1563 = vmatprep.subr.mxu0 0.0
  %1564 = vmatpush1.msra.mxu0 0.0
  %1565 = vmatprep.mubr.f32.mxu0 0.0
  %1566 = vmatmul.mubr.f32.gmra.mrb[0].mxu0 %v1490
  %v1567 = vpop.f32.mrb[0].mxu0
  %v1568 = vadd.f32 0.0, %v1567
  %v1569 = vpop.f32.mrb[0].mxu0
  %1570 = vmatprep.mubr.f32.mxu0 0.0
  %1571 = vmatmul.mubr.f32.gmra.mrb[0].mxu0 %v1493
  %v1572 = vpop.f32.mrb[0].mxu0
  %v1573 = vadd.f32 0.0, %v1572
  %v1574 = vpop.f32.mrb[0].mxu0
  %1575 = vmatprep.mubr.f32.mxu0 0.0
  %1576 = vmatmul.mubr.f32.gmra.mrb[0].mxu0 %v1496
  %v1577 = vpop.f32.mrb[0].mxu0
  %v1578 = vadd.f32 0.0, %v1577
  %v1579 = vpop.f32.mrb[0].mxu0
  %1580 = vmatprep.mubr.f32.mxu0 0.0
  %1581 = vmatmul.mubr.f32.gmra.mrb[0].mxu0 %v1499
  %v1582 = vpop.f32.mrb[0].mxu0
  %v1583 = vadd.f32 0.0, %v1582
  %v1584 = vpop.f32.mrb[0].mxu0
  %1585 = vdwg.mxu0
  %v1586 = vld [vmem:[%s8] sm:$0x1]
  %v1587 = vld [vmem:[%s9] sm:$0x1]
  %v1589 = vsel %vm199, %v1586, 0
  %v1592 = vsel %vm199, %v1568, 0
  %v1595 = vsel %vm199, %v1573, 0
  %v1598 = vsel %vm199, %v1578, 0
  %v1601 = vsel %vm199, %v1583, 0
  %1603 = vmatprep.subr.mxu0 0.0
  %1604 = vmatpush1.xpose.msra.mxu0 %v1592
  %1605 = vmatprep.subr.mxu0 0.0
  %1606 = vmatpush1.xpose.msra.mxu0 %v1595
  %1607 = vmatprep.subr.mxu0 0.0
  %1608 = vmatpush1.xpose.msra.mxu0 %v1598
  %1609 = vmatprep.subr.mxu0 0.0
  %1610 = vmatpush1.xpose.msra.mxu0 %v1601
  %1611 = vmatprep.subr.mxu0 0.0
  %1612 = vmatpush1.xpose.msra.mxu0 0.0
  %1613 = vmatprep.subr.mxu0 0.0
  %1614 = vmatpush1.xpose.msra.mxu0 0.0
  %1615 = vmatprep.subr.mxu0 0.0
  %1616 = vmatpush1.xpose.msra.mxu0 0.0
  %1617 = vmatprep.subr.mxu0 0.0
  %1618 = vmatpush1.xpose.msra.mxu0 0.0
  %1619 = vmatprep.subr.mxu0 0.0
  %1620 = vmatpush1.xpose.msra.mxu0 0.0
  %1621 = vmatprep.subr.mxu0 0.0
  %1622 = vmatpush1.xpose.msra.mxu0 0.0
  %1623 = vmatprep.subr.mxu0 0.0
  %1624 = vmatpush1.xpose.msra.mxu0 0.0
  %1625 = vmatprep.subr.mxu0 0.0
  %1626 = vmatpush1.xpose.msra.mxu0 0.0
  %1627 = vmatprep.subr.mxu0 0.0
  %1628 = vmatpush1.xpose.msra.mxu0 0.0
  %1629 = vmatprep.subr.mxu0 0.0
  %1630 = vmatpush1.xpose.msra.mxu0 0.0
  %1631 = vmatprep.subr.mxu0 0.0
  %1632 = vmatpush1.xpose.msra.mxu0 0.0
  %1633 = vmatprep.subr.mxu0 0.0
  %1634 = vmatpush1.xpose.msra.mxu0 0.0
  %1635 = vmatprep.subr.mxu0 0.0
  %1636 = vmatpush1.xpose.msra.mxu0 0.0
  %1637 = vmatprep.subr.mxu0 0.0
  %1638 = vmatpush1.xpose.msra.mxu0 0.0
  %1639 = vmatprep.subr.mxu0 0.0
  %1640 = vmatpush1.xpose.msra.mxu0 0.0
  %1641 = vmatprep.subr.mxu0 0.0
  %1642 = vmatpush1.xpose.msra.mxu0 0.0
  %1643 = vmatprep.subr.mxu0 0.0
  %1644 = vmatpush1.xpose.msra.mxu0 0.0
  %1645 = vmatprep.subr.mxu0 0.0
  %1646 = vmatpush1.xpose.msra.mxu0 0.0
  %1647 = vmatprep.subr.mxu0 0.0
  %1648 = vmatpush1.xpose.msra.mxu0 0.0
  %1649 = vmatprep.subr.mxu0 0.0
  %1650 = vmatpush1.xpose.msra.mxu0 0.0
  %1651 = vmatprep.subr.mxu0 0.0
  %1652 = vmatpush1.xpose.msra.mxu0 0.0
  %1653 = vmatprep.subr.mxu0 0.0
  %1654 = vmatpush1.xpose.msra.mxu0 0.0
  %1655 = vmatprep.subr.mxu0 0.0
  %1656 = vmatpush1.xpose.msra.mxu0 0.0
  %1657 = vmatprep.subr.mxu0 0.0
  %1658 = vmatpush1.xpose.msra.mxu0 0.0
  %1659 = vmatprep.subr.mxu0 0.0
  %1660 = vmatpush1.xpose.msra.mxu0 0.0
  %1661 = vmatprep.subr.mxu0 0.0
  %1662 = vmatpush1.xpose.msra.mxu0 0.0
  %1663 = vmatprep.subr.mxu0 0.0
  %1664 = vmatpush1.xpose.msra.mxu0 0.0
  %1665 = vmatprep.subr.mxu0 0.0
  %1666 = vmatpush1.xpose.msra.mxu0 0.0
  %1667 = vmatprep.mubr.f32.mxu0 0.0
  %1668 = vmatmul.mubr.f32.gmra.mrb[0].mxu0 %v1589
  %v1669 = vpop.f32.mrb[0].mxu0
  %v1670 = vadd.f32 0.0, %v1669
  %v1671 = vpop.f32.mrb[0].mxu0
  %1672 = vdwg.mxu0
  %v1674 = vlaneseq
  %v1675 = vshrl.u32 %v1674, 7
  %v1676 = vsub.s32 0, %v1675
  %v1677 = vrot.slane %v1587, %v1676
  %v1679 = vmul.f32 %v1568, %v1677
  %v1680 = vmul.f32 %v1573, %v1677
  %v1681 = vsel %vm199, %v1679, 0.0
  %1682 = vadd.xlane.f32.xlu0 %v1681
  %v1683 = vpop.xlane.xlu0 %1682
  %v1684 = vsel %vm199, %v1680, 0.0
  %1685 = vadd.xlane.f32.xlu0 %v1684
  %v1686 = vpop.xlane.xlu0 %1685
  %v1687 = vlaneseq
  %v1688 = vshrl.u32 %v1687, 7
  %v1689 = vsub.s32 0, %v1688
  %v1690 = vrot.slane %v1670, %v1689
  %v1691 = vadd.f32 %v1683, %v1690
  %v1692 = vadd.f32 %v1686, %v1690
  %vm1693 = vcmp.gt.f32.partialorder %v1691, 0.0
  %vm1694 = vcmp.gt.f32.partialorder %v1692, 0.0
  %v1695 = vmul.f32 %v1691, 0.2
  %v1696 = vmul.f32 %v1692, 0.2
  %v1697 = vsel %vm1693, %v1691, %v1695
  %v1698 = vsel %vm1694, %v1692, %v1696
  %vm1699 = vcmp.gt.f32.partialorder %v1482, 0.0
  %vm1700 = vcmp.gt.f32.partialorder %v1483, 0.0
  %v1701 = vsel %vm1699, %v1697, -1e+30
  %v1702 = vsel %vm1700, %v1698, -1e+30
  %v1703 = vsel %vm1488, %v1701, -inf
  %1704 = vmax.xlane.f32.xlu0 %v1703
  %v1705 = vpop.xlane.xlu0 %1704
  %v1706 = vsel %vm1488, %v1702, -inf
  %1707 = vmax.xlane.f32.xlu0 %v1706
  %v1708 = vpop.xlane.xlu0 %1707
  %v1709 = vsub.f32 %v1701, %v1705
  %v1710 = vsub.f32 %v1702, %v1708
  %v1711 = vmul.f32 %v1709, 1.442695
  %v1712 = vpow.pop %v1711
  %v1713 = vmul.f32 %v1710, 1.442695
  %v1714 = vpow.pop %v1713
  %v1715 = vsel %vm1488, %v1712, 0.0
  %1716 = vadd.xlane.f32.xlu0 %v1715
  %v1717 = vpop.xlane.xlu0 %1716
  %v1718 = vsel %vm1488, %v1714, 0.0
  %1719 = vadd.xlane.f32.xlu0 %v1718
  %v1720 = vpop.xlane.xlu0 %1719
  %v1721 = vrcp.pop %v1717
  %v1722 = vrcp.pop %v1720
  %v1723 = vmul.f32 %v1712, %v1721
  %v1724 = vmul.f32 %v1714, %v1722
  %v1726 = vsel %vm1488, %v1723, 0
  %v1729 = vsel %vm1488, %v1724, 0
  %1731 = vmatprep.subr.mxu0 0.0
  %1732 = vmatpush1.msra.mxu0 %v1568
  %1733 = vmatprep.subr.mxu0 0.0
  %1734 = vmatpush1.msra.mxu0 %v1573
  %1735 = vmatprep.subr.mxu0 0.0
  %1736 = vmatpush1.msra.mxu0 %v1578
  %1737 = vmatprep.subr.mxu0 0.0
  %1738 = vmatpush1.msra.mxu0 %v1583
  %1739 = vmatprep.subr.mxu0 0.0
  %1740 = vmatpush1.msra.mxu0 0.0
  %1741 = vmatprep.subr.mxu0 0.0
  %1742 = vmatpush1.msra.mxu0 0.0
  %1743 = vmatprep.subr.mxu0 0.0
  %1744 = vmatpush1.msra.mxu0 0.0
  %1745 = vmatprep.subr.mxu0 0.0
  %1746 = vmatpush1.msra.mxu0 0.0
  %1747 = vmatprep.subr.mxu0 0.0
  %1748 = vmatpush1.msra.mxu0 0.0
  %1749 = vmatprep.subr.mxu0 0.0
  %1750 = vmatpush1.msra.mxu0 0.0
  %1751 = vmatprep.subr.mxu0 0.0
  %1752 = vmatpush1.msra.mxu0 0.0
  %1753 = vmatprep.subr.mxu0 0.0
  %1754 = vmatpush1.msra.mxu0 0.0
  %1755 = vmatprep.subr.mxu0 0.0
  %1756 = vmatpush1.msra.mxu0 0.0
  %1757 = vmatprep.subr.mxu0 0.0
  %1758 = vmatpush1.msra.mxu0 0.0
  %1759 = vmatprep.subr.mxu0 0.0
  %1760 = vmatpush1.msra.mxu0 0.0
  %1761 = vmatprep.subr.mxu0 0.0
  %1762 = vmatpush1.msra.mxu0 0.0
  %1763 = vmatprep.subr.mxu0 0.0
  %1764 = vmatpush1.msra.mxu0 0.0
  %1765 = vmatprep.subr.mxu0 0.0
  %1766 = vmatpush1.msra.mxu0 0.0
  %1767 = vmatprep.subr.mxu0 0.0
  %1768 = vmatpush1.msra.mxu0 0.0
  %1769 = vmatprep.subr.mxu0 0.0
  %1770 = vmatpush1.msra.mxu0 0.0
  %1771 = vmatprep.subr.mxu0 0.0
  %1772 = vmatpush1.msra.mxu0 0.0
  %1773 = vmatprep.subr.mxu0 0.0
  %1774 = vmatpush1.msra.mxu0 0.0
  %1775 = vmatprep.subr.mxu0 0.0
  %1776 = vmatpush1.msra.mxu0 0.0
  %1777 = vmatprep.subr.mxu0 0.0
  %1778 = vmatpush1.msra.mxu0 0.0
  %1779 = vmatprep.subr.mxu0 0.0
  %1780 = vmatpush1.msra.mxu0 0.0
  %1781 = vmatprep.subr.mxu0 0.0
  %1782 = vmatpush1.msra.mxu0 0.0
  %1783 = vmatprep.subr.mxu0 0.0
  %1784 = vmatpush1.msra.mxu0 0.0
  %1785 = vmatprep.subr.mxu0 0.0
  %1786 = vmatpush1.msra.mxu0 0.0
  %1787 = vmatprep.subr.mxu0 0.0
  %1788 = vmatpush1.msra.mxu0 0.0
  %1789 = vmatprep.subr.mxu0 0.0
  %1790 = vmatpush1.msra.mxu0 0.0
  %1791 = vmatprep.subr.mxu0 0.0
  %1792 = vmatpush1.msra.mxu0 0.0
  %1793 = vmatprep.subr.mxu0 0.0
  %1794 = vmatpush1.msra.mxu0 0.0
  %1795 = vmatprep.mubr.f32.mxu0 0.0
  %1796 = vmatmul.mubr.f32.gmra.mrb[0].mxu0 %v1726
  %v1797 = vpop.f32.mrb[0].mxu0
  %v1798 = vadd.f32 0.0, %v1797
  %v1799 = vpop.f32.mrb[0].mxu0
  %1800 = vmatprep.mubr.f32.mxu0 0.0
  %1801 = vmatmul.mubr.f32.gmra.mrb[0].mxu0 %v1729
  %v1802 = vpop.f32.mrb[0].mxu0
  %v1803 = vadd.f32 0.0, %v1802
  %v1804 = vpop.f32.mrb[0].mxu0
  %1805 = vdwg.mxu0
  %v1806 = vlaneseq
  %v1807 = vshrl.u32 %v1806, 7
  %v1808 = vsub.s32 0, %v1807
  %v1809 = vrot.slane %v1586, %v1808
  %1810 = vrot.lane.b32.xlu0 %v1809, 120
  %v1811 = vpop.permute.xlu0 %1810
  %1812 = vrot.lane.b32.xlu0 %v1568, 120
  %v1813 = vpop.permute.xlu0 %1812
  %1814 = vrot.lane.b32.xlu0 %v1573, 120
  %v1815 = vpop.permute.xlu0 %1814
  %1816 = vrot.lane.b32.xlu0 %v1578, 120
  %v1817 = vpop.permute.xlu0 %1816
  %1818 = vrot.lane.b32.xlu0 %v1583, 120
  %v1819 = vpop.permute.xlu0 %1818
  %v1820 = vsel %vm199, %v1811, 0
  %v1822 = vsel %vm199, %v1813, 0
  %v1824 = vsel %vm199, %v1815, 0
  %v1826 = vsel %vm199, %v1817, 0
  %v1828 = vsel %vm199, %v1819, 0
  %1830 = vmatprep.subr.mxu0 0.0
  %1831 = vmatpush1.xpose.msra.mxu0 %v1822
  %1832 = vmatprep.subr.mxu0 0.0
  %1833 = vmatpush1.xpose.msra.mxu0 %v1824
  %1834 = vmatprep.subr.mxu0 0.0
  %1835 = vmatpush1.xpose.msra.mxu0 %v1826
  %1836 = vmatprep.subr.mxu0 0.0
  %1837 = vmatpush1.xpose.msra.mxu0 %v1828
  %1838 = vmatprep.subr.mxu0 0.0
  %1839 = vmatpush1.xpose.msra.mxu0 0.0
  %1840 = vmatprep.subr.mxu0 0.0
  %1841 = vmatpush1.xpose.msra.mxu0 0.0
  %1842 = vmatprep.subr.mxu0 0.0
  %1843 = vmatpush1.xpose.msra.mxu0 0.0
  %1844 = vmatprep.subr.mxu0 0.0
  %1845 = vmatpush1.xpose.msra.mxu0 0.0
  %1846 = vmatprep.subr.mxu0 0.0
  %1847 = vmatpush1.xpose.msra.mxu0 0.0
  %1848 = vmatprep.subr.mxu0 0.0
  %1849 = vmatpush1.xpose.msra.mxu0 0.0
  %1850 = vmatprep.subr.mxu0 0.0
  %1851 = vmatpush1.xpose.msra.mxu0 0.0
  %1852 = vmatprep.subr.mxu0 0.0
  %1853 = vmatpush1.xpose.msra.mxu0 0.0
  %1854 = vmatprep.subr.mxu0 0.0
  %1855 = vmatpush1.xpose.msra.mxu0 0.0
  %1856 = vmatprep.subr.mxu0 0.0
  %1857 = vmatpush1.xpose.msra.mxu0 0.0
  %1858 = vmatprep.subr.mxu0 0.0
  %1859 = vmatpush1.xpose.msra.mxu0 0.0
  %1860 = vmatprep.subr.mxu0 0.0
  %1861 = vmatpush1.xpose.msra.mxu0 0.0
  %1862 = vmatprep.subr.mxu0 0.0
  %1863 = vmatpush1.xpose.msra.mxu0 0.0
  %1864 = vmatprep.subr.mxu0 0.0
  %1865 = vmatpush1.xpose.msra.mxu0 0.0
  %1866 = vmatprep.subr.mxu0 0.0
  %1867 = vmatpush1.xpose.msra.mxu0 0.0
  %1868 = vmatprep.subr.mxu0 0.0
  %1869 = vmatpush1.xpose.msra.mxu0 0.0
  %1870 = vmatprep.subr.mxu0 0.0
  %1871 = vmatpush1.xpose.msra.mxu0 0.0
  %1872 = vmatprep.subr.mxu0 0.0
  %1873 = vmatpush1.xpose.msra.mxu0 0.0
  %1874 = vmatprep.subr.mxu0 0.0
  %1875 = vmatpush1.xpose.msra.mxu0 0.0
  %1876 = vmatprep.subr.mxu0 0.0
  %1877 = vmatpush1.xpose.msra.mxu0 0.0
  %1878 = vmatprep.subr.mxu0 0.0
  %1879 = vmatpush1.xpose.msra.mxu0 0.0
  %1880 = vmatprep.subr.mxu0 0.0
  %1881 = vmatpush1.xpose.msra.mxu0 0.0
  %1882 = vmatprep.subr.mxu0 0.0
  %1883 = vmatpush1.xpose.msra.mxu0 0.0
  %1884 = vmatprep.subr.mxu0 0.0
  %1885 = vmatpush1.xpose.msra.mxu0 0.0
  %1886 = vmatprep.subr.mxu0 0.0
  %1887 = vmatpush1.xpose.msra.mxu0 0.0
  %1888 = vmatprep.subr.mxu0 0.0
  %1889 = vmatpush1.xpose.msra.mxu0 0.0
  %1890 = vmatprep.subr.mxu0 0.0
  %1891 = vmatpush1.xpose.msra.mxu0 0.0
  %1892 = vmatprep.subr.mxu0 0.0
  %1893 = vmatpush1.xpose.msra.mxu0 0.0
  %1894 = vmatprep.mubr.f32.mxu0 0.0
  %1895 = vmatmul.mubr.f32.gmra.mrb[0].mxu0 %v1820
  %v1896 = vpop.f32.mrb[0].mxu0
  %v1897 = vadd.f32 0.0, %v1896
  %v1898 = vpop.f32.mrb[0].mxu0
  %1899 = vdwg.mxu0
  %1902 = vrot.lane.b32.xlu0 %v1679, 120
  %v1903 = vpop.permute.xlu0 %1902
  %1904 = vrot.lane.b32.xlu0 %v1680, 120
  %v1905 = vpop.permute.xlu0 %1904
  %v1908 = vsel %vm199, %v1903, 0.0
  %1909 = vadd.xlane.f32.xlu0 %v1908
  %v1910 = vpop.xlane.xlu0 %1909
  %v1911 = vsel %vm199, %v1905, 0.0
  %1912 = vadd.xlane.f32.xlu0 %v1911
  %v1913 = vpop.xlane.xlu0 %1912
  %v1914 = vlaneseq
  %v1915 = vshrl.u32 %v1914, 7
  %v1916 = vsub.s32 0, %v1915
  %v1917 = vrot.slane %v1897, %v1916
  %v1918 = vadd.f32 %v1910, %v1917
  %v1919 = vadd.f32 %v1913, %v1917
  %vm1920 = vcmp.gt.f32.partialorder %v1918, 0.0
  %vm1921 = vcmp.gt.f32.partialorder %v1919, 0.0
  %v1922 = vmul.f32 %v1918, 0.2
  %v1923 = vmul.f32 %v1919, 0.2
  %v1924 = vsel %vm1920, %v1918, %v1922
  %v1925 = vsel %vm1921, %v1919, %v1923
  %v1926 = vsel %vm1699, %v1924, -1e+30
  %v1927 = vsel %vm1700, %v1925, -1e+30
  %v1928 = vsel %vm1488, %v1926, -inf
  %1929 = vmax.xlane.f32.xlu0 %v1928
  %v1930 = vpop.xlane.xlu0 %1929
  %v1931 = vsel %vm1488, %v1927, -inf
  %1932 = vmax.xlane.f32.xlu0 %v1931
  %v1933 = vpop.xlane.xlu0 %1932
  %v1934 = vsub.f32 %v1926, %v1930
  %v1935 = vsub.f32 %v1927, %v1933
  %v1936 = vmul.f32 %v1934, 1.442695
  %v1937 = vpow.pop %v1936
  %v1938 = vmul.f32 %v1935, 1.442695
  %v1939 = vpow.pop %v1938
  %v1940 = vsel %vm1488, %v1937, 0.0
  %1941 = vadd.xlane.f32.xlu0 %v1940
  %v1942 = vpop.xlane.xlu0 %1941
  %v1943 = vsel %vm1488, %v1939, 0.0
  %1944 = vadd.xlane.f32.xlu0 %v1943
  %v1945 = vpop.xlane.xlu0 %1944
  %v1946 = vrcp.pop %v1942
  %v1947 = vrcp.pop %v1945
  %v1948 = vmul.f32 %v1937, %v1946
  %v1949 = vmul.f32 %v1939, %v1947
  %v1955 = vsel %vm1488, %v1948, 0
  %v1958 = vsel %vm1488, %v1949, 0
  %1960 = vmatprep.subr.mxu0 0.0
  %1961 = vmatpush1.msra.mxu0 %v1813
  %1962 = vmatprep.subr.mxu0 0.0
  %1963 = vmatpush1.msra.mxu0 %v1815
  %1964 = vmatprep.subr.mxu0 0.0
  %1965 = vmatpush1.msra.mxu0 %v1817
  %1966 = vmatprep.subr.mxu0 0.0
  %1967 = vmatpush1.msra.mxu0 %v1819
  %1968 = vmatprep.subr.mxu0 0.0
  %1969 = vmatpush1.msra.mxu0 0.0
  %1970 = vmatprep.subr.mxu0 0.0
  %1971 = vmatpush1.msra.mxu0 0.0
  %1972 = vmatprep.subr.mxu0 0.0
  %1973 = vmatpush1.msra.mxu0 0.0
  %1974 = vmatprep.subr.mxu0 0.0
  %1975 = vmatpush1.msra.mxu0 0.0
  %1976 = vmatprep.subr.mxu0 0.0
  %1977 = vmatpush1.msra.mxu0 0.0
  %1978 = vmatprep.subr.mxu0 0.0
  %1979 = vmatpush1.msra.mxu0 0.0
  %1980 = vmatprep.subr.mxu0 0.0
  %1981 = vmatpush1.msra.mxu0 0.0
  %1982 = vmatprep.subr.mxu0 0.0
  %1983 = vmatpush1.msra.mxu0 0.0
  %1984 = vmatprep.subr.mxu0 0.0
  %1985 = vmatpush1.msra.mxu0 0.0
  %1986 = vmatprep.subr.mxu0 0.0
  %1987 = vmatpush1.msra.mxu0 0.0
  %1988 = vmatprep.subr.mxu0 0.0
  %1989 = vmatpush1.msra.mxu0 0.0
  %1990 = vmatprep.subr.mxu0 0.0
  %1991 = vmatpush1.msra.mxu0 0.0
  %1992 = vmatprep.subr.mxu0 0.0
  %1993 = vmatpush1.msra.mxu0 0.0
  %1994 = vmatprep.subr.mxu0 0.0
  %1995 = vmatpush1.msra.mxu0 0.0
  %1996 = vmatprep.subr.mxu0 0.0
  %1997 = vmatpush1.msra.mxu0 0.0
  %1998 = vmatprep.subr.mxu0 0.0
  %1999 = vmatpush1.msra.mxu0 0.0
  %2000 = vmatprep.subr.mxu0 0.0
  %2001 = vmatpush1.msra.mxu0 0.0
  %2002 = vmatprep.subr.mxu0 0.0
  %2003 = vmatpush1.msra.mxu0 0.0
  %2004 = vmatprep.subr.mxu0 0.0
  %2005 = vmatpush1.msra.mxu0 0.0
  %2006 = vmatprep.subr.mxu0 0.0
  %2007 = vmatpush1.msra.mxu0 0.0
  %2008 = vmatprep.subr.mxu0 0.0
  %2009 = vmatpush1.msra.mxu0 0.0
  %2010 = vmatprep.subr.mxu0 0.0
  %2011 = vmatpush1.msra.mxu0 0.0
  %2012 = vmatprep.subr.mxu0 0.0
  %2013 = vmatpush1.msra.mxu0 0.0
  %2014 = vmatprep.subr.mxu0 0.0
  %2015 = vmatpush1.msra.mxu0 0.0
  %2016 = vmatprep.subr.mxu0 0.0
  %2017 = vmatpush1.msra.mxu0 0.0
  %2018 = vmatprep.subr.mxu0 0.0
  %2019 = vmatpush1.msra.mxu0 0.0
  %2020 = vmatprep.subr.mxu0 0.0
  %2021 = vmatpush1.msra.mxu0 0.0
  %2022 = vmatprep.subr.mxu0 0.0
  %2023 = vmatpush1.msra.mxu0 0.0
  %2024 = vmatprep.mubr.f32.mxu0 0.0
  %2025 = vmatmul.mubr.f32.gmra.mrb[0].mxu0 %v1955
  %v2026 = vpop.f32.mrb[0].mxu0
  %v2027 = vadd.f32 0.0, %v2026
  %v2028 = vpop.f32.mrb[0].mxu0
  %2029 = vmatprep.mubr.f32.mxu0 0.0
  %2030 = vmatmul.mubr.f32.gmra.mrb[0].mxu0 %v1958
  %v2031 = vpop.f32.mrb[0].mxu0
  %v2032 = vadd.f32 0.0, %v2031
  %v2033 = vpop.f32.mrb[0].mxu0
  %2034 = vdwg.mxu0
  %2035 = vrot.lane.b32.xlu0 %v1809, 112
  %v2036 = vpop.permute.xlu0 %2035
  %2037 = vrot.lane.b32.xlu0 %v1568, 112
  %v2038 = vpop.permute.xlu0 %2037
  %2039 = vrot.lane.b32.xlu0 %v1573, 112
  %v2040 = vpop.permute.xlu0 %2039
  %2041 = vrot.lane.b32.xlu0 %v1578, 112
  %v2042 = vpop.permute.xlu0 %2041
  %2043 = vrot.lane.b32.xlu0 %v1583, 112
  %v2044 = vpop.permute.xlu0 %2043
  %v2045 = vsel %vm199, %v2036, 0
  %v2047 = vsel %vm199, %v2038, 0
  %v2049 = vsel %vm199, %v2040, 0
  %v2051 = vsel %vm199, %v2042, 0
  %v2053 = vsel %vm199, %v2044, 0
  %2055 = vmatprep.subr.mxu0 0.0
  %2056 = vmatpush1.xpose.msra.mxu0 %v2047
  %2057 = vmatprep.subr.mxu0 0.0
  %2058 = vmatpush1.xpose.msra.mxu0 %v2049
  %2059 = vmatprep.subr.mxu0 0.0
  %2060 = vmatpush1.xpose.msra.mxu0 %v2051
  %2061 = vmatprep.subr.mxu0 0.0
  %2062 = vmatpush1.xpose.msra.mxu0 %v2053
  %2063 = vmatprep.subr.mxu0 0.0
  %2064 = vmatpush1.xpose.msra.mxu0 0.0
  %2065 = vmatprep.subr.mxu0 0.0
  %2066 = vmatpush1.xpose.msra.mxu0 0.0
  %2067 = vmatprep.subr.mxu0 0.0
  %2068 = vmatpush1.xpose.msra.mxu0 0.0
  %2069 = vmatprep.subr.mxu0 0.0
  %2070 = vmatpush1.xpose.msra.mxu0 0.0
  %2071 = vmatprep.subr.mxu0 0.0
  %2072 = vmatpush1.xpose.msra.mxu0 0.0
  %2073 = vmatprep.subr.mxu0 0.0
  %2074 = vmatpush1.xpose.msra.mxu0 0.0
  %2075 = vmatprep.subr.mxu0 0.0
  %2076 = vmatpush1.xpose.msra.mxu0 0.0
  %2077 = vmatprep.subr.mxu0 0.0
  %2078 = vmatpush1.xpose.msra.mxu0 0.0
  %2079 = vmatprep.subr.mxu0 0.0
  %2080 = vmatpush1.xpose.msra.mxu0 0.0
  %2081 = vmatprep.subr.mxu0 0.0
  %2082 = vmatpush1.xpose.msra.mxu0 0.0
  %2083 = vmatprep.subr.mxu0 0.0
  %2084 = vmatpush1.xpose.msra.mxu0 0.0
  %2085 = vmatprep.subr.mxu0 0.0
  %2086 = vmatpush1.xpose.msra.mxu0 0.0
  %2087 = vmatprep.subr.mxu0 0.0
  %2088 = vmatpush1.xpose.msra.mxu0 0.0
  %2089 = vmatprep.subr.mxu0 0.0
  %2090 = vmatpush1.xpose.msra.mxu0 0.0
  %2091 = vmatprep.subr.mxu0 0.0
  %2092 = vmatpush1.xpose.msra.mxu0 0.0
  %2093 = vmatprep.subr.mxu0 0.0
  %2094 = vmatpush1.xpose.msra.mxu0 0.0
  %2095 = vmatprep.subr.mxu0 0.0
  %2096 = vmatpush1.xpose.msra.mxu0 0.0
  %2097 = vmatprep.subr.mxu0 0.0
  %2098 = vmatpush1.xpose.msra.mxu0 0.0
  %2099 = vmatprep.subr.mxu0 0.0
  %2100 = vmatpush1.xpose.msra.mxu0 0.0
  %2101 = vmatprep.subr.mxu0 0.0
  %2102 = vmatpush1.xpose.msra.mxu0 0.0
  %2103 = vmatprep.subr.mxu0 0.0
  %2104 = vmatpush1.xpose.msra.mxu0 0.0
  %2105 = vmatprep.subr.mxu0 0.0
  %2106 = vmatpush1.xpose.msra.mxu0 0.0
  %2107 = vmatprep.subr.mxu0 0.0
  %2108 = vmatpush1.xpose.msra.mxu0 0.0
  %2109 = vmatprep.subr.mxu0 0.0
  %2110 = vmatpush1.xpose.msra.mxu0 0.0
  %2111 = vmatprep.subr.mxu0 0.0
  %2112 = vmatpush1.xpose.msra.mxu0 0.0
  %2113 = vmatprep.subr.mxu0 0.0
  %2114 = vmatpush1.xpose.msra.mxu0 0.0
  %2115 = vmatprep.subr.mxu0 0.0
  %2116 = vmatpush1.xpose.msra.mxu0 0.0
  %2117 = vmatprep.subr.mxu0 0.0
  %2118 = vmatpush1.xpose.msra.mxu0 0.0
  %2119 = vmatprep.mubr.f32.mxu0 0.0
  %2120 = vmatmul.mubr.f32.gmra.mrb[0].mxu0 %v2045
  %v2121 = vpop.f32.mrb[0].mxu0
  %v2122 = vadd.f32 0.0, %v2121
  %v2123 = vpop.f32.mrb[0].mxu0
  %2124 = vdwg.mxu0
  %2125 = vrot.lane.b32.xlu0 %v1679, 112
  %v2126 = vpop.permute.xlu0 %2125
  %2127 = vrot.lane.b32.xlu0 %v1680, 112
  %v2128 = vpop.permute.xlu0 %2127
  %v2131 = vsel %vm199, %v2126, 0.0
  %2132 = vadd.xlane.f32.xlu0 %v2131
  %v2133 = vpop.xlane.xlu0 %2132
  %v2134 = vsel %vm199, %v2128, 0.0
  %2135 = vadd.xlane.f32.xlu0 %v2134
  %v2136 = vpop.xlane.xlu0 %2135
  %v2137 = vlaneseq
  %v2138 = vshrl.u32 %v2137, 7
  %v2139 = vsub.s32 0, %v2138
  %v2140 = vrot.slane %v2122, %v2139
  %v2141 = vadd.f32 %v2133, %v2140
  %v2142 = vadd.f32 %v2136, %v2140
  %vm2143 = vcmp.gt.f32.partialorder %v2141, 0.0
  %vm2144 = vcmp.gt.f32.partialorder %v2142, 0.0
  %v2145 = vmul.f32 %v2141, 0.2
  %v2146 = vmul.f32 %v2142, 0.2
  %v2147 = vsel %vm2143, %v2141, %v2145
  %v2148 = vsel %vm2144, %v2142, %v2146
  %v2149 = vsel %vm1699, %v2147, -1e+30
  %v2150 = vsel %vm1700, %v2148, -1e+30
  %v2151 = vsel %vm1488, %v2149, -inf
  %2152 = vmax.xlane.f32.xlu0 %v2151
  %v2153 = vpop.xlane.xlu0 %2152
  %v2154 = vsel %vm1488, %v2150, -inf
  %2155 = vmax.xlane.f32.xlu0 %v2154
  %v2156 = vpop.xlane.xlu0 %2155
  %v2157 = vsub.f32 %v2149, %v2153
  %v2158 = vsub.f32 %v2150, %v2156
  %v2159 = vmul.f32 %v2157, 1.442695
  %v2160 = vpow.pop %v2159
  %v2161 = vmul.f32 %v2158, 1.442695
  %v2162 = vpow.pop %v2161
  %v2163 = vsel %vm1488, %v2160, 0.0
  %2164 = vadd.xlane.f32.xlu0 %v2163
  %v2165 = vpop.xlane.xlu0 %2164
  %v2166 = vsel %vm1488, %v2162, 0.0
  %2167 = vadd.xlane.f32.xlu0 %v2166
  %v2168 = vpop.xlane.xlu0 %2167
  %v2169 = vrcp.pop %v2165
  %v2170 = vrcp.pop %v2168
  %v2171 = vmul.f32 %v2160, %v2169
  %v2172 = vmul.f32 %v2162, %v2170
  %v2178 = vsel %vm1488, %v2171, 0
  %v2181 = vsel %vm1488, %v2172, 0
  %2183 = vmatprep.subr.mxu0 0.0
  %2184 = vmatpush1.msra.mxu0 %v2038
  %2185 = vmatprep.subr.mxu0 0.0
  %2186 = vmatpush1.msra.mxu0 %v2040
  %2187 = vmatprep.subr.mxu0 0.0
  %2188 = vmatpush1.msra.mxu0 %v2042
  %2189 = vmatprep.subr.mxu0 0.0
  %2190 = vmatpush1.msra.mxu0 %v2044
  %2191 = vmatprep.subr.mxu0 0.0
  %2192 = vmatpush1.msra.mxu0 0.0
  %2193 = vmatprep.subr.mxu0 0.0
  %2194 = vmatpush1.msra.mxu0 0.0
  %2195 = vmatprep.subr.mxu0 0.0
  %2196 = vmatpush1.msra.mxu0 0.0
  %2197 = vmatprep.subr.mxu0 0.0
  %2198 = vmatpush1.msra.mxu0 0.0
  %2199 = vmatprep.subr.mxu0 0.0
  %2200 = vmatpush1.msra.mxu0 0.0
  %2201 = vmatprep.subr.mxu0 0.0
  %2202 = vmatpush1.msra.mxu0 0.0
  %2203 = vmatprep.subr.mxu0 0.0
  %2204 = vmatpush1.msra.mxu0 0.0
  %2205 = vmatprep.subr.mxu0 0.0
  %2206 = vmatpush1.msra.mxu0 0.0
  %2207 = vmatprep.subr.mxu0 0.0
  %2208 = vmatpush1.msra.mxu0 0.0
  %2209 = vmatprep.subr.mxu0 0.0
  %2210 = vmatpush1.msra.mxu0 0.0
  %2211 = vmatprep.subr.mxu0 0.0
  %2212 = vmatpush1.msra.mxu0 0.0
  %2213 = vmatprep.subr.mxu0 0.0
  %2214 = vmatpush1.msra.mxu0 0.0
  %2215 = vmatprep.subr.mxu0 0.0
  %2216 = vmatpush1.msra.mxu0 0.0
  %2217 = vmatprep.subr.mxu0 0.0
  %2218 = vmatpush1.msra.mxu0 0.0
  %2219 = vmatprep.subr.mxu0 0.0
  %2220 = vmatpush1.msra.mxu0 0.0
  %2221 = vmatprep.subr.mxu0 0.0
  %2222 = vmatpush1.msra.mxu0 0.0
  %2223 = vmatprep.subr.mxu0 0.0
  %2224 = vmatpush1.msra.mxu0 0.0
  %2225 = vmatprep.subr.mxu0 0.0
  %2226 = vmatpush1.msra.mxu0 0.0
  %2227 = vmatprep.subr.mxu0 0.0
  %2228 = vmatpush1.msra.mxu0 0.0
  %2229 = vmatprep.subr.mxu0 0.0
  %2230 = vmatpush1.msra.mxu0 0.0
  %2231 = vmatprep.subr.mxu0 0.0
  %2232 = vmatpush1.msra.mxu0 0.0
  %2233 = vmatprep.subr.mxu0 0.0
  %2234 = vmatpush1.msra.mxu0 0.0
  %2235 = vmatprep.subr.mxu0 0.0
  %2236 = vmatpush1.msra.mxu0 0.0
  %2237 = vmatprep.subr.mxu0 0.0
  %2238 = vmatpush1.msra.mxu0 0.0
  %2239 = vmatprep.subr.mxu0 0.0
  %2240 = vmatpush1.msra.mxu0 0.0
  %2241 = vmatprep.subr.mxu0 0.0
  %2242 = vmatpush1.msra.mxu0 0.0
  %2243 = vmatprep.subr.mxu0 0.0
  %2244 = vmatpush1.msra.mxu0 0.0
  %2245 = vmatprep.subr.mxu0 0.0
  %2246 = vmatpush1.msra.mxu0 0.0
  %2247 = vmatprep.mubr.f32.mxu0 0.0
  %2248 = vmatmul.mubr.f32.gmra.mrb[0].mxu0 %v2178
  %v2249 = vpop.f32.mrb[0].mxu0
  %v2250 = vadd.f32 0.0, %v2249
  %v2251 = vpop.f32.mrb[0].mxu0
  %2252 = vmatprep.mubr.f32.mxu0 0.0
  %2253 = vmatmul.mubr.f32.gmra.mrb[0].mxu0 %v2181
  %v2254 = vpop.f32.mrb[0].mxu0
  %v2255 = vadd.f32 0.0, %v2254
  %v2256 = vpop.f32.mrb[0].mxu0
  %2257 = vdwg.mxu0
  %2258 = vrot.lane.b32.xlu0 %v1809, 104
  %v2259 = vpop.permute.xlu0 %2258
  %2260 = vrot.lane.b32.xlu0 %v1568, 104
  %v2261 = vpop.permute.xlu0 %2260
  %2262 = vrot.lane.b32.xlu0 %v1573, 104
  %v2263 = vpop.permute.xlu0 %2262
  %2264 = vrot.lane.b32.xlu0 %v1578, 104
  %v2265 = vpop.permute.xlu0 %2264
  %2266 = vrot.lane.b32.xlu0 %v1583, 104
  %v2267 = vpop.permute.xlu0 %2266
  %v2268 = vsel %vm199, %v2259, 0
  %v2270 = vsel %vm199, %v2261, 0
  %v2272 = vsel %vm199, %v2263, 0
  %v2274 = vsel %vm199, %v2265, 0
  %v2276 = vsel %vm199, %v2267, 0
  %2278 = vmatprep.subr.mxu0 0.0
  %2279 = vmatpush1.xpose.msra.mxu0 %v2270
  %2280 = vmatprep.subr.mxu0 0.0
  %2281 = vmatpush1.xpose.msra.mxu0 %v2272
  %2282 = vmatprep.subr.mxu0 0.0
  %2283 = vmatpush1.xpose.msra.mxu0 %v2274
  %2284 = vmatprep.subr.mxu0 0.0
  %2285 = vmatpush1.xpose.msra.mxu0 %v2276
  %2286 = vmatprep.subr.mxu0 0.0
  %2287 = vmatpush1.xpose.msra.mxu0 0.0
  %2288 = vmatprep.subr.mxu0 0.0
  %2289 = vmatpush1.xpose.msra.mxu0 0.0
  %2290 = vmatprep.subr.mxu0 0.0
  %2291 = vmatpush1.xpose.msra.mxu0 0.0
  %2292 = vmatprep.subr.mxu0 0.0
  %2293 = vmatpush1.xpose.msra.mxu0 0.0
  %2294 = vmatprep.subr.mxu0 0.0
  %2295 = vmatpush1.xpose.msra.mxu0 0.0
  %2296 = vmatprep.subr.mxu0 0.0
  %2297 = vmatpush1.xpose.msra.mxu0 0.0
  %2298 = vmatprep.subr.mxu0 0.0
  %2299 = vmatpush1.xpose.msra.mxu0 0.0
  %2300 = vmatprep.subr.mxu0 0.0
  %2301 = vmatpush1.xpose.msra.mxu0 0.0
  %2302 = vmatprep.subr.mxu0 0.0
  %2303 = vmatpush1.xpose.msra.mxu0 0.0
  %2304 = vmatprep.subr.mxu0 0.0
  %2305 = vmatpush1.xpose.msra.mxu0 0.0
  %2306 = vmatprep.subr.mxu0 0.0
  %2307 = vmatpush1.xpose.msra.mxu0 0.0
  %2308 = vmatprep.subr.mxu0 0.0
  %2309 = vmatpush1.xpose.msra.mxu0 0.0
  %2310 = vmatprep.subr.mxu0 0.0
  %2311 = vmatpush1.xpose.msra.mxu0 0.0
  %2312 = vmatprep.subr.mxu0 0.0
  %2313 = vmatpush1.xpose.msra.mxu0 0.0
  %2314 = vmatprep.subr.mxu0 0.0
  %2315 = vmatpush1.xpose.msra.mxu0 0.0
  %2316 = vmatprep.subr.mxu0 0.0
  %2317 = vmatpush1.xpose.msra.mxu0 0.0
  %2318 = vmatprep.subr.mxu0 0.0
  %2319 = vmatpush1.xpose.msra.mxu0 0.0
  %2320 = vmatprep.subr.mxu0 0.0
  %2321 = vmatpush1.xpose.msra.mxu0 0.0
  %2322 = vmatprep.subr.mxu0 0.0
  %2323 = vmatpush1.xpose.msra.mxu0 0.0
  %2324 = vmatprep.subr.mxu0 0.0
  %2325 = vmatpush1.xpose.msra.mxu0 0.0
  %2326 = vmatprep.subr.mxu0 0.0
  %2327 = vmatpush1.xpose.msra.mxu0 0.0
  %2328 = vmatprep.subr.mxu0 0.0
  %2329 = vmatpush1.xpose.msra.mxu0 0.0
  %2330 = vmatprep.subr.mxu0 0.0
  %2331 = vmatpush1.xpose.msra.mxu0 0.0
  %2332 = vmatprep.subr.mxu0 0.0
  %2333 = vmatpush1.xpose.msra.mxu0 0.0
  %2334 = vmatprep.subr.mxu0 0.0
  %2335 = vmatpush1.xpose.msra.mxu0 0.0
  %2336 = vmatprep.subr.mxu0 0.0
  %2337 = vmatpush1.xpose.msra.mxu0 0.0
  %2338 = vmatprep.subr.mxu0 0.0
  %2339 = vmatpush1.xpose.msra.mxu0 0.0
  %2340 = vmatprep.subr.mxu0 0.0
  %2341 = vmatpush1.xpose.msra.mxu0 0.0
  %2342 = vmatprep.mubr.f32.mxu0 0.0
  %2343 = vmatmul.mubr.f32.gmra.mrb[0].mxu0 %v2268
  %v2344 = vpop.f32.mrb[0].mxu0
  %v2345 = vadd.f32 0.0, %v2344
  %v2346 = vpop.f32.mrb[0].mxu0
  %2347 = vdwg.mxu0
  %2348 = vrot.lane.b32.xlu0 %v1679, 104
  %v2349 = vpop.permute.xlu0 %2348
  %2350 = vrot.lane.b32.xlu0 %v1680, 104
  %v2351 = vpop.permute.xlu0 %2350
  %v2354 = vsel %vm199, %v2349, 0.0
  %2355 = vadd.xlane.f32.xlu0 %v2354
  %v2356 = vpop.xlane.xlu0 %2355
  %v2357 = vsel %vm199, %v2351, 0.0
  %2358 = vadd.xlane.f32.xlu0 %v2357
  %v2359 = vpop.xlane.xlu0 %2358
  %v2360 = vlaneseq
  %v2361 = vshrl.u32 %v2360, 7
  %v2362 = vsub.s32 0, %v2361
  %v2363 = vrot.slane %v2345, %v2362
  %v2364 = vadd.f32 %v2356, %v2363
  %v2365 = vadd.f32 %v2359, %v2363
  %vm2366 = vcmp.gt.f32.partialorder %v2364, 0.0
  %vm2367 = vcmp.gt.f32.partialorder %v2365, 0.0
  %v2368 = vmul.f32 %v2364, 0.2
  %v2369 = vmul.f32 %v2365, 0.2
  %v2370 = vsel %vm2366, %v2364, %v2368
  %v2371 = vsel %vm2367, %v2365, %v2369
  %v2372 = vsel %vm1699, %v2370, -1e+30
  %v2373 = vsel %vm1700, %v2371, -1e+30
  %v2374 = vsel %vm1488, %v2372, -inf
  %2375 = vmax.xlane.f32.xlu0 %v2374
  %v2376 = vpop.xlane.xlu0 %2375
  %v2377 = vsel %vm1488, %v2373, -inf
  %2378 = vmax.xlane.f32.xlu0 %v2377
  %v2379 = vpop.xlane.xlu0 %2378
  %v2380 = vsub.f32 %v2372, %v2376
  %v2381 = vsub.f32 %v2373, %v2379
  %v2382 = vmul.f32 %v2380, 1.442695
  %v2383 = vpow.pop %v2382
  %v2384 = vmul.f32 %v2381, 1.442695
  %v2385 = vpow.pop %v2384
  %v2386 = vsel %vm1488, %v2383, 0.0
  %2387 = vadd.xlane.f32.xlu0 %v2386
  %v2388 = vpop.xlane.xlu0 %2387
  %v2389 = vsel %vm1488, %v2385, 0.0
  %2390 = vadd.xlane.f32.xlu0 %v2389
  %v2391 = vpop.xlane.xlu0 %2390
  %v2392 = vrcp.pop %v2388
  %v2393 = vrcp.pop %v2391
  %v2394 = vmul.f32 %v2383, %v2392
  %v2395 = vmul.f32 %v2385, %v2393
  %v2401 = vsel %vm1488, %v2394, 0
  %v2404 = vsel %vm1488, %v2395, 0
  %2406 = vmatprep.subr.mxu0 0.0
  %2407 = vmatpush1.msra.mxu0 %v2261
  %2408 = vmatprep.subr.mxu0 0.0
  %2409 = vmatpush1.msra.mxu0 %v2263
  %2410 = vmatprep.subr.mxu0 0.0
  %2411 = vmatpush1.msra.mxu0 %v2265
  %2412 = vmatprep.subr.mxu0 0.0
  %2413 = vmatpush1.msra.mxu0 %v2267
  %2414 = vmatprep.subr.mxu0 0.0
  %2415 = vmatpush1.msra.mxu0 0.0
  %2416 = vmatprep.subr.mxu0 0.0
  %2417 = vmatpush1.msra.mxu0 0.0
  %2418 = vmatprep.subr.mxu0 0.0
  %2419 = vmatpush1.msra.mxu0 0.0
  %2420 = vmatprep.subr.mxu0 0.0
  %2421 = vmatpush1.msra.mxu0 0.0
  %2422 = vmatprep.subr.mxu0 0.0
  %2423 = vmatpush1.msra.mxu0 0.0
  %2424 = vmatprep.subr.mxu0 0.0
  %2425 = vmatpush1.msra.mxu0 0.0
  %2426 = vmatprep.subr.mxu0 0.0
  %2427 = vmatpush1.msra.mxu0 0.0
  %2428 = vmatprep.subr.mxu0 0.0
  %2429 = vmatpush1.msra.mxu0 0.0
  %2430 = vmatprep.subr.mxu0 0.0
  %2431 = vmatpush1.msra.mxu0 0.0
  %2432 = vmatprep.subr.mxu0 0.0
  %2433 = vmatpush1.msra.mxu0 0.0
  %2434 = vmatprep.subr.mxu0 0.0
  %2435 = vmatpush1.msra.mxu0 0.0
  %2436 = vmatprep.subr.mxu0 0.0
  %2437 = vmatpush1.msra.mxu0 0.0
  %2438 = vmatprep.subr.mxu0 0.0
  %2439 = vmatpush1.msra.mxu0 0.0
  %2440 = vmatprep.subr.mxu0 0.0
  %2441 = vmatpush1.msra.mxu0 0.0
  %2442 = vmatprep.subr.mxu0 0.0
  %2443 = vmatpush1.msra.mxu0 0.0
  %2444 = vmatprep.subr.mxu0 0.0
  %2445 = vmatpush1.msra.mxu0 0.0
  %2446 = vmatprep.subr.mxu0 0.0
  %2447 = vmatpush1.msra.mxu0 0.0
  %2448 = vmatprep.subr.mxu0 0.0
  %2449 = vmatpush1.msra.mxu0 0.0
  %2450 = vmatprep.subr.mxu0 0.0
  %2451 = vmatpush1.msra.mxu0 0.0
  %2452 = vmatprep.subr.mxu0 0.0
  %2453 = vmatpush1.msra.mxu0 0.0
  %2454 = vmatprep.subr.mxu0 0.0
  %2455 = vmatpush1.msra.mxu0 0.0
  %2456 = vmatprep.subr.mxu0 0.0
  %2457 = vmatpush1.msra.mxu0 0.0
  %2458 = vmatprep.subr.mxu0 0.0
  %2459 = vmatpush1.msra.mxu0 0.0
  %2460 = vmatprep.subr.mxu0 0.0
  %2461 = vmatpush1.msra.mxu0 0.0
  %2462 = vmatprep.subr.mxu0 0.0
  %2463 = vmatpush1.msra.mxu0 0.0
  %2464 = vmatprep.subr.mxu0 0.0
  %2465 = vmatpush1.msra.mxu0 0.0
  %2466 = vmatprep.subr.mxu0 0.0
  %2467 = vmatpush1.msra.mxu0 0.0
  %2468 = vmatprep.subr.mxu0 0.0
  %2469 = vmatpush1.msra.mxu0 0.0
  %2470 = vmatprep.mubr.f32.mxu0 0.0
  %2471 = vmatmul.mubr.f32.gmra.mrb[0].mxu0 %v2401
  %v2472 = vpop.f32.mrb[0].mxu0
  %v2473 = vadd.f32 0.0, %v2472
  %v2474 = vpop.f32.mrb[0].mxu0
  %2475 = vmatprep.mubr.f32.mxu0 0.0
  %2476 = vmatmul.mubr.f32.gmra.mrb[0].mxu0 %v2404
  %v2477 = vpop.f32.mrb[0].mxu0
  %v2478 = vadd.f32 0.0, %v2477
  %v2479 = vpop.f32.mrb[0].mxu0
  %2480 = vdwg.mxu0
  %2483 = vrot.lane.b32.xlu0 %v2027, 8
  %v2484 = vpop.permute.xlu0 %2483
  %2485 = vrot.lane.b32.xlu0 %v2032, 8
  %v2486 = vpop.permute.xlu0 %2485
  %2491 = vrot.lane.b32.xlu0 %v2250, 16
  %v2492 = vpop.permute.xlu0 %2491
  %2493 = vrot.lane.b32.xlu0 %v2255, 16
  %v2494 = vpop.permute.xlu0 %2493
  %2499 = vrot.lane.b32.xlu0 %v2473, 24
  %v2500 = vpop.permute.xlu0 %2499
  %2501 = vrot.lane.b32.xlu0 %v2478, 24
  %v2502 = vpop.permute.xlu0 %2501
  %v2505 = vsel %vm199, %v1798, %v2484
  %v2506 = vsel %vm199, %v1803, %v2486
  %v2507 = vsel %vm67, %v2505, %v2492
  %v2508 = vsel %vm67, %v2506, %v2494
  %v2509 = vsel %vm1462, %v2507, %v2500
  %v2510 = vsel %vm1462, %v2508, %v2502
  %v2511 = vld [vmem:[%s10] sm:$0x1]
  %v2513 = vlaneseq
  %v2514 = vshrl.u32 %v2513, 7
  %v2515 = vsub.s32 0, %v2514
  %v2516 = vrot.slane %v2511, %v2515
  %v2518 = vadd.f32 %v2509, %v2516
  %v2519 = vadd.f32 %v2510, %v2516
  %v2520 = vmax.f32 %v2518, 0.0
  %v2521 = vmax.f32 %v2519, 0.0
  %v2522 = vld [vmem:[%s11] sm:$0xff]
  %v2523 = vld [vmem:[%s12] sm:$0xff]
  %v2524 = vld [vmem:[%s12 + $0x8] sm:$0xff]
  %v2525 = vld [vmem:[%s12 + $0x10] sm:$0xff]
  %v2526 = vld [vmem:[%s12 + $0x18] sm:$0xff]
  %v2528 = vsel %vm1488, %v2520, 0
  %v2531 = vsel %vm1488, %v2521, 0
  %2533 = vmatprep.subr.mxu0 0.0
  %2534 = vmatpush1.msra.mxu0 %v2523
  %2535 = vmatprep.subr.mxu0 0.0
  %2536 = vmatpush1.msra.mxu0 %v2524
  %2537 = vmatprep.subr.mxu0 0.0
  %2538 = vmatpush1.msra.mxu0 %v2525
  %2539 = vmatprep.subr.mxu0 0.0
  %2540 = vmatpush1.msra.mxu0 %v2526
  %2541 = vmatprep.subr.mxu0 0.0
  %2542 = vmatpush1.msra.mxu0 0.0
  %2543 = vmatprep.subr.mxu0 0.0
  %2544 = vmatpush1.msra.mxu0 0.0
  %2545 = vmatprep.subr.mxu0 0.0
  %2546 = vmatpush1.msra.mxu0 0.0
  %2547 = vmatprep.subr.mxu0 0.0
  %2548 = vmatpush1.msra.mxu0 0.0
  %2549 = vmatprep.subr.mxu0 0.0
  %2550 = vmatpush1.msra.mxu0 0.0
  %2551 = vmatprep.subr.mxu0 0.0
  %2552 = vmatpush1.msra.mxu0 0.0
  %2553 = vmatprep.subr.mxu0 0.0
  %2554 = vmatpush1.msra.mxu0 0.0
  %2555 = vmatprep.subr.mxu0 0.0
  %2556 = vmatpush1.msra.mxu0 0.0
  %2557 = vmatprep.subr.mxu0 0.0
  %2558 = vmatpush1.msra.mxu0 0.0
  %2559 = vmatprep.subr.mxu0 0.0
  %2560 = vmatpush1.msra.mxu0 0.0
  %2561 = vmatprep.subr.mxu0 0.0
  %2562 = vmatpush1.msra.mxu0 0.0
  %2563 = vmatprep.subr.mxu0 0.0
  %2564 = vmatpush1.msra.mxu0 0.0
  %2565 = vmatprep.subr.mxu0 0.0
  %2566 = vmatpush1.msra.mxu0 0.0
  %2567 = vmatprep.subr.mxu0 0.0
  %2568 = vmatpush1.msra.mxu0 0.0
  %2569 = vmatprep.subr.mxu0 0.0
  %2570 = vmatpush1.msra.mxu0 0.0
  %2571 = vmatprep.subr.mxu0 0.0
  %2572 = vmatpush1.msra.mxu0 0.0
  %2573 = vmatprep.subr.mxu0 0.0
  %2574 = vmatpush1.msra.mxu0 0.0
  %2575 = vmatprep.subr.mxu0 0.0
  %2576 = vmatpush1.msra.mxu0 0.0
  %2577 = vmatprep.subr.mxu0 0.0
  %2578 = vmatpush1.msra.mxu0 0.0
  %2579 = vmatprep.subr.mxu0 0.0
  %2580 = vmatpush1.msra.mxu0 0.0
  %2581 = vmatprep.subr.mxu0 0.0
  %2582 = vmatpush1.msra.mxu0 0.0
  %2583 = vmatprep.subr.mxu0 0.0
  %2584 = vmatpush1.msra.mxu0 0.0
  %2585 = vmatprep.subr.mxu0 0.0
  %2586 = vmatpush1.msra.mxu0 0.0
  %2587 = vmatprep.subr.mxu0 0.0
  %2588 = vmatpush1.msra.mxu0 0.0
  %2589 = vmatprep.subr.mxu0 0.0
  %2590 = vmatpush1.msra.mxu0 0.0
  %2591 = vmatprep.subr.mxu0 0.0
  %2592 = vmatpush1.msra.mxu0 0.0
  %2593 = vmatprep.subr.mxu0 0.0
  %2594 = vmatpush1.msra.mxu0 0.0
  %2595 = vmatprep.subr.mxu0 0.0
  %2596 = vmatpush1.msra.mxu0 0.0
  %2597 = vmatprep.mubr.f32.mxu0 0.0
  %2598 = vmatmul.mubr.f32.gmra.mrb[0].mxu0 %v2528
  %v2599 = vpop.f32.mrb[0].mxu0
  %v2600 = vadd.f32 0.0, %v2599
  %v2601 = vpop.f32.mrb[0].mxu0
  %2602 = vmatprep.mubr.f32.mxu0 0.0
  %2603 = vmatmul.mubr.f32.gmra.mrb[0].mxu0 %v2531
  %v2604 = vpop.f32.mrb[0].mxu0
  %v2605 = vadd.f32 0.0, %v2604
  %v2606 = vpop.f32.mrb[0].mxu0
  %2607 = vdwg.mxu0
  %v2608 = vld [vmem:[%s13] sm:$0x1]
  %v2609 = vld [vmem:[%s14] sm:$0x1]
  %vm2610 = vcmask 31744
  %v2612 = vsel %vm2610, %v2608, 0
  %v2615 = vsel %vm2610, %v2600, 0
  %v2618 = vsel %vm2610, %v2605, 0
  %2620 = vmatprep.subr.mxu0 0.0
  %2621 = vmatpush1.xpose.msra.mxu0 %v2615
  %2622 = vmatprep.subr.mxu0 0.0
  %2623 = vmatpush1.xpose.msra.mxu0 %v2618
  %2624 = vmatprep.subr.mxu0 0.0
  %2625 = vmatpush1.xpose.msra.mxu0 0.0
  %2626 = vmatprep.subr.mxu0 0.0
  %2627 = vmatpush1.xpose.msra.mxu0 0.0
  %2628 = vmatprep.subr.mxu0 0.0
  %2629 = vmatpush1.xpose.msra.mxu0 0.0
  %2630 = vmatprep.subr.mxu0 0.0
  %2631 = vmatpush1.xpose.msra.mxu0 0.0
  %2632 = vmatprep.subr.mxu0 0.0
  %2633 = vmatpush1.xpose.msra.mxu0 0.0
  %2634 = vmatprep.subr.mxu0 0.0
  %2635 = vmatpush1.xpose.msra.mxu0 0.0
  %2636 = vmatprep.subr.mxu0 0.0
  %2637 = vmatpush1.xpose.msra.mxu0 0.0
  %2638 = vmatprep.subr.mxu0 0.0
  %2639 = vmatpush1.xpose.msra.mxu0 0.0
  %2640 = vmatprep.subr.mxu0 0.0
  %2641 = vmatpush1.xpose.msra.mxu0 0.0
  %2642 = vmatprep.subr.mxu0 0.0
  %2643 = vmatpush1.xpose.msra.mxu0 0.0
  %2644 = vmatprep.subr.mxu0 0.0
  %2645 = vmatpush1.xpose.msra.mxu0 0.0
  %2646 = vmatprep.subr.mxu0 0.0
  %2647 = vmatpush1.xpose.msra.mxu0 0.0
  %2648 = vmatprep.subr.mxu0 0.0
  %2649 = vmatpush1.xpose.msra.mxu0 0.0
  %2650 = vmatprep.subr.mxu0 0.0
  %2651 = vmatpush1.xpose.msra.mxu0 0.0
  %2652 = vmatprep.subr.mxu0 0.0
  %2653 = vmatpush1.xpose.msra.mxu0 0.0
  %2654 = vmatprep.subr.mxu0 0.0
  %2655 = vmatpush1.xpose.msra.mxu0 0.0
  %2656 = vmatprep.subr.mxu0 0.0
  %2657 = vmatpush1.xpose.msra.mxu0 0.0
  %2658 = vmatprep.subr.mxu0 0.0
  %2659 = vmatpush1.xpose.msra.mxu0 0.0
  %2660 = vmatprep.subr.mxu0 0.0
  %2661 = vmatpush1.xpose.msra.mxu0 0.0
  %2662 = vmatprep.subr.mxu0 0.0
  %2663 = vmatpush1.xpose.msra.mxu0 0.0
  %2664 = vmatprep.subr.mxu0 0.0
  %2665 = vmatpush1.xpose.msra.mxu0 0.0
  %2666 = vmatprep.subr.mxu0 0.0
  %2667 = vmatpush1.xpose.msra.mxu0 0.0
  %2668 = vmatprep.subr.mxu0 0.0
  %2669 = vmatpush1.xpose.msra.mxu0 0.0
  %2670 = vmatprep.subr.mxu0 0.0
  %2671 = vmatpush1.xpose.msra.mxu0 0.0
  %2672 = vmatprep.subr.mxu0 0.0
  %2673 = vmatpush1.xpose.msra.mxu0 0.0
  %2674 = vmatprep.subr.mxu0 0.0
  %2675 = vmatpush1.xpose.msra.mxu0 0.0
  %2676 = vmatprep.subr.mxu0 0.0
  %2677 = vmatpush1.xpose.msra.mxu0 0.0
  %2678 = vmatprep.subr.mxu0 0.0
  %2679 = vmatpush1.xpose.msra.mxu0 0.0
  %2680 = vmatprep.subr.mxu0 0.0
  %2681 = vmatpush1.xpose.msra.mxu0 0.0
  %2682 = vmatprep.subr.mxu0 0.0
  %2683 = vmatpush1.xpose.msra.mxu0 0.0
  %2684 = vmatprep.mubr.f32.mxu0 0.0
  %2685 = vmatmul.mubr.f32.gmra.mrb[0].mxu0 %v2612
  %v2686 = vpop.f32.mrb[0].mxu0
  %v2687 = vadd.f32 0.0, %v2686
  %v2688 = vpop.f32.mrb[0].mxu0
  %2689 = vdwg.mxu0
  %v2691 = vlaneseq
  %v2692 = vshrl.u32 %v2691, 7
  %v2693 = vsub.s32 0, %v2692
  %v2694 = vrot.slane %v2609, %v2693
  %v2696 = vmul.f32 %v2600, %v2694
  %v2697 = vsel %vm2610, %v2696, 0.0
  %2698 = vadd.xlane.f32.xlu0 %v2697
  %v2699 = vpop.xlane.xlu0 %2698
  %v2700 = vlaneseq
  %v2701 = vshrl.u32 %v2700, 7
  %v2702 = vsub.s32 0, %v2701
  %v2703 = vrot.slane %v2687, %v2702
  %v2704 = vadd.f32 %v2699, %v2703
  %vm2705 = vcmp.gt.f32.partialorder %v2704, 0.0
  %v2706 = vmul.f32 %v2704, 0.2
  %v2707 = vsel %vm2705, %v2704, %v2706
  %vm2708 = vcmp.gt.f32.partialorder %v2522, 0.0
  %v2709 = vsel %vm2708, %v2707, -1e+30
  %v2710 = vsel %vm67, %v2709, -inf
  %2711 = vmax.xlane.f32.xlu0 %v2710
  %v2712 = vpop.xlane.xlu0 %2711
  %v2713 = vsub.f32 %v2709, %v2712
  %v2714 = vmul.f32 %v2713, 1.442695
  %v2715 = vpow.pop %v2714
  %v2716 = vsel %vm67, %v2715, 0.0
  %2717 = vadd.xlane.f32.xlu0 %v2716
  %v2718 = vpop.xlane.xlu0 %2717
  %v2719 = vrcp.pop %v2718
  %v2720 = vmul.f32 %v2715, %v2719
  %v2721 = vlaneseq
  %v2722 = vshrl.u32 %v2721, 7
  %v2723 = vsub.s32 0, %v2722
  %v2724 = vrot.slane %v2608, %v2723
  %2725 = vrot.lane.b32.xlu0 %v2724, 124
  %v2726 = vpop.permute.xlu0 %2725
  %2727 = vrot.lane.b32.xlu0 %v2600, 124
  %v2728 = vpop.permute.xlu0 %2727
  %2729 = vrot.lane.b32.xlu0 %v2605, 124
  %v2730 = vpop.permute.xlu0 %2729
  %v2731 = vsel %vm2610, %v2726, 0
  %v2733 = vsel %vm2610, %v2728, 0
  %v2735 = vsel %vm2610, %v2730, 0
  %2737 = vmatprep.subr.mxu0 0.0
  %2738 = vmatpush1.xpose.msra.mxu0 %v2733
  %2739 = vmatprep.subr.mxu0 0.0
  %2740 = vmatpush1.xpose.msra.mxu0 %v2735
  %2741 = vmatprep.subr.mxu0 0.0
  %2742 = vmatpush1.xpose.msra.mxu0 0.0
  %2743 = vmatprep.subr.mxu0 0.0
  %2744 = vmatpush1.xpose.msra.mxu0 0.0
  %2745 = vmatprep.subr.mxu0 0.0
  %2746 = vmatpush1.xpose.msra.mxu0 0.0
  %2747 = vmatprep.subr.mxu0 0.0
  %2748 = vmatpush1.xpose.msra.mxu0 0.0
  %2749 = vmatprep.subr.mxu0 0.0
  %2750 = vmatpush1.xpose.msra.mxu0 0.0
  %2751 = vmatprep.subr.mxu0 0.0
  %2752 = vmatpush1.xpose.msra.mxu0 0.0
  %2753 = vmatprep.subr.mxu0 0.0
  %2754 = vmatpush1.xpose.msra.mxu0 0.0
  %2755 = vmatprep.subr.mxu0 0.0
  %2756 = vmatpush1.xpose.msra.mxu0 0.0
  %2757 = vmatprep.subr.mxu0 0.0
  %2758 = vmatpush1.xpose.msra.mxu0 0.0
  %2759 = vmatprep.subr.mxu0 0.0
  %2760 = vmatpush1.xpose.msra.mxu0 0.0
  %2761 = vmatprep.subr.mxu0 0.0
  %2762 = vmatpush1.xpose.msra.mxu0 0.0
  %2763 = vmatprep.subr.mxu0 0.0
  %2764 = vmatpush1.xpose.msra.mxu0 0.0
  %2765 = vmatprep.subr.mxu0 0.0
  %2766 = vmatpush1.xpose.msra.mxu0 0.0
  %2767 = vmatprep.subr.mxu0 0.0
  %2768 = vmatpush1.xpose.msra.mxu0 0.0
  %2769 = vmatprep.subr.mxu0 0.0
  %2770 = vmatpush1.xpose.msra.mxu0 0.0
  %2771 = vmatprep.subr.mxu0 0.0
  %2772 = vmatpush1.xpose.msra.mxu0 0.0
  %2773 = vmatprep.subr.mxu0 0.0
  %2774 = vmatpush1.xpose.msra.mxu0 0.0
  %2775 = vmatprep.subr.mxu0 0.0
  %2776 = vmatpush1.xpose.msra.mxu0 0.0
  %2777 = vmatprep.subr.mxu0 0.0
  %2778 = vmatpush1.xpose.msra.mxu0 0.0
  %2779 = vmatprep.subr.mxu0 0.0
  %2780 = vmatpush1.xpose.msra.mxu0 0.0
  %2781 = vmatprep.subr.mxu0 0.0
  %2782 = vmatpush1.xpose.msra.mxu0 0.0
  %2783 = vmatprep.subr.mxu0 0.0
  %2784 = vmatpush1.xpose.msra.mxu0 0.0
  %2785 = vmatprep.subr.mxu0 0.0
  %2786 = vmatpush1.xpose.msra.mxu0 0.0
  %2787 = vmatprep.subr.mxu0 0.0
  %2788 = vmatpush1.xpose.msra.mxu0 0.0
  %2789 = vmatprep.subr.mxu0 0.0
  %2790 = vmatpush1.xpose.msra.mxu0 0.0
  %2791 = vmatprep.subr.mxu0 0.0
  %2792 = vmatpush1.xpose.msra.mxu0 0.0
  %2793 = vmatprep.subr.mxu0 0.0
  %2794 = vmatpush1.xpose.msra.mxu0 0.0
  %2795 = vmatprep.subr.mxu0 0.0
  %2796 = vmatpush1.xpose.msra.mxu0 0.0
  %2797 = vmatprep.subr.mxu0 0.0
  %2798 = vmatpush1.xpose.msra.mxu0 0.0
  %2799 = vmatprep.subr.mxu0 0.0
  %2800 = vmatpush1.xpose.msra.mxu0 0.0
  %2801 = vmatprep.mubr.f32.mxu0 0.0
  %2802 = vmatmul.mubr.f32.gmra.mrb[0].mxu0 %v2731
  %v2803 = vpop.f32.mrb[0].mxu0
  %v2804 = vadd.f32 0.0, %v2803
  %v2805 = vpop.f32.mrb[0].mxu0
  %2806 = vdwg.mxu0
  %2808 = vrot.lane.b32.xlu0 %v2696, 124
  %v2809 = vpop.permute.xlu0 %2808
  %v2811 = vsel %vm2610, %v2809, 0.0
  %2812 = vadd.xlane.f32.xlu0 %v2811
  %v2813 = vpop.xlane.xlu0 %2812
  %v2814 = vlaneseq
  %v2815 = vshrl.u32 %v2814, 7
  %v2816 = vsub.s32 0, %v2815
  %v2817 = vrot.slane %v2804, %v2816
  %v2818 = vadd.f32 %v2813, %v2817
  %vm2819 = vcmp.gt.f32.partialorder %v2818, 0.0
  %v2820 = vmul.f32 %v2818, 0.2
  %v2821 = vsel %vm2819, %v2818, %v2820
  %v2822 = vsel %vm2708, %v2821, -1e+30
  %v2823 = vsel %vm67, %v2822, -inf
  %2824 = vmax.xlane.f32.xlu0 %v2823
  %v2825 = vpop.xlane.xlu0 %2824
  %v2826 = vsub.f32 %v2822, %v2825
  %v2827 = vmul.f32 %v2826, 1.442695
  %v2828 = vpow.pop %v2827
  %v2829 = vsel %vm67, %v2828, 0.0
  %2830 = vadd.xlane.f32.xlu0 %v2829
  %v2831 = vpop.xlane.xlu0 %2830
  %v2832 = vrcp.pop %v2831
  %v2833 = vmul.f32 %v2828, %v2832
  %v2837 = vsel %vm67, %v2833, 0
  %2839 = vmatprep.subr.mxu0 0.0
  %2840 = vmatpush1.msra.mxu0 %v2728
  %2841 = vmatprep.subr.mxu0 0.0
  %2842 = vmatpush1.msra.mxu0 %v2730
  %2843 = vmatprep.subr.mxu0 0.0
  %2844 = vmatpush1.msra.mxu0 0.0
  %2845 = vmatprep.subr.mxu0 0.0
  %2846 = vmatpush1.msra.mxu0 0.0
  %2847 = vmatprep.subr.mxu0 0.0
  %2848 = vmatpush1.msra.mxu0 0.0
  %2849 = vmatprep.subr.mxu0 0.0
  %2850 = vmatpush1.msra.mxu0 0.0
  %2851 = vmatprep.subr.mxu0 0.0
  %2852 = vmatpush1.msra.mxu0 0.0
  %2853 = vmatprep.subr.mxu0 0.0
  %2854 = vmatpush1.msra.mxu0 0.0
  %2855 = vmatprep.subr.mxu0 0.0
  %2856 = vmatpush1.msra.mxu0 0.0
  %2857 = vmatprep.subr.mxu0 0.0
  %2858 = vmatpush1.msra.mxu0 0.0
  %2859 = vmatprep.subr.mxu0 0.0
  %2860 = vmatpush1.msra.mxu0 0.0
  %2861 = vmatprep.subr.mxu0 0.0
  %2862 = vmatpush1.msra.mxu0 0.0
  %2863 = vmatprep.subr.mxu0 0.0
  %2864 = vmatpush1.msra.mxu0 0.0
  %2865 = vmatprep.subr.mxu0 0.0
  %2866 = vmatpush1.msra.mxu0 0.0
  %2867 = vmatprep.subr.mxu0 0.0
  %2868 = vmatpush1.msra.mxu0 0.0
  %2869 = vmatprep.subr.mxu0 0.0
  %2870 = vmatpush1.msra.mxu0 0.0
  %2871 = vmatprep.subr.mxu0 0.0
  %2872 = vmatpush1.msra.mxu0 0.0
  %2873 = vmatprep.subr.mxu0 0.0
  %2874 = vmatpush1.msra.mxu0 0.0
  %2875 = vmatprep.subr.mxu0 0.0
  %2876 = vmatpush1.msra.mxu0 0.0
  %2877 = vmatprep.subr.mxu0 0.0
  %2878 = vmatpush1.msra.mxu0 0.0
  %2879 = vmatprep.subr.mxu0 0.0
  %2880 = vmatpush1.msra.mxu0 0.0
  %2881 = vmatprep.subr.mxu0 0.0
  %2882 = vmatpush1.msra.mxu0 0.0
  %2883 = vmatprep.subr.mxu0 0.0
  %2884 = vmatpush1.msra.mxu0 0.0
  %2885 = vmatprep.subr.mxu0 0.0
  %2886 = vmatpush1.msra.mxu0 0.0
  %2887 = vmatprep.subr.mxu0 0.0
  %2888 = vmatpush1.msra.mxu0 0.0
  %2889 = vmatprep.subr.mxu0 0.0
  %2890 = vmatpush1.msra.mxu0 0.0
  %2891 = vmatprep.subr.mxu0 0.0
  %2892 = vmatpush1.msra.mxu0 0.0
  %2893 = vmatprep.subr.mxu0 0.0
  %2894 = vmatpush1.msra.mxu0 0.0
  %2895 = vmatprep.subr.mxu0 0.0
  %2896 = vmatpush1.msra.mxu0 0.0
  %2897 = vmatprep.subr.mxu0 0.0
  %2898 = vmatpush1.msra.mxu0 0.0
  %2899 = vmatprep.subr.mxu0 0.0
  %2900 = vmatpush1.msra.mxu0 0.0
  %2901 = vmatprep.subr.mxu0 0.0
  %2902 = vmatpush1.msra.mxu0 0.0
  %2903 = vmatprep.mubr.f32.mxu0 0.0
  %2904 = vmatmul.mubr.f32.gmra.mrb[0].mxu0 %v2837
  %v2905 = vpop.f32.mrb[0].mxu0
  %v2906 = vadd.f32 0.0, %v2905
  %v2907 = vpop.f32.mrb[0].mxu0
  %2908 = vdwg.mxu0
  %v2910 = vsel %vm67, %v2720, 0
  %2912 = vmatprep.subr.mxu0 0.0
  %2913 = vmatpush1.msra.mxu0 %v2600
  %2914 = vmatprep.subr.mxu0 0.0
  %2915 = vmatpush1.msra.mxu0 %v2605
  %2916 = vmatprep.subr.mxu0 0.0
  %2917 = vmatpush1.msra.mxu0 0.0
  %2918 = vmatprep.subr.mxu0 0.0
  %2919 = vmatpush1.msra.mxu0 0.0
  %2920 = vmatprep.subr.mxu0 0.0
  %2921 = vmatpush1.msra.mxu0 0.0
  %2922 = vmatprep.subr.mxu0 0.0
  %2923 = vmatpush1.msra.mxu0 0.0
  %2924 = vmatprep.subr.mxu0 0.0
  %2925 = vmatpush1.msra.mxu0 0.0
  %2926 = vmatprep.subr.mxu0 0.0
  %2927 = vmatpush1.msra.mxu0 0.0
  %2928 = vmatprep.subr.mxu0 0.0
  %2929 = vmatpush1.msra.mxu0 0.0
  %2930 = vmatprep.subr.mxu0 0.0
  %2931 = vmatpush1.msra.mxu0 0.0
  %2932 = vmatprep.subr.mxu0 0.0
  %2933 = vmatpush1.msra.mxu0 0.0
  %2934 = vmatprep.subr.mxu0 0.0
  %2935 = vmatpush1.msra.mxu0 0.0
  %2936 = vmatprep.subr.mxu0 0.0
  %2937 = vmatpush1.msra.mxu0 0.0
  %2938 = vmatprep.subr.mxu0 0.0
  %2939 = vmatpush1.msra.mxu0 0.0
  %2940 = vmatprep.subr.mxu0 0.0
  %2941 = vmatpush1.msra.mxu0 0.0
  %2942 = vmatprep.subr.mxu0 0.0
  %2943 = vmatpush1.msra.mxu0 0.0
  %2944 = vmatprep.subr.mxu0 0.0
  %2945 = vmatpush1.msra.mxu0 0.0
  %2946 = vmatprep.subr.mxu0 0.0
  %2947 = vmatpush1.msra.mxu0 0.0
  %2948 = vmatprep.subr.mxu0 0.0
  %2949 = vmatpush1.msra.mxu0 0.0
  %2950 = vmatprep.subr.mxu0 0.0
  %2951 = vmatpush1.msra.mxu0 0.0
  %2952 = vmatprep.subr.mxu0 0.0
  %2953 = vmatpush1.msra.mxu0 0.0
  %2954 = vmatprep.subr.mxu0 0.0
  %2955 = vmatpush1.msra.mxu0 0.0
  %2956 = vmatprep.subr.mxu0 0.0
  %2957 = vmatpush1.msra.mxu0 0.0
  %2958 = vmatprep.subr.mxu0 0.0
  %2959 = vmatpush1.msra.mxu0 0.0
  %2960 = vmatprep.subr.mxu0 0.0
  %2961 = vmatpush1.msra.mxu0 0.0
  %2962 = vmatprep.subr.mxu0 0.0
  %2963 = vmatpush1.msra.mxu0 0.0
  %2964 = vmatprep.subr.mxu0 0.0
  %2965 = vmatpush1.msra.mxu0 0.0
  %2966 = vmatprep.subr.mxu0 0.0
  %2967 = vmatpush1.msra.mxu0 0.0
  %2968 = vmatprep.subr.mxu0 0.0
  %2969 = vmatpush1.msra.mxu0 0.0
  %2970 = vmatprep.subr.mxu0 0.0
  %2971 = vmatpush1.msra.mxu0 0.0
  %2972 = vmatprep.subr.mxu0 0.0
  %2973 = vmatpush1.msra.mxu0 0.0
  %2974 = vmatprep.subr.mxu0 0.0
  %2975 = vmatpush1.msra.mxu0 0.0
  %2976 = vmatprep.mubr.f32.mxu0 0.0
  %2977 = vmatmul.mubr.f32.gmra.mrb[0].mxu0 %v2910
  %v2978 = vpop.f32.mrb[0].mxu0
  %v2979 = vadd.f32 %v2906, %v2978
  %v2980 = vpop.f32.mrb[0].mxu0
  %2981 = vdwg.mxu0
  %2982 = vrot.lane.b32.xlu0 %v2724, 120
  %v2983 = vpop.permute.xlu0 %2982
  %2984 = vrot.lane.b32.xlu0 %v2600, 120
  %v2985 = vpop.permute.xlu0 %2984
  %2986 = vrot.lane.b32.xlu0 %v2605, 120
  %v2987 = vpop.permute.xlu0 %2986
  %v2988 = vsel %vm2610, %v2983, 0
  %v2990 = vsel %vm2610, %v2985, 0
  %v2992 = vsel %vm2610, %v2987, 0
  %2994 = vmatprep.subr.mxu0 0.0
  %2995 = vmatpush1.xpose.msra.mxu0 %v2990
  %2996 = vmatprep.subr.mxu0 0.0
  %2997 = vmatpush1.xpose.msra.mxu0 %v2992
  %2998 = vmatprep.subr.mxu0 0.0
  %2999 = vmatpush1.xpose.msra.mxu0 0.0
  %3000 = vmatprep.subr.mxu0 0.0
  %3001 = vmatpush1.xpose.msra.mxu0 0.0
  %3002 = vmatprep.subr.mxu0 0.0
  %3003 = vmatpush1.xpose.msra.mxu0 0.0
  %3004 = vmatprep.subr.mxu0 0.0
  %3005 = vmatpush1.xpose.msra.mxu0 0.0
  %3006 = vmatprep.subr.mxu0 0.0
  %3007 = vmatpush1.xpose.msra.mxu0 0.0
  %3008 = vmatprep.subr.mxu0 0.0
  %3009 = vmatpush1.xpose.msra.mxu0 0.0
  %3010 = vmatprep.subr.mxu0 0.0
  %3011 = vmatpush1.xpose.msra.mxu0 0.0
  %3012 = vmatprep.subr.mxu0 0.0
  %3013 = vmatpush1.xpose.msra.mxu0 0.0
  %3014 = vmatprep.subr.mxu0 0.0
  %3015 = vmatpush1.xpose.msra.mxu0 0.0
  %3016 = vmatprep.subr.mxu0 0.0
  %3017 = vmatpush1.xpose.msra.mxu0 0.0
  %3018 = vmatprep.subr.mxu0 0.0
  %3019 = vmatpush1.xpose.msra.mxu0 0.0
  %3020 = vmatprep.subr.mxu0 0.0
  %3021 = vmatpush1.xpose.msra.mxu0 0.0
  %3022 = vmatprep.subr.mxu0 0.0
  %3023 = vmatpush1.xpose.msra.mxu0 0.0
  %3024 = vmatprep.subr.mxu0 0.0
  %3025 = vmatpush1.xpose.msra.mxu0 0.0
  %3026 = vmatprep.subr.mxu0 0.0
  %3027 = vmatpush1.xpose.msra.mxu0 0.0
  %3028 = vmatprep.subr.mxu0 0.0
  %3029 = vmatpush1.xpose.msra.mxu0 0.0
  %3030 = vmatprep.subr.mxu0 0.0
  %3031 = vmatpush1.xpose.msra.mxu0 0.0
  %3032 = vmatprep.subr.mxu0 0.0
  %3033 = vmatpush1.xpose.msra.mxu0 0.0
  %3034 = vmatprep.subr.mxu0 0.0
  %3035 = vmatpush1.xpose.msra.mxu0 0.0
  %3036 = vmatprep.subr.mxu0 0.0
  %3037 = vmatpush1.xpose.msra.mxu0 0.0
  %3038 = vmatprep.subr.mxu0 0.0
  %3039 = vmatpush1.xpose.msra.mxu0 0.0
  %3040 = vmatprep.subr.mxu0 0.0
  %3041 = vmatpush1.xpose.msra.mxu0 0.0
  %3042 = vmatprep.subr.mxu0 0.0
  %3043 = vmatpush1.xpose.msra.mxu0 0.0
  %3044 = vmatprep.subr.mxu0 0.0
  %3045 = vmatpush1.xpose.msra.mxu0 0.0
  %3046 = vmatprep.subr.mxu0 0.0
  %3047 = vmatpush1.xpose.msra.mxu0 0.0
  %3048 = vmatprep.subr.mxu0 0.0
  %3049 = vmatpush1.xpose.msra.mxu0 0.0
  %3050 = vmatprep.subr.mxu0 0.0
  %3051 = vmatpush1.xpose.msra.mxu0 0.0
  %3052 = vmatprep.subr.mxu0 0.0
  %3053 = vmatpush1.xpose.msra.mxu0 0.0
  %3054 = vmatprep.subr.mxu0 0.0
  %3055 = vmatpush1.xpose.msra.mxu0 0.0
  %3056 = vmatprep.subr.mxu0 0.0
  %3057 = vmatpush1.xpose.msra.mxu0 0.0
  %3058 = vmatprep.mubr.f32.mxu0 0.0
  %3059 = vmatmul.mubr.f32.gmra.mrb[0].mxu0 %v2988
  %v3060 = vpop.f32.mrb[0].mxu0
  %v3061 = vadd.f32 0.0, %v3060
  %v3062 = vpop.f32.mrb[0].mxu0
  %3063 = vdwg.mxu0
  %3064 = vrot.lane.b32.xlu0 %v2696, 120
  %v3065 = vpop.permute.xlu0 %3064
  %v3067 = vsel %vm2610, %v3065, 0.0
  %3068 = vadd.xlane.f32.xlu0 %v3067
  %v3069 = vpop.xlane.xlu0 %3068
  %v3070 = vlaneseq
  %v3071 = vshrl.u32 %v3070, 7
  %v3072 = vsub.s32 0, %v3071
  %v3073 = vrot.slane %v3061, %v3072
  %v3074 = vadd.f32 %v3069, %v3073
  %vm3075 = vcmp.gt.f32.partialorder %v3074, 0.0
  %v3076 = vmul.f32 %v3074, 0.2
  %v3077 = vsel %vm3075, %v3074, %v3076
  %v3078 = vsel %vm2708, %v3077, -1e+30
  %v3079 = vsel %vm67, %v3078, -inf
  %3080 = vmax.xlane.f32.xlu0 %v3079
  %v3081 = vpop.xlane.xlu0 %3080
  %v3082 = vsub.f32 %v3078, %v3081
  %v3083 = vmul.f32 %v3082, 1.442695
  %v3084 = vpow.pop %v3083
  %v3085 = vsel %vm67, %v3084, 0.0
  %3086 = vadd.xlane.f32.xlu0 %v3085
  %v3087 = vpop.xlane.xlu0 %3086
  %v3088 = vrcp.pop %v3087
  %v3089 = vmul.f32 %v3084, %v3088
  %v3093 = vsel %vm67, %v3089, 0
  %3095 = vmatprep.subr.mxu0 0.0
  %3096 = vmatpush1.msra.mxu0 %v2985
  %3097 = vmatprep.subr.mxu0 0.0
  %3098 = vmatpush1.msra.mxu0 %v2987
  %3099 = vmatprep.subr.mxu0 0.0
  %3100 = vmatpush1.msra.mxu0 0.0
  %3101 = vmatprep.subr.mxu0 0.0
  %3102 = vmatpush1.msra.mxu0 0.0
  %3103 = vmatprep.subr.mxu0 0.0
  %3104 = vmatpush1.msra.mxu0 0.0
  %3105 = vmatprep.subr.mxu0 0.0
  %3106 = vmatpush1.msra.mxu0 0.0
  %3107 = vmatprep.subr.mxu0 0.0
  %3108 = vmatpush1.msra.mxu0 0.0
  %3109 = vmatprep.subr.mxu0 0.0
  %3110 = vmatpush1.msra.mxu0 0.0
  %3111 = vmatprep.subr.mxu0 0.0
  %3112 = vmatpush1.msra.mxu0 0.0
  %3113 = vmatprep.subr.mxu0 0.0
  %3114 = vmatpush1.msra.mxu0 0.0
  %3115 = vmatprep.subr.mxu0 0.0
  %3116 = vmatpush1.msra.mxu0 0.0
  %3117 = vmatprep.subr.mxu0 0.0
  %3118 = vmatpush1.msra.mxu0 0.0
  %3119 = vmatprep.subr.mxu0 0.0
  %3120 = vmatpush1.msra.mxu0 0.0
  %3121 = vmatprep.subr.mxu0 0.0
  %3122 = vmatpush1.msra.mxu0 0.0
  %3123 = vmatprep.subr.mxu0 0.0
  %3124 = vmatpush1.msra.mxu0 0.0
  %3125 = vmatprep.subr.mxu0 0.0
  %3126 = vmatpush1.msra.mxu0 0.0
  %3127 = vmatprep.subr.mxu0 0.0
  %3128 = vmatpush1.msra.mxu0 0.0
  %3129 = vmatprep.subr.mxu0 0.0
  %3130 = vmatpush1.msra.mxu0 0.0
  %3131 = vmatprep.subr.mxu0 0.0
  %3132 = vmatpush1.msra.mxu0 0.0
  %3133 = vmatprep.subr.mxu0 0.0
  %3134 = vmatpush1.msra.mxu0 0.0
  %3135 = vmatprep.subr.mxu0 0.0
  %3136 = vmatpush1.msra.mxu0 0.0
  %3137 = vmatprep.subr.mxu0 0.0
  %3138 = vmatpush1.msra.mxu0 0.0
  %3139 = vmatprep.subr.mxu0 0.0
  %3140 = vmatpush1.msra.mxu0 0.0
  %3141 = vmatprep.subr.mxu0 0.0
  %3142 = vmatpush1.msra.mxu0 0.0
  %3143 = vmatprep.subr.mxu0 0.0
  %3144 = vmatpush1.msra.mxu0 0.0
  %3145 = vmatprep.subr.mxu0 0.0
  %3146 = vmatpush1.msra.mxu0 0.0
  %3147 = vmatprep.subr.mxu0 0.0
  %3148 = vmatpush1.msra.mxu0 0.0
  %3149 = vmatprep.subr.mxu0 0.0
  %3150 = vmatpush1.msra.mxu0 0.0
  %3151 = vmatprep.subr.mxu0 0.0
  %3152 = vmatpush1.msra.mxu0 0.0
  %3153 = vmatprep.subr.mxu0 0.0
  %3154 = vmatpush1.msra.mxu0 0.0
  %3155 = vmatprep.subr.mxu0 0.0
  %3156 = vmatpush1.msra.mxu0 0.0
  %3157 = vmatprep.subr.mxu0 0.0
  %3158 = vmatpush1.msra.mxu0 0.0
  %3159 = vmatprep.mubr.f32.mxu0 0.0
  %3160 = vmatmul.mubr.f32.gmra.mrb[0].mxu0 %v3093
  %v3161 = vpop.f32.mrb[0].mxu0
  %v3162 = vadd.f32 0.0, %v3161
  %v3163 = vpop.f32.mrb[0].mxu0
  %3164 = vdwg.mxu0
  %v3165 = vadd.f32 %v2979, %v3162
  %3166 = vrot.lane.b32.xlu0 %v2724, 116
  %v3167 = vpop.permute.xlu0 %3166
  %3168 = vrot.lane.b32.xlu0 %v2600, 116
  %v3169 = vpop.permute.xlu0 %3168
  %3170 = vrot.lane.b32.xlu0 %v2605, 116
  %v3171 = vpop.permute.xlu0 %3170
  %v3172 = vsel %vm2610, %v3167, 0
  %v3174 = vsel %vm2610, %v3169, 0
  %v3176 = vsel %vm2610, %v3171, 0
  %3178 = vmatprep.subr.mxu0 0.0
  %3179 = vmatpush1.xpose.msra.mxu0 %v3174
  %3180 = vmatprep.subr.mxu0 0.0
  %3181 = vmatpush1.xpose.msra.mxu0 %v3176
  %3182 = vmatprep.subr.mxu0 0.0
  %3183 = vmatpush1.xpose.msra.mxu0 0.0
  %3184 = vmatprep.subr.mxu0 0.0
  %3185 = vmatpush1.xpose.msra.mxu0 0.0
  %3186 = vmatprep.subr.mxu0 0.0
  %3187 = vmatpush1.xpose.msra.mxu0 0.0
  %3188 = vmatprep.subr.mxu0 0.0
  %3189 = vmatpush1.xpose.msra.mxu0 0.0
  %3190 = vmatprep.subr.mxu0 0.0
  %3191 = vmatpush1.xpose.msra.mxu0 0.0
  %3192 = vmatprep.subr.mxu0 0.0
  %3193 = vmatpush1.xpose.msra.mxu0 0.0
  %3194 = vmatprep.subr.mxu0 0.0
  %3195 = vmatpush1.xpose.msra.mxu0 0.0
  %3196 = vmatprep.subr.mxu0 0.0
  %3197 = vmatpush1.xpose.msra.mxu0 0.0
  %3198 = vmatprep.subr.mxu0 0.0
  %3199 = vmatpush1.xpose.msra.mxu0 0.0
  %3200 = vmatprep.subr.mxu0 0.0
  %3201 = vmatpush1.xpose.msra.mxu0 0.0
  %3202 = vmatprep.subr.mxu0 0.0
  %3203 = vmatpush1.xpose.msra.mxu0 0.0
  %3204 = vmatprep.subr.mxu0 0.0
  %3205 = vmatpush1.xpose.msra.mxu0 0.0
  %3206 = vmatprep.subr.mxu0 0.0
  %3207 = vmatpush1.xpose.msra.mxu0 0.0
  %3208 = vmatprep.subr.mxu0 0.0
  %3209 = vmatpush1.xpose.msra.mxu0 0.0
  %3210 = vmatprep.subr.mxu0 0.0
  %3211 = vmatpush1.xpose.msra.mxu0 0.0
  %3212 = vmatprep.subr.mxu0 0.0
  %3213 = vmatpush1.xpose.msra.mxu0 0.0
  %3214 = vmatprep.subr.mxu0 0.0
  %3215 = vmatpush1.xpose.msra.mxu0 0.0
  %3216 = vmatprep.subr.mxu0 0.0
  %3217 = vmatpush1.xpose.msra.mxu0 0.0
  %3218 = vmatprep.subr.mxu0 0.0
  %3219 = vmatpush1.xpose.msra.mxu0 0.0
  %3220 = vmatprep.subr.mxu0 0.0
  %3221 = vmatpush1.xpose.msra.mxu0 0.0
  %3222 = vmatprep.subr.mxu0 0.0
  %3223 = vmatpush1.xpose.msra.mxu0 0.0
  %3224 = vmatprep.subr.mxu0 0.0
  %3225 = vmatpush1.xpose.msra.mxu0 0.0
  %3226 = vmatprep.subr.mxu0 0.0
  %3227 = vmatpush1.xpose.msra.mxu0 0.0
  %3228 = vmatprep.subr.mxu0 0.0
  %3229 = vmatpush1.xpose.msra.mxu0 0.0
  %3230 = vmatprep.subr.mxu0 0.0
  %3231 = vmatpush1.xpose.msra.mxu0 0.0
  %3232 = vmatprep.subr.mxu0 0.0
  %3233 = vmatpush1.xpose.msra.mxu0 0.0
  %3234 = vmatprep.subr.mxu0 0.0
  %3235 = vmatpush1.xpose.msra.mxu0 0.0
  %3236 = vmatprep.subr.mxu0 0.0
  %3237 = vmatpush1.xpose.msra.mxu0 0.0
  %3238 = vmatprep.subr.mxu0 0.0
  %3239 = vmatpush1.xpose.msra.mxu0 0.0
  %3240 = vmatprep.subr.mxu0 0.0
  %3241 = vmatpush1.xpose.msra.mxu0 0.0
  %3242 = vmatprep.mubr.f32.mxu0 0.0
  %3243 = vmatmul.mubr.f32.gmra.mrb[0].mxu0 %v3172
  %v3244 = vpop.f32.mrb[0].mxu0
  %v3245 = vadd.f32 0.0, %v3244
  %v3246 = vpop.f32.mrb[0].mxu0
  %3247 = vdwg.mxu0
  %3248 = vrot.lane.b32.xlu0 %v2696, 116
  %v3249 = vpop.permute.xlu0 %3248
  %v3251 = vsel %vm2610, %v3249, 0.0
  %3252 = vadd.xlane.f32.xlu0 %v3251
  %v3253 = vpop.xlane.xlu0 %3252
  %v3254 = vlaneseq
  %v3255 = vshrl.u32 %v3254, 7
  %v3256 = vsub.s32 0, %v3255
  %v3257 = vrot.slane %v3245, %v3256
  %v3258 = vadd.f32 %v3253, %v3257
  %vm3259 = vcmp.gt.f32.partialorder %v3258, 0.0
  %v3260 = vmul.f32 %v3258, 0.2
  %v3261 = vsel %vm3259, %v3258, %v3260
  %v3262 = vsel %vm2708, %v3261, -1e+30
  %v3263 = vsel %vm67, %v3262, -inf
  %3264 = vmax.xlane.f32.xlu0 %v3263
  %v3265 = vpop.xlane.xlu0 %3264
  %v3266 = vsub.f32 %v3262, %v3265
  %v3267 = vmul.f32 %v3266, 1.442695
  %v3268 = vpow.pop %v3267
  %v3269 = vsel %vm67, %v3268, 0.0
  %3270 = vadd.xlane.f32.xlu0 %v3269
  %v3271 = vpop.xlane.xlu0 %3270
  %v3272 = vrcp.pop %v3271
  %v3273 = vmul.f32 %v3268, %v3272
  %v3277 = vsel %vm67, %v3273, 0
  %3279 = vmatprep.subr.mxu0 0.0
  %3280 = vmatpush1.msra.mxu0 %v3169
  %3281 = vmatprep.subr.mxu0 0.0
  %3282 = vmatpush1.msra.mxu0 %v3171
  %3283 = vmatprep.subr.mxu0 0.0
  %3284 = vmatpush1.msra.mxu0 0.0
  %3285 = vmatprep.subr.mxu0 0.0
  %3286 = vmatpush1.msra.mxu0 0.0
  %3287 = vmatprep.subr.mxu0 0.0
  %3288 = vmatpush1.msra.mxu0 0.0
  %3289 = vmatprep.subr.mxu0 0.0
  %3290 = vmatpush1.msra.mxu0 0.0
  %3291 = vmatprep.subr.mxu0 0.0
  %3292 = vmatpush1.msra.mxu0 0.0
  %3293 = vmatprep.subr.mxu0 0.0
  %3294 = vmatpush1.msra.mxu0 0.0
  %3295 = vmatprep.subr.mxu0 0.0
  %3296 = vmatpush1.msra.mxu0 0.0
  %3297 = vmatprep.subr.mxu0 0.0
  %3298 = vmatpush1.msra.mxu0 0.0
  %3299 = vmatprep.subr.mxu0 0.0
  %3300 = vmatpush1.msra.mxu0 0.0
  %3301 = vmatprep.subr.mxu0 0.0
  %3302 = vmatpush1.msra.mxu0 0.0
  %3303 = vmatprep.subr.mxu0 0.0
  %3304 = vmatpush1.msra.mxu0 0.0
  %3305 = vmatprep.subr.mxu0 0.0
  %3306 = vmatpush1.msra.mxu0 0.0
  %3307 = vmatprep.subr.mxu0 0.0
  %3308 = vmatpush1.msra.mxu0 0.0
  %3309 = vmatprep.subr.mxu0 0.0
  %3310 = vmatpush1.msra.mxu0 0.0
  %3311 = vmatprep.subr.mxu0 0.0
  %3312 = vmatpush1.msra.mxu0 0.0
  %3313 = vmatprep.subr.mxu0 0.0
  %3314 = vmatpush1.msra.mxu0 0.0
  %3315 = vmatprep.subr.mxu0 0.0
  %3316 = vmatpush1.msra.mxu0 0.0
  %3317 = vmatprep.subr.mxu0 0.0
  %3318 = vmatpush1.msra.mxu0 0.0
  %3319 = vmatprep.subr.mxu0 0.0
  %3320 = vmatpush1.msra.mxu0 0.0
  %3321 = vmatprep.subr.mxu0 0.0
  %3322 = vmatpush1.msra.mxu0 0.0
  %3323 = vmatprep.subr.mxu0 0.0
  %3324 = vmatpush1.msra.mxu0 0.0
  %3325 = vmatprep.subr.mxu0 0.0
  %3326 = vmatpush1.msra.mxu0 0.0
  %3327 = vmatprep.subr.mxu0 0.0
  %3328 = vmatpush1.msra.mxu0 0.0
  %3329 = vmatprep.subr.mxu0 0.0
  %3330 = vmatpush1.msra.mxu0 0.0
  %3331 = vmatprep.subr.mxu0 0.0
  %3332 = vmatpush1.msra.mxu0 0.0
  %3333 = vmatprep.subr.mxu0 0.0
  %3334 = vmatpush1.msra.mxu0 0.0
  %3335 = vmatprep.subr.mxu0 0.0
  %3336 = vmatpush1.msra.mxu0 0.0
  %3337 = vmatprep.subr.mxu0 0.0
  %3338 = vmatpush1.msra.mxu0 0.0
  %3339 = vmatprep.subr.mxu0 0.0
  %3340 = vmatpush1.msra.mxu0 0.0
  %3341 = vmatprep.subr.mxu0 0.0
  %3342 = vmatpush1.msra.mxu0 0.0
  %3343 = vmatprep.mubr.f32.mxu0 0.0
  %3344 = vmatmul.mubr.f32.gmra.mrb[0].mxu0 %v3277
  %v3345 = vpop.f32.mrb[0].mxu0
  %v3346 = vadd.f32 0.0, %v3345
  %v3347 = vpop.f32.mrb[0].mxu0
  %3348 = vdwg.mxu0
  %v3349 = vadd.f32 %v3165, %v3346
  %v3350 = vmul.f32 %v3349, 0.25
  %v3351 = vld [vmem:[%s15] sm:$0x1]
  %v3353 = vlaneseq
  %v3354 = vshrl.u32 %v3353, 7
  %v3355 = vsub.s32 0, %v3354
  %v3356 = vrot.slane %v3351, %v3355
  %v3358 = vadd.f32 %v3350, %v3356
  %v3359 = vsel %vm2610, %v3358, -inf
  %3360 = vmax.xlane.f32.xlu0 %v3359
  %v3361 = vpop.xlane.xlu0 %3360
  %v3362 = vsub.f32 %v3358, %v3361
  %v3363 = vmul.f32 %v3362, 1.442695
  %v3364 = vpow.pop %v3363
  %v3365 = vsel %vm2610, %v3364, 0.0
  %3366 = vadd.xlane.f32.xlu0 %v3365
  %v3367 = vpop.xlane.xlu0 %3366
  %v3368 = vlog2.pop %v3367
  %v3369 = vmul.f32 %v3368, 0.6931472
  %v3370 = vadd.f32 %v3369, %v3361
  %v3371 = vsub.f32 %v3358, %v3370
  %3372 = vst.msk [vmem:[%s16] sm:$0xff] %vm2610, %v3371
  // Predicated region
  $region66: #{tpu_custom_call.1} parent=0 // pred_check
    _
  $region67: #{tpu_custom_call.1} parent=0 // pred_check_branch
    %3374 = sbr.rel (0) target = $region69
  $region68: #{tpu_custom_call.1} parent=0 // pred_region
    _
  $region69: #{tpu_custom_call.1} parent=0 // pred_fallthru
    _
  // Predicated region
  $region70: #{tpu_custom_call.1} parent=0 // pred_check
    _
  $region71: #{tpu_custom_call.1} parent=0 // pred_check_branch
    %3376 = sbr.rel (0) target = $region73
  $region72: #{tpu_custom_call.1} parent=0 // pred_region
    _
  $region73: #{tpu_custom_call.1} parent=0 // pred_fallthru
    _

</llo_original>
